<compile_context>
chip_gen: v5e
topology: v5e:2x2
jax: 0.10.0
libtpu: 0.0.40
codegen_flags: <defaults>
</compile_context>

<pallas_src>
import numpy as np

import jax
import jax.numpy as jnp
from jax.experimental import pallas as pl
from jax.experimental.pallas import tpu as pltpu


def _round_up(n, m):
    return ((n + m - 1) // m) * m


# ------------------------------- kernel --------------------------------------

def ssl_forward_kernel(x_ref, w1_ref, t1_ref, w2_ref, t2_ref, wh_ref, bh_ref,
                       out_ref):
    """Whole forward pass for one batch tile; everything resident in VMEM.

    x_ref : (TB, L)        bf16 raw signal tile
    w1_ref: (L, F1)        bf16 conv1 banded matrix (BN1 scale folded), F1 = pad128(L1*C1)
    t1_ref: (1, F1)        f32 fused conv-bias+BN1 shift
    w2_ref: (F1, F2)       bf16 conv2 banded matrix (BN2 scale folded), F2 = pad128(L2*C2)
    t2_ref: (1, F2)        f32 fused conv-bias+BN2 shift
    wh_ref: (F2, CO)       bf16 AdaptiveAvgPool1d(1) + Linear head, fused, CO = pad128(C2)
    bh_ref: (1, CO)        f32 head bias
    out_ref: (TB, CO)      f32
    """
    # layer 1: Conv1d(1 -> C1, k1) + BN(eval) + ReLU  -> one bf16 MXU matmul + add + max
    h1 = jnp.dot(x_ref[...], w1_ref[...], preferred_element_type=jnp.float32)
    h1 = jnp.maximum(h1 + t1_ref[...], 0.0)

    # layer 2: Conv1d(C1 -> C2, k2) + BN(eval) + ReLU
    h2 = jnp.dot(h1.astype(jnp.bfloat16), w2_ref[...],
                 preferred_element_type=jnp.float32)
    h2 = jnp.maximum(h2 + t2_ref[...], 0.0)

    # AdaptiveAvgPool1d(1) + squeeze + Linear head, fused into one matmul
    out_ref[...] = (jnp.dot(h2.astype(jnp.bfloat16), wh_ref[...],
                            preferred_element_type=jnp.float32)
                    + bh_ref[...])


def ssl_forward(x, kparams, *, tb=None):
    """x: (B, L) float32 -> (B, C_last) float32."""
    (w1b, t1, w2b, t2, wh, bh, c_out) = kparams
    B, L = x.shape
    co_pad = wh.shape[1]                      # lane-padded head width (128)

    if tb is None:
        if B < 16:
            tb = B                            # single tile; launch/DMA-latency bound
        else:
            # >= 2 grid steps (v7x dual-TC), multiple of 16 (bf16 sublane pack),
            # capped at 256 to match v6e/v7x's 256-wide MXU.
            tb = min(256, _round_up(pl.cdiv(B, 2), 16))
    grid = (pl.cdiv(B, tb),)

    x_bf16 = x.astype(jnp.bfloat16)

    def weight_spec(a, pipeline_mode):
        # whole array, constant block index -> stays resident across grid steps
        nd = a.ndim
        if pipeline_mode is None:
            return pl.BlockSpec(a.shape, lambda i, _nd=nd: (0,) * _nd)
        return pl.BlockSpec(a.shape, lambda i, _nd=nd: (0,) * _nd,
                            pipeline_mode=pipeline_mode)

    def run(weight_pipeline_mode):
        in_specs = [pl.BlockSpec((tb, L), lambda i: (i, 0))] + [
            weight_spec(a, weight_pipeline_mode)
            for a in (w1b, t1, w2b, t2, wh, bh)
        ]
        return pl.pallas_call(
            ssl_forward_kernel,
            out_shape=jax.ShapeDtypeStruct((B, co_pad), jnp.float32),
            grid=grid,
            in_specs=in_specs,
            out_specs=pl.BlockSpec((tb, co_pad), lambda i: (i, 0)),
            compiler_params=pltpu.CompilerParams(
                dimension_semantics=("parallel",),       # megacore-shardable on v7x
                vmem_limit_bytes=32 * 1024 * 1024,       # safe on v5e/v6e/v7x
            ),
        )(x_bf16, w1b, t1, w2b, t2, wh, bh)

    # Constant-index weight blocks never re-fetch, so single-buffering them halves
    # resident weight VMEM at zero perf cost; fall back to default double-buffering
    # if this JAX build rejects Buffered(1).
    buffered1 = pl.Buffered(1) if hasattr(pl, "Buffered") else None
    if buffered1 is not None:
        try:
            out = run(buffered1)
        except Exception:
            out = run(None)
    else:
        out = run(None)

    return out[:, :c_out]


# ----------------------------- parameter setup -------------------------------

def init_params(key, in_dim, chs, ks):
    """Deterministic synthetic parameters in PyTorch layout."""
    params = {"convs": []}
    in_ch = 1
    for c, k in zip(chs, ks):
        key, kw, kb, kg, kbe, km, kv = jax.random.split(key, 7)
        w = 0.1 * jax.random.normal(kw, (c, in_ch, k), jnp.float32)   # (Cout, Cin, K)
        b = 0.1 * jax.random.normal(kb, (c,), jnp.float32)
        gamma = jax.random.uniform(kg, (c,), jnp.float32, 0.5, 1.5)
        beta = 0.1 * jax.random.normal(kbe, (c,), jnp.float32)
        rmean = 0.1 * jax.random.normal(km, (c,), jnp.float32)
        rvar = jax.random.uniform(kv, (c,), jnp.float32, 0.5, 1.5)
        params["convs"].append((w, b, gamma, beta, rmean, rvar))
        in_ch = c
    key, kwp, kbp = jax.random.split(key, 3)
    params["wp"] = 0.1 * jax.random.normal(kwp, (chs[-1], chs[-1]), jnp.float32)  # (out, in)
    params["bp"] = 0.1 * jax.random.normal(kbp, (chs[-1],), jnp.float32)
    return params


def to_kernel_layout(params, in_dim):
    """PyTorch layout -> fused banded-matmul kernel layout (eval-mode BN folded).

    Each conv becomes a banded (Toeplitz) matrix (BN scale folded into its output
    columns, lane-padded to a multiple of 128); conv bias + BN shift become one
    per-(position, channel) shift row; avgpool(1) + Linear head fold into one matrix
    padded to 128 output lanes.  Big matrices are bf16, shifts/bias stay f32.
    """
    eps = 1e-5
    (w1, b1, g1, be1, m1, v1) = [np.asarray(a, np.float32) for a in params["convs"][0]]
    (w2, b2, g2, be2, m2, v2) = [np.asarray(a, np.float32) for a in params["convs"][1]]
    wp = np.asarray(params["wp"], np.float32)           # (C2, C2)  (out, in)
    bp = np.asarray(params["bp"], np.float32)           # (C2,)

    C1, _, K1 = w1.shape
    C2, _, K2 = w2.shape
    L = in_dim
    L1 = L - K1 + 1
    L2 = L1 - K2 + 1
    if L2 < 1:
        raise ValueError(
            f"in_dim={in_dim} too small for kernel sizes ({K1}, {K2}); need >= {K1 + K2 - 1}")

    F1 = _round_up(L1 * C1, 128)     # lane-padded flattened dims
    F2 = _round_up(L2 * C2, 128)
    CO = _round_up(C2, 128)

    # Size guard: the fully resident banded form is O(L^2); keep it inside a safe
    # VMEM budget (v7x has 64 MiB physical / 32 MiB scoped default).
    resident_bytes = 2 * (L * F1 + F1 * F2 + F2 * CO) + 4 * (F1 + F2 + CO)
    if resident_bytes > 24 * 1024 * 1024:
        # TODO(synk): grid-tile the L2*C2 output dim (accumulator + "arbitrary" axis)
        #             or switch to im2col for large in_dim instead of failing.
        raise ValueError(
            f"banded weights ({resident_bytes / 2**20:.1f} MiB) exceed the fused-resident "
            "VMEM budget; use a tiled/im2col variant for this in_dim")

    # eval-mode BN folded with the conv bias:  BN(conv + b) = s*conv + (s*(b - m) + beta)
    s1 = g1 / np.sqrt(v1 + eps); t1v = s1 * (b1 - m1) + be1
    s2 = g2 / np.sqrt(v2 + eps); t2v = s2 * (b2 - m2) + be2

    # conv1 banded matrix (BN scale folded): (B, L) @ (L, F1)
    # w1b[l+k, l*C1+c] = w1[c, 0, k] * s1[c]
    w1b = np.zeros((L, F1), np.float32)
    w1s = w1[:, 0, :] * s1[:, None]                       # (C1, K1)
    for k in range(K1):
        for l in range(L1):
            w1b[l + k, l * C1:(l + 1) * C1] = w1s[:, k]

    # conv2 banded matrix (BN scale folded): (B, F1) @ (F1, F2)
    # w2b[(l+k)*C1 + c1, l*C2 + c2] = w2[c2, c1, k] * s2[c2]
    w2b = np.zeros((F1, F2), np.float32)
    w2s = w2 * s2[:, None, None]                          # (C2, C1, K2)
    for k in range(K2):
        for l in range(L2):
            w2b[(l + k) * C1:(l + k + 1) * C1, l * C2:(l + 1) * C2] = w2s[:, :, k].T

    # per-(position, channel) fused shift rows (scale already inside the matrices)
    t1r = np.zeros((1, F1), np.float32); t1r[0, :L1 * C1] = np.tile(t1v, L1)
    t2r = np.zeros((1, F2), np.float32); t2r[0, :L2 * C2] = np.tile(t2v, L2)

    # AdaptiveAvgPool1d(1) + Linear head fused and lane-padded:
    # wh[l*C2+c2, j] = wp[j, c2] / L2
    wh = np.zeros((F2, CO), np.float32)
    wh[:L2 * C2, :C2] = np.tile(wp.T / np.float32(L2), (L2, 1))
    bh = np.zeros((1, CO), np.float32); bh[0, :C2] = bp

    return (jnp.asarray(w1b, jnp.bfloat16),
            jnp.asarray(t1r, jnp.float32),
            jnp.asarray(w2b, jnp.bfloat16),
            jnp.asarray(t2r, jnp.float32),
            jnp.asarray(wh, jnp.bfloat16),
            jnp.asarray(bh, jnp.float32),
            int(C2))


# ----------------------------- pure-JAX reference -----------------------------

def ref_forward(x, params):
    """Pure-JAX f32 reference matching the PyTorch forward (eval-mode BN)."""
    eps = 1e-5
    h = x[:, None, :]                                          # (B, 1, L)  NCL
    for (w, b, gamma, beta, rmean, rvar) in params["convs"]:
        h = jax.lax.conv_general_dilated(
            h, w, window_strides=(1,), padding="VALID",
            dimension_numbers=("NCH", "OIH", "NCH"),
            precision=jax.lax.Precision.HIGHEST)
        h = h + b[None, :, None]
        scale = gamma / jnp.sqrt(rvar + eps)
        h = scale[None, :, None] * (h - rmean[None, :, None]) + beta[None, :, None]
        h = jnp.maximum(h, 0.0)
    z = jnp.mean(h, axis=2)                                    # AdaptiveAvgPool1d(1)+squeeze
    return jnp.dot(z, params["wp"].T,
                   precision=jax.lax.Precision.HIGHEST) + params["bp"]


if __name__ == "__main__":
    # SSLModel(in_dim=64, chs=(8, 16), ks=(5, 3), out_dim=1)
    B, in_dim = 4, 64
    chs, ks = (8, 16), (5, 3)

    key = jax.random.PRNGKey(0)
    key, kx = jax.random.split(key)
    x = jax.random.normal(kx, (B, in_dim), jnp.float32)

    params = init_params(key, in_dim, chs, ks)
    kparams = to_kernel_layout(params, in_dim)

    out = jax.block_until_ready(ssl_forward(x, kparams))
    ref = jax.block_until_ready(ref_forward(x, params))

    assert out.shape == (B, chs[-1]), out.shape
    # bf16 matmul operands with f32 accumulation -> slightly looser tolerance than f32.
    assert jnp.allclose(out, ref, rtol=2e-2, atol=2e-2), (
        float(jnp.max(jnp.abs(out - ref))), out, ref)
    print("KERNEL_OK")
</pallas_src>

<mosaic_0001>
module attributes {stable_mosaic.version = 11 : i64} {
  func.func @ssl_forward_kernel(%arg0: i32, %arg1: memref<4x64xbf16, #tpu.memory_space<vmem>>, %arg2: memref<64x512xbf16, #tpu.memory_space<vmem>>, %arg3: memref<1x512xf32, #tpu.memory_space<vmem>>, %arg4: memref<512x1024xbf16, #tpu.memory_space<vmem>>, %arg5: memref<1x1024xf32, #tpu.memory_space<vmem>>, %arg6: memref<1024x128xbf16, #tpu.memory_space<vmem>>, %arg7: memref<1x128xf32, #tpu.memory_space<vmem>>, %arg8: memref<4x128xf32, #tpu.memory_space<vmem>>) attributes {dimension_semantics = [#tpu.dimension_semantics<parallel>], iteration_bounds = array<i64: 1>, scalar_prefetch = 0 : i64, scratch_operands = 0 : i64, tpu.core_type = #tpu.core_type<tc>, window_params = [{transform_indices = @transform_0, window_bounds = array<i64: 4, 64>}, {pipeline_mode = #tpu.pipeline_mode<synchronous>, transform_indices = @transform_1, window_bounds = array<i64: 64, 512>}, {pipeline_mode = #tpu.pipeline_mode<synchronous>, transform_indices = @transform_2, window_bounds = array<i64: 1, 512>}, {pipeline_mode = #tpu.pipeline_mode<synchronous>, transform_indices = @transform_3, window_bounds = array<i64: 512, 1024>}, {pipeline_mode = #tpu.pipeline_mode<synchronous>, transform_indices = @transform_4, window_bounds = array<i64: 1, 1024>}, {pipeline_mode = #tpu.pipeline_mode<synchronous>, transform_indices = @transform_5, window_bounds = array<i64: 1024, 128>}, {pipeline_mode = #tpu.pipeline_mode<synchronous>, transform_indices = @transform_6, window_bounds = array<i64: 1, 128>}, {transform_indices = @transform_7, window_bounds = array<i64: 4, 128>}]} {
    %c0 = arith.constant 0 : index
    %c0_0 = arith.constant 0 : index
    %0 = vector.load %arg1[%c0, %c0_0] : memref<4x64xbf16, #tpu.memory_space<vmem>>, vector<4x64xbf16>
    %c0_1 = arith.constant 0 : index
    %c0_2 = arith.constant 0 : index
    %1 = vector.load %arg2[%c0_1, %c0_2] : memref<64x512xbf16, #tpu.memory_space<vmem>>, vector<64x512xbf16>
    %cst = arith.constant dense<0.000000e+00> : vector<4x512xf32>
    %2 = tpu.matmul %0, %1, %cst {dimension_numbers = #tpu.dot_dimension_numbers<[1], [0], [0], [1], [0, 0, 1, 1], [], []>} : vector<4x64xbf16>, vector<64x512xbf16>, vector<4x512xf32> -> vector<4x512xf32>
    %c0_3 = arith.constant 0 : index
    %c0_4 = arith.constant 0 : index
    %3 = vector.load %arg3[%c0_3, %c0_4] : memref<1x512xf32, #tpu.memory_space<vmem>>, vector<1x512xf32>
    %4 = vector.broadcast %3 : vector<1x512xf32> to vector<4x512xf32>
    %5 = arith.addf %2, %4 : vector<4x512xf32>
    %cst_5 = arith.constant 0.000000e+00 : f32
    %6 = vector.broadcast %cst_5 : f32 to vector<4x512xf32>
    %7 = arith.maximumf %5, %6 : vector<4x512xf32>
    %8 = arith.truncf %7 : vector<4x512xf32> to vector<4x512xbf16>
    %c0_6 = arith.constant 0 : index
    %c0_7 = arith.constant 0 : index
    %9 = vector.load %arg4[%c0_6, %c0_7] : memref<512x1024xbf16, #tpu.memory_space<vmem>>, vector<512x1024xbf16>
    %cst_8 = arith.constant dense<0.000000e+00> : vector<4x1024xf32>
    %10 = tpu.matmul %8, %9, %cst_8 {dimension_numbers = #tpu.dot_dimension_numbers<[1], [0], [0], [1], [0, 0, 1, 1], [], []>} : vector<4x512xbf16>, vector<512x1024xbf16>, vector<4x1024xf32> -> vector<4x1024xf32>
    %c0_9 = arith.constant 0 : index
    %c0_10 = arith.constant 0 : index
    %11 = vector.load %arg5[%c0_9, %c0_10] : memref<1x1024xf32, #tpu.memory_space<vmem>>, vector<1x1024xf32>
    %12 = vector.broadcast %11 : vector<1x1024xf32> to vector<4x1024xf32>
    %13 = arith.addf %10, %12 : vector<4x1024xf32>
    %cst_11 = arith.constant 0.000000e+00 : f32
    %14 = vector.broadcast %cst_11 : f32 to vector<4x1024xf32>
    %15 = arith.maximumf %13, %14 : vector<4x1024xf32>
    %16 = arith.truncf %15 : vector<4x1024xf32> to vector<4x1024xbf16>
    %c0_12 = arith.constant 0 : index
    %c0_13 = arith.constant 0 : index
    %17 = vector.load %arg6[%c0_12, %c0_13] : memref<1024x128xbf16, #tpu.memory_space<vmem>>, vector<1024x128xbf16>
    %cst_14 = arith.constant dense<0.000000e+00> : vector<4x128xf32>
    %18 = tpu.matmul %16, %17, %cst_14 {dimension_numbers = #tpu.dot_dimension_numbers<[1], [0], [0], [1], [0, 0, 1, 1], [], []>} : vector<4x1024xbf16>, vector<1024x128xbf16>, vector<4x128xf32> -> vector<4x128xf32>
    %c0_15 = arith.constant 0 : index
    %c0_16 = arith.constant 0 : index
    %19 = vector.load %arg7[%c0_15, %c0_16] : memref<1x128xf32, #tpu.memory_space<vmem>>, vector<1x128xf32>
    %20 = vector.broadcast %19 : vector<1x128xf32> to vector<4x128xf32>
    %21 = arith.addf %18, %20 : vector<4x128xf32>
    %c0_17 = arith.constant 0 : index
    %c0_18 = arith.constant 0 : index
    %22 = vector.load %arg8[%c0_17, %c0_18] : memref<4x128xf32, #tpu.memory_space<vmem>>, vector<4x128xf32>
    tpu.vector_store %arg8[%c0_17, %c0_18], %21 {strides = array<i32>} : memref<4x128xf32, #tpu.memory_space<vmem>>, vector<4x128xf32>,
    return
  }
  func.func @transform_0(%arg0: i32) -> (i32, i32) {
    %c0_i32 = arith.constant 0 : i32
    %c0_i32_0 = arith.constant 0 : i32
    return %arg0, %c0_i32 : i32, i32
  }
  func.func @transform_1(%arg0: i32) -> (i32, i32) {
    %c0_i32 = arith.constant 0 : i32
    %c0_i32_0 = arith.constant 0 : i32
    %c0_i32_1 = arith.constant 0 : i32
    return %c0_i32, %c0_i32_0 : i32, i32
  }
  func.func @transform_2(%arg0: i32) -> (i32, i32) {
    %c0_i32 = arith.constant 0 : i32
    %c0_i32_0 = arith.constant 0 : i32
    %c0_i32_1 = arith.constant 0 : i32
    return %c0_i32, %c0_i32_0 : i32, i32
  }
  func.func @transform_3(%arg0: i32) -> (i32, i32) {
    %c0_i32 = arith.constant 0 : i32
    %c0_i32_0 = arith.constant 0 : i32
    %c0_i32_1 = arith.constant 0 : i32
    return %c0_i32, %c0_i32_0 : i32, i32
  }
  func.func @transform_4(%arg0: i32) -> (i32, i32) {
    %c0_i32 = arith.constant 0 : i32
    %c0_i32_0 = arith.constant 0 : i32
    %c0_i32_1 = arith.constant 0 : i32
    return %c0_i32, %c0_i32_0 : i32, i32
  }
  func.func @transform_5(%arg0: i32) -> (i32, i32) {
    %c0_i32 = arith.constant 0 : i32
    %c0_i32_0 = arith.constant 0 : i32
    %c0_i32_1 = arith.constant 0 : i32
    return %c0_i32, %c0_i32_0 : i32, i32
  }
  func.func @transform_6(%arg0: i32) -> (i32, i32) {
    %c0_i32 = arith.constant 0 : i32
    %c0_i32_0 = arith.constant 0 : i32
    %c0_i32_1 = arith.constant 0 : i32
    return %c0_i32, %c0_i32_0 : i32, i32
  }
  func.func @transform_7(%arg0: i32) -> (i32, i32) {
    %c0_i32 = arith.constant 0 : i32
    %c0_i32_0 = arith.constant 0 : i32
    return %arg0, %c0_i32 : i32, i32
  }
}

module attributes {stable_mosaic.version = 11 : i64} {
  func.func @ssl_forward_kernel(%arg0: i32, %arg1: memref<4x64xbf16, #tpu.memory_space<vmem>>, %arg2: memref<64x512xbf16, #tpu.memory_space<vmem>>, %arg3: memref<1x512xf32, #tpu.memory_space<vmem>>, %arg4: memref<512x1024xbf16, #tpu.memory_space<vmem>>, %arg5: memref<1x1024xf32, #tpu.memory_space<vmem>>, %arg6: memref<1024x128xbf16, #tpu.memory_space<vmem>>, %arg7: memref<1x128xf32, #tpu.memory_space<vmem>>, %arg8: memref<4x128xf32, #tpu.memory_space<vmem>>) attributes {dimension_semantics = [#tpu.dimension_semantics<parallel>], iteration_bounds = array<i64: 1>, scalar_prefetch = 0 : i64, scratch_operands = 0 : i64, tpu.core_type = #tpu.core_type<tc>, window_params = [{transform_indices = @transform_0, window_bounds = array<i64: 4, 64>}, {pipeline_mode = #tpu.pipeline_mode<synchronous>, transform_indices = @transform_1, window_bounds = array<i64: 64, 512>}, {pipeline_mode = #tpu.pipeline_mode<synchronous>, transform_indices = @transform_2, window_bounds = array<i64: 1, 512>}, {pipeline_mode = #tpu.pipeline_mode<synchronous>, transform_indices = @transform_3, window_bounds = array<i64: 512, 1024>}, {pipeline_mode = #tpu.pipeline_mode<synchronous>, transform_indices = @transform_4, window_bounds = array<i64: 1, 1024>}, {pipeline_mode = #tpu.pipeline_mode<synchronous>, transform_indices = @transform_5, window_bounds = array<i64: 1024, 128>}, {pipeline_mode = #tpu.pipeline_mode<synchronous>, transform_indices = @transform_6, window_bounds = array<i64: 1, 128>}, {transform_indices = @transform_7, window_bounds = array<i64: 4, 128>}]} {
    %c0 = arith.constant 0 : index
    %c0_0 = arith.constant 0 : index
    %0 = vector.load %arg1[%c0, %c0_0] : memref<4x64xbf16, #tpu.memory_space<vmem>>, vector<4x64xbf16>
    %c0_1 = arith.constant 0 : index
    %c0_2 = arith.constant 0 : index
    %1 = vector.load %arg2[%c0_1, %c0_2] : memref<64x512xbf16, #tpu.memory_space<vmem>>, vector<64x512xbf16>
    %cst = arith.constant dense<0.000000e+00> : vector<4x512xf32>
    %2 = tpu.matmul %0, %1, %cst {dimension_numbers = #tpu.dot_dimension_numbers<[1], [0], [0], [1], [0, 0, 1, 1], [], []>} : vector<4x64xbf16>, vector<64x512xbf16>, vector<4x512xf32> -> vector<4x512xf32>
    %c0_3 = arith.constant 0 : index
    %c0_4 = arith.constant 0 : index
    %3 = vector.load %arg3[%c0_3, %c0_4] : memref<1x512xf32, #tpu.memory_space<vmem>>, vector<1x512xf32>
    %4 = vector.broadcast %3 : vector<1x512xf32> to vector<4x512xf32>
    %5 = arith.addf %2, %4 : vector<4x512xf32>
    %cst_5 = arith.constant 0.000000e+00 : f32
    %6 = vector.broadcast %cst_5 : f32 to vector<4x512xf32>
    %7 = arith.maximumf %5, %6 : vector<4x512xf32>
    %8 = arith.truncf %7 : vector<4x512xf32> to vector<4x512xbf16>
    %c0_6 = arith.constant 0 : index
    %c0_7 = arith.constant 0 : index
    %9 = vector.load %arg4[%c0_6, %c0_7] : memref<512x1024xbf16, #tpu.memory_space<vmem>>, vector<512x1024xbf16>
    %cst_8 = arith.constant dense<0.000000e+00> : vector<4x1024xf32>
    %10 = tpu.matmul %8, %9, %cst_8 {dimension_numbers = #tpu.dot_dimension_numbers<[1], [0], [0], [1], [0, 0, 1, 1], [], []>} : vector<4x512xbf16>, vector<512x1024xbf16>, vector<4x1024xf32> -> vector<4x1024xf32>
    %c0_9 = arith.constant 0 : index
    %c0_10 = arith.constant 0 : index
    %11 = vector.load %arg5[%c0_9, %c0_10] : memref<1x1024xf32, #tpu.memory_space<vmem>>, vector<1x1024xf32>
    %12 = vector.broadcast %11 : vector<1x1024xf32> to vector<4x1024xf32>
    %13 = arith.addf %10, %12 : vector<4x1024xf32>
    %cst_11 = arith.constant 0.000000e+00 : f32
    %14 = vector.broadcast %cst_11 : f32 to vector<4x1024xf32>
    %15 = arith.maximumf %13, %14 : vector<4x1024xf32>
    %16 = arith.truncf %15 : vector<4x1024xf32> to vector<4x1024xbf16>
    %c0_12 = arith.constant 0 : index
    %c0_13 = arith.constant 0 : index
    %17 = vector.load %arg6[%c0_12, %c0_13] : memref<1024x128xbf16, #tpu.memory_space<vmem>>, vector<1024x128xbf16>
    %cst_14 = arith.constant dense<0.000000e+00> : vector<4x128xf32>
    %18 = tpu.matmul %16, %17, %cst_14 {dimension_numbers = #tpu.dot_dimension_numbers<[1], [0], [0], [1], [0, 0, 1, 1], [], []>} : vector<4x1024xbf16>, vector<1024x128xbf16>, vector<4x128xf32> -> vector<4x128xf32>
    %c0_15 = arith.constant 0 : index
    %c0_16 = arith.constant 0 : index
    %19 = vector.load %arg7[%c0_15, %c0_16] : memref<1x128xf32, #tpu.memory_space<vmem>>, vector<1x128xf32>
    %20 = vector.broadcast %19 : vector<1x128xf32> to vector<4x128xf32>
    %21 = arith.addf %18, %20 : vector<4x128xf32>
    %c0_17 = arith.constant 0 : index
    %c0_18 = arith.constant 0 : index
    %22 = vector.load %arg8[%c0_17, %c0_18] : memref<4x128xf32, #tpu.memory_space<vmem>>, vector<4x128xf32>
    tpu.vector_store %arg8[%c0_17, %c0_18], %21 {strides = array<i32>} : memref<4x128xf32, #tpu.memory_space<vmem>>, vector<4x128xf32>,
    return
  }
  func.func @transform_0(%arg0: i32) -> (i32, i32) {
    %c0_i32 = arith.constant 0 : i32
    %c0_i32_0 = arith.constant 0 : i32
    return %arg0, %c0_i32 : i32, i32
  }
  func.func @transform_1(%arg0: i32) -> (i32, i32) {
    %c0_i32 = arith.constant 0 : i32
    %c0_i32_0 = arith.constant 0 : i32
    %c0_i32_1 = arith.constant 0 : i32
    return %c0_i32, %c0_i32_0 : i32, i32
  }
  func.func @transform_2(%arg0: i32) -> (i32, i32) {
    %c0_i32 = arith.constant 0 : i32
    %c0_i32_0 = arith.constant 0 : i32
    %c0_i32_1 = arith.constant 0 : i32
    return %c0_i32, %c0_i32_0 : i32, i32
  }
  func.func @transform_3(%arg0: i32) -> (i32, i32) {
    %c0_i32 = arith.constant 0 : i32
    %c0_i32_0 = arith.constant 0 : i32
    %c0_i32_1 = arith.constant 0 : i32
    return %c0_i32, %c0_i32_0 : i32, i32
  }
  func.func @transform_4(%arg0: i32) -> (i32, i32) {
    %c0_i32 = arith.constant 0 : i32
    %c0_i32_0 = arith.constant 0 : i32
    %c0_i32_1 = arith.constant 0 : i32
    return %c0_i32, %c0_i32_0 : i32, i32
  }
  func.func @transform_5(%arg0: i32) -> (i32, i32) {
    %c0_i32 = arith.constant 0 : i32
    %c0_i32_0 = arith.constant 0 : i32
    %c0_i32_1 = arith.constant 0 : i32
    return %c0_i32, %c0_i32_0 : i32, i32
  }
  func.func @transform_6(%arg0: i32) -> (i32, i32) {
    %c0_i32 = arith.constant 0 : i32
    %c0_i32_0 = arith.constant 0 : i32
    %c0_i32_1 = arith.constant 0 : i32
    return %c0_i32, %c0_i32_0 : i32, i32
  }
  func.func @transform_7(%arg0: i32) -> (i32, i32) {
    %c0_i32 = arith.constant 0 : i32
    %c0_i32_0 = arith.constant 0 : i32
    return %arg0, %c0_i32 : i32, i32
  }
}

</mosaic_0001>

<llo_original>
// kernel: tpu_custom_call.1
$region0: #{tpu_custom_call.1}
  #allocation0 [shape = 'u32[]', space=smem, size = 0x4, offset = 0x4, fixed_abs, tag = 'smem constant byte address 0x4 - core index']
  #allocation1 [shape = 'u32[72,128]{1,0:T(1,128)}', space=vmem, size = 0x9000, scoped, tag = 'internal scratch']
  %s0 = inlined_call_operand.hbm [shape: bf16[4,64], index: 0, kind: input, shape index: {}]
  %s1 = inlined_call_operand.hbm [shape: bf16[64,512], index: 1, kind: input, shape index: {}]
  %s2 = inlined_call_operand.hbm [shape: f32[1,512], index: 2, kind: input, shape index: {}]
  %s3 = inlined_call_operand.hbm [shape: bf16[512,1024], index: 3, kind: input, shape index: {}]
  %s4 = inlined_call_operand.hbm [shape: f32[1,1024], index: 4, kind: input, shape index: {}]
  %s5 = inlined_call_operand.hbm [shape: bf16[1024,128], index: 5, kind: input, shape index: {}]
  %s6 = inlined_call_operand.vmem [shape: f32[1,128], index: 6, kind: input, shape index: {}]
  %s7 = inlined_call_operand.hbm [shape: f32[4,128], index: 7, kind: output, shape index: {}]
  %s8 = sld [smem:[#allocation0]]
  $region62: #{tpu_custom_call.1} parent=0
    _
  %s10 = ssub.s32 1, %s8
  %s11 = scalar_select 0, %s10, %s8
  $region1: #{tpu_custom_call.1} parent=0
    #allocation2 [shape = 'u8[1024]{0}', space=vmem, size = 0x400, scoped, tag = 'input window, operand 0, single buffered']
    #allocation3 [shape = 's32[1]{0}', space=sflag, size = 0x4, scoped, tag = 'scoped memory for tpu_custom_call.1']
    #allocation4 [shape = 's32[1]{0}', space=sflag, size = 0x4, scoped, tag = 'scoped memory for tpu_custom_call.1']
    #allocation5 [shape = 'u8[65536]{0}', space=vmem, size = 0x10000, scoped, tag = 'input window, operand 1, single buffered']
    #allocation6 [shape = 's32[1]{0}', space=sflag, size = 0x4, scoped, tag = 'scoped memory for tpu_custom_call.1']
    #allocation7 [shape = 'u8[2048]{0}', space=vmem, size = 0x800, scoped, tag = 'input window, operand 2, single buffered']
    #allocation8 [shape = 'u8[1048576]{0}', space=vmem, size = 0x100000, scoped, tag = 'input window, operand 3, single buffered']
    #allocation9 [shape = 's32[1]{0}', space=sflag, size = 0x4, scoped, tag = 'scoped memory for tpu_custom_call.1']
    #allocation10 [shape = 'u8[4096]{0}', space=vmem, size = 0x1000, scoped, tag = 'input window, operand 4, single buffered']
    #allocation11 [shape = 'u8[262144]{0}', space=vmem, size = 0x40000, scoped, tag = 'input window, operand 5, single buffered']
    #allocation12 [shape = 's32[1]{0}', space=sflag, size = 0x4, scoped, tag = 'scoped memory for tpu_custom_call.1']
    #allocation13 [shape = 'u8[2048]{0}', space=vmem, size = 0x800, scoped, tag = 'output window, operand 0, single buffered']
    %12 = vsyncpa [#allocation3], 0
    %13 = vsyncpa [#allocation6], 0
    %14 = vsyncpa [#allocation9], 0
    %15 = vsyncpa [#allocation12], 0
    %16 = vsyncpa [#allocation4], 0
    // Predicated region
    $region2: #{tpu_custom_call.1} parent=1 // pred_check
      _
    $region3: #{tpu_custom_call.1} parent=1 // pred_check_branch
      %18 = sbr.rel (0) target = $region5
    $region4: #{tpu_custom_call.1} parent=1 // pred_region
      %20 = vsyncadd [#allocation3], 0
      %s22 = sshll.u32 %s0, 4
      %s23 = int_to_ptr.hbm [resolvable:$true] %s22
      %s24 = sshll.u32 [#allocation2], 4
      %s25 = int_to_ptr.vmem [resolvable:$true] %s24
      %27 = dma.hbm_to_vmem [thread:$0]  %s23, 32, %s25, [#allocation3]
    $region5: #{tpu_custom_call.1} parent=1 // pred_fallthru
      _
    // Predicated region
    $region6: #{tpu_custom_call.1} parent=1 // pred_check
      _
    $region7: #{tpu_custom_call.1} parent=1 // pred_check_branch
      %29 = sbr.rel (0) target = $region9
    $region8: #{tpu_custom_call.1} parent=1 // pred_region
      %31 = vsyncadd [#allocation6], 0
      %s32 = sshll.u32 %s1, 4
      %s33 = int_to_ptr.hbm [resolvable:$true] %s32
      %s34 = sshll.u32 [#allocation5], 4
      %s35 = int_to_ptr.vmem [resolvable:$true] %s34
      %40 = dma.hbm_to_vmem [thread:$0]  %s33, 2048, %s35, [#allocation6], 256, 256, 16
    $region9: #{tpu_custom_call.1} parent=1 // pred_fallthru
      _
    // Predicated region
    $region10: #{tpu_custom_call.1} parent=1 // pred_check
      _
    $region11: #{tpu_custom_call.1} parent=1 // pred_check_branch
      %42 = sbr.rel (0) target = $region13
    $region12: #{tpu_custom_call.1} parent=1 // pred_region
      %44 = vsyncadd [#allocation6], 0
      %s46 = sshll.u32 %s2, 4
      %s47 = int_to_ptr.hbm [resolvable:$true] %s46
      %s48 = sshll.u32 [#allocation7], 4
      %s49 = int_to_ptr.vmem [resolvable:$true] %s48
      %51 = dma.hbm_to_vmem [thread:$0]  %s47, 64, %s49, [#allocation6]
    $region13: #{tpu_custom_call.1} parent=1 // pred_fallthru
      _
    // Predicated region
    $region14: #{tpu_custom_call.1} parent=1 // pred_check
      _
    $region15: #{tpu_custom_call.1} parent=1 // pred_check_branch
      %53 = sbr.rel (0) target = $region17
    $region16: #{tpu_custom_call.1} parent=1 // pred_region
      %55 = vsyncadd [#allocation9], 0
      %s56 = sshll.u32 %s3, 4
      %s57 = int_to_ptr.hbm [resolvable:$true] %s56
      %s58 = sshll.u32 [#allocation8], 4
      %s59 = int_to_ptr.vmem [resolvable:$true] %s58
      %64 = dma.hbm_to_vmem [thread:$0]  %s57, 32768, %s59, [#allocation9], 512, 512, 32
    $region17: #{tpu_custom_call.1} parent=1 // pred_fallthru
      _
    // Predicated region
    $region18: #{tpu_custom_call.1} parent=1 // pred_check
      _
    $region19: #{tpu_custom_call.1} parent=1 // pred_check_branch
      %66 = sbr.rel (0) target = $region21
    $region20: #{tpu_custom_call.1} parent=1 // pred_region
      %68 = vsyncadd [#allocation9], 0
      %s70 = sshll.u32 %s4, 4
      %s71 = int_to_ptr.hbm [resolvable:$true] %s70
      %s72 = sshll.u32 [#allocation10], 4
      %s73 = int_to_ptr.vmem [resolvable:$true] %s72
      %75 = dma.hbm_to_vmem [thread:$0]  %s71, 128, %s73, [#allocation9]
    $region21: #{tpu_custom_call.1} parent=1 // pred_fallthru
      _
    // Predicated region
    $region22: #{tpu_custom_call.1} parent=1 // pred_check
      _
    $region23: #{tpu_custom_call.1} parent=1 // pred_check_branch
      %77 = sbr.rel (0) target = $region25
    $region24: #{tpu_custom_call.1} parent=1 // pred_region
      %79 = vsyncadd [#allocation12], 0
      %s80 = sshll.u32 %s5, 4
      %s81 = int_to_ptr.hbm [resolvable:$true] %s80
      %s82 = sshll.u32 [#allocation11], 4
      %s83 = int_to_ptr.vmem [resolvable:$true] %s82
      %88 = dma.hbm_to_vmem [thread:$0]  %s81, 8192, %s83, [#allocation12], 64, 64, 4
    $region25: #{tpu_custom_call.1} parent=1 // pred_fallthru
      _
    // Predicated region
    $region26: #{tpu_custom_call.1} parent=1 // pred_check
      _
    $region27: #{tpu_custom_call.1} parent=1 // pred_check_branch
      %90 = sbr.rel (0) target = $region29
    $region28: #{tpu_custom_call.1} parent=1 // pred_region
      _
    $region29: #{tpu_custom_call.1} parent=1 // pred_fallthru
      _
    // Predicated region
    $region30: #{tpu_custom_call.1} parent=1 // pred_check
      _
    $region31: #{tpu_custom_call.1} parent=1 // pred_check_branch
      %92 = sbr.rel (0) target = $region33
    $region32: #{tpu_custom_call.1} parent=1 // pred_region
      %94 = dma.done [#allocation3], 32
    $region33: #{tpu_custom_call.1} parent=1 // pred_fallthru
      _
    // Predicated region
    $region34: #{tpu_custom_call.1} parent=1 // pred_check
      _
    $region35: #{tpu_custom_call.1} parent=1 // pred_check_branch
      %96 = sbr.rel (0) target = $region37
    $region36: #{tpu_custom_call.1} parent=1 // pred_region
      %98 = dma.done [#allocation6], 2048
    $region37: #{tpu_custom_call.1} parent=1 // pred_fallthru
      _
    // Predicated region
    $region38: #{tpu_custom_call.1} parent=1 // pred_check
      _
    $region39: #{tpu_custom_call.1} parent=1 // pred_check_branch
      %100 = sbr.rel (0) target = $region41
    $region40: #{tpu_custom_call.1} parent=1 // pred_region
      %102 = dma.done [#allocation6], 64
    $region41: #{tpu_custom_call.1} parent=1 // pred_fallthru
      _
    // Predicated region
    $region42: #{tpu_custom_call.1} parent=1 // pred_check
      _
    $region43: #{tpu_custom_call.1} parent=1 // pred_check_branch
      %104 = sbr.rel (0) target = $region45
    $region44: #{tpu_custom_call.1} parent=1 // pred_region
      %106 = dma.done [#allocation9], 32768
    $region45: #{tpu_custom_call.1} parent=1 // pred_fallthru
      _
    // Predicated region
    $region46: #{tpu_custom_call.1} parent=1 // pred_check
      _
    $region47: #{tpu_custom_call.1} parent=1 // pred_check_branch
      %108 = sbr.rel (0) target = $region49
    $region48: #{tpu_custom_call.1} parent=1 // pred_region
      %110 = dma.done [#allocation9], 128
    $region49: #{tpu_custom_call.1} parent=1 // pred_fallthru
      _
    // Predicated region
    $region50: #{tpu_custom_call.1} parent=1 // pred_check
      _
    $region51: #{tpu_custom_call.1} parent=1 // pred_check_branch
      %112 = sbr.rel (0) target = $region53
    $region52: #{tpu_custom_call.1} parent=1 // pred_region
      %114 = dma.done [#allocation12], 8192
    $region53: #{tpu_custom_call.1} parent=1 // pred_fallthru
      _
    %v116 = vld [vmem:[#allocation2] sm:$0x3]
    %v117 = vld [vmem:[#allocation5] sm:$0xff]
    %v118 = vld [vmem:[#allocation5 + $0x8] sm:$0xff]
    %v119 = vld [vmem:[#allocation5 + $0x10] sm:$0xff]
    %v120 = vld [vmem:[#allocation5 + $0x18] sm:$0xff]
    %v121 = vld [vmem:[#allocation5 + $0x20] sm:$0xff]
    %v122 = vld [vmem:[#allocation5 + $0x28] sm:$0xff]
    %v123 = vld [vmem:[#allocation5 + $0x30] sm:$0xff]
    %v124 = vld [vmem:[#allocation5 + $0x38] sm:$0xff]
    %v125 = vld [vmem:[#allocation5 + $0x40] sm:$0xff]
    %v126 = vld [vmem:[#allocation5 + $0x48] sm:$0xff]
    %v127 = vld [vmem:[#allocation5 + $0x50] sm:$0xff]
    %v128 = vld [vmem:[#allocation5 + $0x58] sm:$0xff]
    %v129 = vld [vmem:[#allocation5 + $0x60] sm:$0xff]
    %v130 = vld [vmem:[#allocation5 + $0x68] sm:$0xff]
    %v131 = vld [vmem:[#allocation5 + $0x70] sm:$0xff]
    %v132 = vld [vmem:[#allocation5 + $0x78] sm:$0xff]
    %v133 = vld [vmem:[#allocation7] sm:$0xf]
    %v135 = vperm.slane %v133, 0
    %v136 = vperm.slane %v133, 1
    %v137 = vperm.slane %v133, 2
    %v138 = vperm.slane %v133, 3
    %v159 = vunpack.c.l.b16 %v117
    %v160 = vunpack.c.h.b16 %v117
    %v161 = vunpack.c.l.b16 %v118
    %v162 = vunpack.c.h.b16 %v118
    %v163 = vunpack.c.l.b16 %v119
    %v164 = vunpack.c.h.b16 %v119
    %v165 = vunpack.c.l.b16 %v120
    %v166 = vunpack.c.h.b16 %v120
    %v167 = vunpack.c.l.b16 %v121
    %v168 = vunpack.c.h.b16 %v121
    %v169 = vunpack.c.l.b16 %v122
    %v170 = vunpack.c.h.b16 %v122
    %v171 = vunpack.c.l.b16 %v123
    %v172 = vunpack.c.h.b16 %v123
    %v173 = vunpack.c.l.b16 %v124
    %v174 = vunpack.c.h.b16 %v124
    %v175 = vunpack.c.l.b16 %v125
    %v176 = vunpack.c.h.b16 %v125
    %v177 = vunpack.c.l.b16 %v126
    %v178 = vunpack.c.h.b16 %v126
    %v179 = vunpack.c.l.b16 %v127
    %v180 = vunpack.c.h.b16 %v127
    %v181 = vunpack.c.l.b16 %v128
    %v182 = vunpack.c.h.b16 %v128
    %v183 = vunpack.c.l.b16 %v129
    %v184 = vunpack.c.h.b16 %v129
    %v185 = vunpack.c.l.b16 %v130
    %v186 = vunpack.c.h.b16 %v130
    %v187 = vunpack.c.l.b16 %v131
    %v188 = vunpack.c.h.b16 %v131
    %v189 = vunpack.c.l.b16 %v132
    %v190 = vunpack.c.h.b16 %v132
    %v191 = vpack.c.b16 %v163, %v159
    %v192 = vpack.c.b16 %v164, %v160
    %v193 = vpack.c.b16 %v165, %v161
    %v194 = vpack.c.b16 %v166, %v162
    %v195 = vpack.c.b16 %v171, %v167
    %v196 = vpack.c.b16 %v172, %v168
    %v197 = vpack.c.b16 %v173, %v169
    %v198 = vpack.c.b16 %v174, %v170
    %v199 = vpack.c.b16 %v179, %v175
    %v200 = vpack.c.b16 %v180, %v176
    %v201 = vpack.c.b16 %v181, %v177
    %v202 = vpack.c.b16 %v182, %v178
    %v203 = vpack.c.b16 %v187, %v183
    %v204 = vpack.c.b16 %v188, %v184
    %v205 = vpack.c.b16 %v189, %v185
    %v206 = vpack.c.b16 %v190, %v186
    %vm223 = vcmask 523264
    %v225 = vsel %vm223, %v116, 0
    %227 = vmatpush.bf16.msra.mxu0 0
    %228 = vmatpush.bf16.msra.mxu0 0
    %229 = vmatpush.bf16.msra.mxu0 0
    %230 = vmatpush.bf16.msra.mxu0 0
    %231 = vmatpush.bf16.msra.mxu0 %v203
    %232 = vmatpush.bf16.msra.mxu0 %v199
    %233 = vmatpush.bf16.msra.mxu0 %v195
    %234 = vmatpush.bf16.msra.mxu0 %v191
    %235 = vmatmul.bf16.gmra.mxu0 %v225
    %v236 = vpop.f32.mrf.mxu0
    %v237 = vadd.f32 %v135, %v236
    %v238 = vpop.f32.mrf.mxu0
    %239 = vdwg.mxu0
    %240 = vmatpush.bf16.msra.mxu0 0
    %241 = vmatpush.bf16.msra.mxu0 0
    %242 = vmatpush.bf16.msra.mxu0 0
    %243 = vmatpush.bf16.msra.mxu0 0
    %244 = vmatpush.bf16.msra.mxu0 %v204
    %245 = vmatpush.bf16.msra.mxu0 %v200
    %246 = vmatpush.bf16.msra.mxu0 %v196
    %247 = vmatpush.bf16.msra.mxu0 %v192
    %248 = vmatmul.bf16.gmra.mxu0 %v225
    %v249 = vpop.f32.mrf.mxu0
    %v250 = vadd.f32 %v136, %v249
    %v251 = vpop.f32.mrf.mxu0
    %252 = vdwg.mxu0
    %253 = vmatpush.bf16.msra.mxu0 0
    %254 = vmatpush.bf16.msra.mxu0 0
    %255 = vmatpush.bf16.msra.mxu0 0
    %256 = vmatpush.bf16.msra.mxu0 0
    %257 = vmatpush.bf16.msra.mxu0 %v205
    %258 = vmatpush.bf16.msra.mxu0 %v201
    %259 = vmatpush.bf16.msra.mxu0 %v197
    %260 = vmatpush.bf16.msra.mxu0 %v193
    %261 = vmatmul.bf16.gmra.mxu0 %v225
    %v262 = vpop.f32.mrf.mxu0
    %v263 = vadd.f32 %v137, %v262
    %v264 = vpop.f32.mrf.mxu0
    %265 = vdwg.mxu0
    %266 = vmatpush.bf16.msra.mxu0 0
    %267 = vmatpush.bf16.msra.mxu0 0
    %268 = vmatpush.bf16.msra.mxu0 0
    %269 = vmatpush.bf16.msra.mxu0 0
    %270 = vmatpush.bf16.msra.mxu0 %v206
    %271 = vmatpush.bf16.msra.mxu0 %v202
    %272 = vmatpush.bf16.msra.mxu0 %v198
    %273 = vmatpush.bf16.msra.mxu0 %v194
    %274 = vmatmul.bf16.gmra.mxu0 %v225
    %v275 = vpop.f32.mrf.mxu0
    %v276 = vadd.f32 %v138, %v275
    %v277 = vpop.f32.mrf.mxu0
    %278 = vdwg.mxu0
    %v279 = vmax.f32 %v237, 0.0
    %v280 = vmax.f32 %v250, 0.0
    %v281 = vmax.f32 %v263, 0.0
    %v282 = vmax.f32 %v276, 0.0
    %v283 = vpack.c.bf16 %v279, %v279
    %v284 = vpack.c.bf16 %v280, %v280
    %v285 = vpack.c.bf16 %v281, %v281
    %v286 = vpack.c.bf16 %v282, %v282
    %v287 = vld [vmem:[#allocation8] sm:$0xff]
    %v288 = vld [vmem:[#allocation8 + $0x8] sm:$0xff]
    %v289 = vld [vmem:[#allocation8 + $0x10] sm:$0xff]
    %v290 = vld [vmem:[#allocation8 + $0x18] sm:$0xff]
    %v291 = vld [vmem:[#allocation8 + $0x20] sm:$0xff]
    %v292 = vld [vmem:[#allocation8 + $0x28] sm:$0xff]
    %v293 = vld [vmem:[#allocation8 + $0x30] sm:$0xff]
    %v294 = vld [vmem:[#allocation8 + $0x38] sm:$0xff]
    %v295 = vld [vmem:[#allocation8 + $0x40] sm:$0xff]
    %v296 = vld [vmem:[#allocation8 + $0x48] sm:$0xff]
    %v297 = vld [vmem:[#allocation8 + $0x50] sm:$0xff]
    %v298 = vld [vmem:[#allocation8 + $0x58] sm:$0xff]
    %v299 = vld [vmem:[#allocation8 + $0x60] sm:$0xff]
    %v300 = vld [vmem:[#allocation8 + $0x68] sm:$0xff]
    %v301 = vld [vmem:[#allocation8 + $0x70] sm:$0xff]
    %v302 = vld [vmem:[#allocation8 + $0x78] sm:$0xff]
    %v303 = vld [vmem:[#allocation8 + $0x80] sm:$0xff]
    %v304 = vld [vmem:[#allocation8 + $0x88] sm:$0xff]
    %v305 = vld [vmem:[#allocation8 + $0x90] sm:$0xff]
    %v306 = vld [vmem:[#allocation8 + $0x98] sm:$0xff]
    %v307 = vld [vmem:[#allocation8 + $0xa0] sm:$0xff]
    %v308 = vld [vmem:[#allocation8 + $0xa8] sm:$0xff]
    %v309 = vld [vmem:[#allocation8 + $0xb0] sm:$0xff]
    %v310 = vld [vmem:[#allocation8 + $0xb8] sm:$0xff]
    %v311 = vld [vmem:[#allocation8 + $0xc0] sm:$0xff]
    %v312 = vld [vmem:[#allocation8 + $0xc8] sm:$0xff]
    %v313 = vld [vmem:[#allocation8 + $0xd0] sm:$0xff]
    %v314 = vld [vmem:[#allocation8 + $0xd8] sm:$0xff]
    %v315 = vld [vmem:[#allocation8 + $0xe0] sm:$0xff]
    %v316 = vld [vmem:[#allocation8 + $0xe8] sm:$0xff]
    %v317 = vld [vmem:[#allocation8 + $0xf0] sm:$0xff]
    %v318 = vld [vmem:[#allocation8 + $0xf8] sm:$0xff]
    %v319 = vld [vmem:[#allocation8 + $0x100] sm:$0xff]
    %v320 = vld [vmem:[#allocation8 + $0x108] sm:$0xff]
    %v321 = vld [vmem:[#allocation8 + $0x110] sm:$0xff]
    %v322 = vld [vmem:[#allocation8 + $0x118] sm:$0xff]
    %v323 = vld [vmem:[#allocation8 + $0x120] sm:$0xff]
    %v324 = vld [vmem:[#allocation8 + $0x128] sm:$0xff]
    %v325 = vld [vmem:[#allocation8 + $0x130] sm:$0xff]
    %v326 = vld [vmem:[#allocation8 + $0x138] sm:$0xff]
    %v327 = vld [vmem:[#allocation8 + $0x140] sm:$0xff]
    %v328 = vld [vmem:[#allocation8 + $0x148] sm:$0xff]
    %v329 = vld [vmem:[#allocation8 + $0x150] sm:$0xff]
    %v330 = vld [vmem:[#allocation8 + $0x158] sm:$0xff]
    %v331 = vld [vmem:[#allocation8 + $0x160] sm:$0xff]
    %v332 = vld [vmem:[#allocation8 + $0x168] sm:$0xff]
    %v333 = vld [vmem:[#allocation8 + $0x170] sm:$0xff]
    %v334 = vld [vmem:[#allocation8 + $0x178] sm:$0xff]
    %v335 = vld [vmem:[#allocation8 + $0x180] sm:$0xff]
    %v336 = vld [vmem:[#allocation8 + $0x188] sm:$0xff]
    %v337 = vld [vmem:[#allocation8 + $0x190] sm:$0xff]
    %v338 = vld [vmem:[#allocation8 + $0x198] sm:$0xff]
    %v339 = vld [vmem:[#allocation8 + $0x1a0] sm:$0xff]
    %v340 = vld [vmem:[#allocation8 + $0x1a8] sm:$0xff]
    %v341 = vld [vmem:[#allocation8 + $0x1b0] sm:$0xff]
    %v342 = vld [vmem:[#allocation8 + $0x1b8] sm:$0xff]
    %v343 = vld [vmem:[#allocation8 + $0x1c0] sm:$0xff]
    %v344 = vld [vmem:[#allocation8 + $0x1c8] sm:$0xff]
    %v345 = vld [vmem:[#allocation8 + $0x1d0] sm:$0xff]
    %v346 = vld [vmem:[#allocation8 + $0x1d8] sm:$0xff]
    %v347 = vld [vmem:[#allocation8 + $0x1e0] sm:$0xff]
    %v348 = vld [vmem:[#allocation8 + $0x1e8] sm:$0xff]
    %v349 = vld [vmem:[#allocation8 + $0x1f0] sm:$0xff]
    %v350 = vld [vmem:[#allocation8 + $0x1f8] sm:$0xff]
    %v351 = vld [vmem:[#allocation8 + $0x200] sm:$0xff]
    %v352 = vld [vmem:[#allocation8 + $0x208] sm:$0xff]
    %v353 = vld [vmem:[#allocation8 + $0x210] sm:$0xff]
    %v354 = vld [vmem:[#allocation8 + $0x218] sm:$0xff]
    %v355 = vld [vmem:[#allocation8 + $0x220] sm:$0xff]
    %v356 = vld [vmem:[#allocation8 + $0x228] sm:$0xff]
    %v357 = vld [vmem:[#allocation8 + $0x230] sm:$0xff]
    %v358 = vld [vmem:[#allocation8 + $0x238] sm:$0xff]
    %v359 = vld [vmem:[#allocation8 + $0x240] sm:$0xff]
    %v360 = vld [vmem:[#allocation8 + $0x248] sm:$0xff]
    %v361 = vld [vmem:[#allocation8 + $0x250] sm:$0xff]
    %v362 = vld [vmem:[#allocation8 + $0x258] sm:$0xff]
    %v363 = vld [vmem:[#allocation8 + $0x260] sm:$0xff]
    %v364 = vld [vmem:[#allocation8 + $0x268] sm:$0xff]
    %v365 = vld [vmem:[#allocation8 + $0x270] sm:$0xff]
    %v366 = vld [vmem:[#allocation8 + $0x278] sm:$0xff]
    %v367 = vld [vmem:[#allocation8 + $0x280] sm:$0xff]
    %v368 = vld [vmem:[#allocation8 + $0x288] sm:$0xff]
    %v369 = vld [vmem:[#allocation8 + $0x290] sm:$0xff]
    %v370 = vld [vmem:[#allocation8 + $0x298] sm:$0xff]
    %v371 = vld [vmem:[#allocation8 + $0x2a0] sm:$0xff]
    %v372 = vld [vmem:[#allocation8 + $0x2a8] sm:$0xff]
    %v373 = vld [vmem:[#allocation8 + $0x2b0] sm:$0xff]
    %v374 = vld [vmem:[#allocation8 + $0x2b8] sm:$0xff]
    %v375 = vld [vmem:[#allocation8 + $0x2c0] sm:$0xff]
    %v376 = vld [vmem:[#allocation8 + $0x2c8] sm:$0xff]
    %v377 = vld [vmem:[#allocation8 + $0x2d0] sm:$0xff]
    %v378 = vld [vmem:[#allocation8 + $0x2d8] sm:$0xff]
    %v379 = vld [vmem:[#allocation8 + $0x2e0] sm:$0xff]
    %v380 = vld [vmem:[#allocation8 + $0x2e8] sm:$0xff]
    %v381 = vld [vmem:[#allocation8 + $0x2f0] sm:$0xff]
    %v382 = vld [vmem:[#allocation8 + $0x2f8] sm:$0xff]
    %v383 = vld [vmem:[#allocation8 + $0x300] sm:$0xff]
    %v384 = vld [vmem:[#allocation8 + $0x308] sm:$0xff]
    %v385 = vld [vmem:[#allocation8 + $0x310] sm:$0xff]
    %v386 = vld [vmem:[#allocation8 + $0x318] sm:$0xff]
    %v387 = vld [vmem:[#allocation8 + $0x320] sm:$0xff]
    %v388 = vld [vmem:[#allocation8 + $0x328] sm:$0xff]
    %v389 = vld [vmem:[#allocation8 + $0x330] sm:$0xff]
    %v390 = vld [vmem:[#allocation8 + $0x338] sm:$0xff]
    %v391 = vld [vmem:[#allocation8 + $0x340] sm:$0xff]
    %v392 = vld [vmem:[#allocation8 + $0x348] sm:$0xff]
    %v393 = vld [vmem:[#allocation8 + $0x350] sm:$0xff]
    %v394 = vld [vmem:[#allocation8 + $0x358] sm:$0xff]
    %v395 = vld [vmem:[#allocation8 + $0x360] sm:$0xff]
    %v396 = vld [vmem:[#allocation8 + $0x368] sm:$0xff]
    %v397 = vld [vmem:[#allocation8 + $0x370] sm:$0xff]
    %v398 = vld [vmem:[#allocation8 + $0x378] sm:$0xff]
    %v399 = vld [vmem:[#allocation8 + $0x380] sm:$0xff]
    %v400 = vld [vmem:[#allocation8 + $0x388] sm:$0xff]
    %v401 = vld [vmem:[#allocation8 + $0x390] sm:$0xff]
    %v402 = vld [vmem:[#allocation8 + $0x398] sm:$0xff]
    %v403 = vld [vmem:[#allocation8 + $0x3a0] sm:$0xff]
    %v404 = vld [vmem:[#allocation8 + $0x3a8] sm:$0xff]
    %v405 = vld [vmem:[#allocation8 + $0x3b0] sm:$0xff]
    %v406 = vld [vmem:[#allocation8 + $0x3b8] sm:$0xff]
    %v407 = vld [vmem:[#allocation8 + $0x3c0] sm:$0xff]
    %v408 = vld [vmem:[#allocation8 + $0x3c8] sm:$0xff]
    %v409 = vld [vmem:[#allocation8 + $0x3d0] sm:$0xff]
    %v410 = vld [vmem:[#allocation8 + $0x3d8] sm:$0xff]
    %v411 = vld [vmem:[#allocation8 + $0x3e0] sm:$0xff]
    %v412 = vld [vmem:[#allocation8 + $0x3e8] sm:$0xff]
    %v413 = vld [vmem:[#allocation8 + $0x3f0] sm:$0xff]
    %v414 = vld [vmem:[#allocation8 + $0x3f8] sm:$0xff]
    %v415 = vld [vmem:[#allocation8 + $0x400] sm:$0xff]
    %v416 = vld [vmem:[#allocation8 + $0x408] sm:$0xff]
    %v417 = vld [vmem:[#allocation8 + $0x410] sm:$0xff]
    %v418 = vld [vmem:[#allocation8 + $0x418] sm:$0xff]
    %v419 = vld [vmem:[#allocation8 + $0x420] sm:$0xff]
    %v420 = vld [vmem:[#allocation8 + $0x428] sm:$0xff]
    %v421 = vld [vmem:[#allocation8 + $0x430] sm:$0xff]
    %v422 = vld [vmem:[#allocation8 + $0x438] sm:$0xff]
    %v423 = vld [vmem:[#allocation8 + $0x440] sm:$0xff]
    %v424 = vld [vmem:[#allocation8 + $0x448] sm:$0xff]
    %v425 = vld [vmem:[#allocation8 + $0x450] sm:$0xff]
    %v426 = vld [vmem:[#allocation8 + $0x458] sm:$0xff]
    %v427 = vld [vmem:[#allocation8 + $0x460] sm:$0xff]
    %v428 = vld [vmem:[#allocation8 + $0x468] sm:$0xff]
    %v429 = vld [vmem:[#allocation8 + $0x470] sm:$0xff]
    %v430 = vld [vmem:[#allocation8 + $0x478] sm:$0xff]
    %v431 = vld [vmem:[#allocation8 + $0x480] sm:$0xff]
    %v432 = vld [vmem:[#allocation8 + $0x488] sm:$0xff]
    %v433 = vld [vmem:[#allocation8 + $0x490] sm:$0xff]
    %v434 = vld [vmem:[#allocation8 + $0x498] sm:$0xff]
    %v435 = vld [vmem:[#allocation8 + $0x4a0] sm:$0xff]
    %v436 = vld [vmem:[#allocation8 + $0x4a8] sm:$0xff]
    %v437 = vld [vmem:[#allocation8 + $0x4b0] sm:$0xff]
    %v438 = vld [vmem:[#allocation8 + $0x4b8] sm:$0xff]
    %v439 = vld [vmem:[#allocation8 + $0x4c0] sm:$0xff]
    %v440 = vld [vmem:[#allocation8 + $0x4c8] sm:$0xff]
    %v441 = vld [vmem:[#allocation8 + $0x4d0] sm:$0xff]
    %v442 = vld [vmem:[#allocation8 + $0x4d8] sm:$0xff]
    %v443 = vld [vmem:[#allocation8 + $0x4e0] sm:$0xff]
    %v444 = vld [vmem:[#allocation8 + $0x4e8] sm:$0xff]
    %v445 = vld [vmem:[#allocation8 + $0x4f0] sm:$0xff]
    %v446 = vld [vmem:[#allocation8 + $0x4f8] sm:$0xff]
    %v447 = vld [vmem:[#allocation8 + $0x500] sm:$0xff]
    %v448 = vld [vmem:[#allocation8 + $0x508] sm:$0xff]
    %v449 = vld [vmem:[#allocation8 + $0x510] sm:$0xff]
    %v450 = vld [vmem:[#allocation8 + $0x518] sm:$0xff]
    %v451 = vld [vmem:[#allocation8 + $0x520] sm:$0xff]
    %v452 = vld [vmem:[#allocation8 + $0x528] sm:$0xff]
    %v453 = vld [vmem:[#allocation8 + $0x530] sm:$0xff]
    %v454 = vld [vmem:[#allocation8 + $0x538] sm:$0xff]
    %v455 = vld [vmem:[#allocation8 + $0x540] sm:$0xff]
    %v456 = vld [vmem:[#allocation8 + $0x548] sm:$0xff]
    %v457 = vld [vmem:[#allocation8 + $0x550] sm:$0xff]
    %v458 = vld [vmem:[#allocation8 + $0x558] sm:$0xff]
    %v459 = vld [vmem:[#allocation8 + $0x560] sm:$0xff]
    %v460 = vld [vmem:[#allocation8 + $0x568] sm:$0xff]
    %v461 = vld [vmem:[#allocation8 + $0x570] sm:$0xff]
    %v462 = vld [vmem:[#allocation8 + $0x578] sm:$0xff]
    %v463 = vld [vmem:[#allocation8 + $0x580] sm:$0xff]
    %v464 = vld [vmem:[#allocation8 + $0x588] sm:$0xff]
    %v465 = vld [vmem:[#allocation8 + $0x590] sm:$0xff]
    %v466 = vld [vmem:[#allocation8 + $0x598] sm:$0xff]
    %v467 = vld [vmem:[#allocation8 + $0x5a0] sm:$0xff]
    %v468 = vld [vmem:[#allocation8 + $0x5a8] sm:$0xff]
    %v469 = vld [vmem:[#allocation8 + $0x5b0] sm:$0xff]
    %v470 = vld [vmem:[#allocation8 + $0x5b8] sm:$0xff]
    %v471 = vld [vmem:[#allocation8 + $0x5c0] sm:$0xff]
    %v472 = vld [vmem:[#allocation8 + $0x5c8] sm:$0xff]
    %v473 = vld [vmem:[#allocation8 + $0x5d0] sm:$0xff]
    %v474 = vld [vmem:[#allocation8 + $0x5d8] sm:$0xff]
    %v475 = vld [vmem:[#allocation8 + $0x5e0] sm:$0xff]
    %v476 = vld [vmem:[#allocation8 + $0x5e8] sm:$0xff]
    %v477 = vld [vmem:[#allocation8 + $0x5f0] sm:$0xff]
    %v478 = vld [vmem:[#allocation8 + $0x5f8] sm:$0xff]
    %v479 = vld [vmem:[#allocation8 + $0x600] sm:$0xff]
    %v480 = vld [vmem:[#allocation8 + $0x608] sm:$0xff]
    %v481 = vld [vmem:[#allocation8 + $0x610] sm:$0xff]
    %v482 = vld [vmem:[#allocation8 + $0x618] sm:$0xff]
    %v483 = vld [vmem:[#allocation8 + $0x620] sm:$0xff]
    %v484 = vld [vmem:[#allocation8 + $0x628] sm:$0xff]
    %v485 = vld [vmem:[#allocation8 + $0x630] sm:$0xff]
    %v486 = vld [vmem:[#allocation8 + $0x638] sm:$0xff]
    %v487 = vld [vmem:[#allocation8 + $0x640] sm:$0xff]
    %v488 = vld [vmem:[#allocation8 + $0x648] sm:$0xff]
    %v489 = vld [vmem:[#allocation8 + $0x650] sm:$0xff]
    %v490 = vld [vmem:[#allocation8 + $0x658] sm:$0xff]
    %v491 = vld [vmem:[#allocation8 + $0x660] sm:$0xff]
    %v492 = vld [vmem:[#allocation8 + $0x668] sm:$0xff]
    %v493 = vld [vmem:[#allocation8 + $0x670] sm:$0xff]
    %v494 = vld [vmem:[#allocation8 + $0x678] sm:$0xff]
    %v495 = vld [vmem:[#allocation8 + $0x680] sm:$0xff]
    %v496 = vld [vmem:[#allocation8 + $0x688] sm:$0xff]
    %v497 = vld [vmem:[#allocation8 + $0x690] sm:$0xff]
    %v498 = vld [vmem:[#allocation8 + $0x698] sm:$0xff]
    %v499 = vld [vmem:[#allocation8 + $0x6a0] sm:$0xff]
    %v500 = vld [vmem:[#allocation8 + $0x6a8] sm:$0xff]
    %v501 = vld [vmem:[#allocation8 + $0x6b0] sm:$0xff]
    %v502 = vld [vmem:[#allocation8 + $0x6b8] sm:$0xff]
    %v503 = vld [vmem:[#allocation8 + $0x6c0] sm:$0xff]
    %v504 = vld [vmem:[#allocation8 + $0x6c8] sm:$0xff]
    %v505 = vld [vmem:[#allocation8 + $0x6d0] sm:$0xff]
    %v506 = vld [vmem:[#allocation8 + $0x6d8] sm:$0xff]
    %v507 = vld [vmem:[#allocation8 + $0x6e0] sm:$0xff]
    %v508 = vld [vmem:[#allocation8 + $0x6e8] sm:$0xff]
    %v509 = vld [vmem:[#allocation8 + $0x6f0] sm:$0xff]
    %v510 = vld [vmem:[#allocation8 + $0x6f8] sm:$0xff]
    %v511 = vld [vmem:[#allocation8 + $0x700] sm:$0xff]
    %v512 = vld [vmem:[#allocation8 + $0x708] sm:$0xff]
    %v513 = vld [vmem:[#allocation8 + $0x710] sm:$0xff]
    %v514 = vld [vmem:[#allocation8 + $0x718] sm:$0xff]
    %v515 = vld [vmem:[#allocation8 + $0x720] sm:$0xff]
    %v516 = vld [vmem:[#allocation8 + $0x728] sm:$0xff]
    %v517 = vld [vmem:[#allocation8 + $0x730] sm:$0xff]
    %v518 = vld [vmem:[#allocation8 + $0x738] sm:$0xff]
    %v519 = vld [vmem:[#allocation8 + $0x740] sm:$0xff]
    %v520 = vld [vmem:[#allocation8 + $0x748] sm:$0xff]
    %v521 = vld [vmem:[#allocation8 + $0x750] sm:$0xff]
    %v522 = vld [vmem:[#allocation8 + $0x758] sm:$0xff]
    %v523 = vld [vmem:[#allocation8 + $0x760] sm:$0xff]
    %v524 = vld [vmem:[#allocation8 + $0x768] sm:$0xff]
    %v525 = vld [vmem:[#allocation8 + $0x770] sm:$0xff]
    %v526 = vld [vmem:[#allocation8 + $0x778] sm:$0xff]
    %v527 = vld [vmem:[#allocation8 + $0x780] sm:$0xff]
    %v528 = vld [vmem:[#allocation8 + $0x788] sm:$0xff]
    %v529 = vld [vmem:[#allocation8 + $0x790] sm:$0xff]
    %v530 = vld [vmem:[#allocation8 + $0x798] sm:$0xff]
    %v531 = vld [vmem:[#allocation8 + $0x7a0] sm:$0xff]
    %v532 = vld [vmem:[#allocation8 + $0x7a8] sm:$0xff]
    %v533 = vld [vmem:[#allocation8 + $0x7b0] sm:$0xff]
    %v534 = vld [vmem:[#allocation8 + $0x7b8] sm:$0xff]
    %v535 = vld [vmem:[#allocation8 + $0x7c0] sm:$0xff]
    %v536 = vld [vmem:[#allocation8 + $0x7c8] sm:$0xff]
    %v537 = vld [vmem:[#allocation8 + $0x7d0] sm:$0xff]
    %v538 = vld [vmem:[#allocation8 + $0x7d8] sm:$0xff]
    %v539 = vld [vmem:[#allocation8 + $0x7e0] sm:$0xff]
    %v540 = vld [vmem:[#allocation8 + $0x7e8] sm:$0xff]
    %v541 = vld [vmem:[#allocation8 + $0x7f0] sm:$0xff]
    %v542 = vld [vmem:[#allocation8 + $0x7f8] sm:$0xff]
    %v543 = vld [vmem:[#allocation10] sm:$0xff]
    %v545 = vperm.slane %v543, 0
    %v546 = vperm.slane %v543, 1
    %v547 = vperm.slane %v543, 2
    %v548 = vperm.slane %v543, 3
    %v549 = vperm.slane %v543, 4
    %v550 = vperm.slane %v543, 5
    %v551 = vperm.slane %v543, 6
    %v552 = vperm.slane %v543, 7
    %v817 = vunpack.c.l.b16 %v287
    %v818 = vunpack.c.h.b16 %v287
    %v819 = vunpack.c.l.b16 %v288
    %v820 = vunpack.c.h.b16 %v288
    %v821 = vunpack.c.l.b16 %v289
    %v822 = vunpack.c.h.b16 %v289
    %v823 = vunpack.c.l.b16 %v290
    %v824 = vunpack.c.h.b16 %v290
    %v825 = vunpack.c.l.b16 %v291
    %v826 = vunpack.c.h.b16 %v291
    %v827 = vunpack.c.l.b16 %v292
    %v828 = vunpack.c.h.b16 %v292
    %v829 = vunpack.c.l.b16 %v293
    %v830 = vunpack.c.h.b16 %v293
    %v831 = vunpack.c.l.b16 %v294
    %v832 = vunpack.c.h.b16 %v294
    %v833 = vunpack.c.l.b16 %v295
    %v834 = vunpack.c.h.b16 %v295
    %v835 = vunpack.c.l.b16 %v296
    %v836 = vunpack.c.h.b16 %v296
    %v837 = vunpack.c.l.b16 %v297
    %v838 = vunpack.c.h.b16 %v297
    %v839 = vunpack.c.l.b16 %v298
    %v840 = vunpack.c.h.b16 %v298
    %v841 = vunpack.c.l.b16 %v299
    %v842 = vunpack.c.h.b16 %v299
    %v843 = vunpack.c.l.b16 %v300
    %v844 = vunpack.c.h.b16 %v300
    %v845 = vunpack.c.l.b16 %v301
    %v846 = vunpack.c.h.b16 %v301
    %v847 = vunpack.c.l.b16 %v302
    %v848 = vunpack.c.h.b16 %v302
    %v849 = vunpack.c.l.b16 %v303
    %v850 = vunpack.c.h.b16 %v303
    %v851 = vunpack.c.l.b16 %v304
    %v852 = vunpack.c.h.b16 %v304
    %v853 = vunpack.c.l.b16 %v305
    %v854 = vunpack.c.h.b16 %v305
    %v855 = vunpack.c.l.b16 %v306
    %v856 = vunpack.c.h.b16 %v306
    %v857 = vunpack.c.l.b16 %v307
    %v858 = vunpack.c.h.b16 %v307
    %v859 = vunpack.c.l.b16 %v308
    %v860 = vunpack.c.h.b16 %v308
    %v861 = vunpack.c.l.b16 %v309
    %v862 = vunpack.c.h.b16 %v309
    %v863 = vunpack.c.l.b16 %v310
    %v864 = vunpack.c.h.b16 %v310
    %v865 = vunpack.c.l.b16 %v311
    %v866 = vunpack.c.h.b16 %v311
    %v867 = vunpack.c.l.b16 %v312
    %v868 = vunpack.c.h.b16 %v312
    %v869 = vunpack.c.l.b16 %v313
    %v870 = vunpack.c.h.b16 %v313
    %v871 = vunpack.c.l.b16 %v314
    %v872 = vunpack.c.h.b16 %v314
    %v873 = vunpack.c.l.b16 %v315
    %v874 = vunpack.c.h.b16 %v315
    %v875 = vunpack.c.l.b16 %v316
    %v876 = vunpack.c.h.b16 %v316
    %v877 = vunpack.c.l.b16 %v317
    %v878 = vunpack.c.h.b16 %v317
    %v879 = vunpack.c.l.b16 %v318
    %v880 = vunpack.c.h.b16 %v318
    %v881 = vunpack.c.l.b16 %v319
    %v882 = vunpack.c.h.b16 %v319
    %v883 = vunpack.c.l.b16 %v320
    %v884 = vunpack.c.h.b16 %v320
    %v885 = vunpack.c.l.b16 %v321
    %v886 = vunpack.c.h.b16 %v321
    %v887 = vunpack.c.l.b16 %v322
    %v888 = vunpack.c.h.b16 %v322
    %v889 = vunpack.c.l.b16 %v323
    %v890 = vunpack.c.h.b16 %v323
    %v891 = vunpack.c.l.b16 %v324
    %v892 = vunpack.c.h.b16 %v324
    %v893 = vunpack.c.l.b16 %v325
    %v894 = vunpack.c.h.b16 %v325
    %v895 = vunpack.c.l.b16 %v326
    %v896 = vunpack.c.h.b16 %v326
    %v897 = vunpack.c.l.b16 %v327
    %v898 = vunpack.c.h.b16 %v327
    %v899 = vunpack.c.l.b16 %v328
    %v900 = vunpack.c.h.b16 %v328
    %v901 = vunpack.c.l.b16 %v329
    %v902 = vunpack.c.h.b16 %v329
    %v903 = vunpack.c.l.b16 %v330
    %v904 = vunpack.c.h.b16 %v330
    %v905 = vunpack.c.l.b16 %v331
    %v906 = vunpack.c.h.b16 %v331
    %v907 = vunpack.c.l.b16 %v332
    %v908 = vunpack.c.h.b16 %v332
    %v909 = vunpack.c.l.b16 %v333
    %v910 = vunpack.c.h.b16 %v333
    %v911 = vunpack.c.l.b16 %v334
    %v912 = vunpack.c.h.b16 %v334
    %v913 = vunpack.c.l.b16 %v335
    %v914 = vunpack.c.h.b16 %v335
    %v915 = vunpack.c.l.b16 %v336
    %v916 = vunpack.c.h.b16 %v336
    %v917 = vunpack.c.l.b16 %v337
    %v918 = vunpack.c.h.b16 %v337
    %v919 = vunpack.c.l.b16 %v338
    %v920 = vunpack.c.h.b16 %v338
    %v921 = vunpack.c.l.b16 %v339
    %v922 = vunpack.c.h.b16 %v339
    %v923 = vunpack.c.l.b16 %v340
    %v924 = vunpack.c.h.b16 %v340
    %v925 = vunpack.c.l.b16 %v341
    %v926 = vunpack.c.h.b16 %v341
    %v927 = vunpack.c.l.b16 %v342
    %v928 = vunpack.c.h.b16 %v342
    %v929 = vunpack.c.l.b16 %v343
    %v930 = vunpack.c.h.b16 %v343
    %v931 = vunpack.c.l.b16 %v344
    %v932 = vunpack.c.h.b16 %v344
    %v933 = vunpack.c.l.b16 %v345
    %v934 = vunpack.c.h.b16 %v345
    %v935 = vunpack.c.l.b16 %v346
    %v936 = vunpack.c.h.b16 %v346
    %v937 = vunpack.c.l.b16 %v347
    %v938 = vunpack.c.h.b16 %v347
    %v939 = vunpack.c.l.b16 %v348
    %v940 = vunpack.c.h.b16 %v348
    %v941 = vunpack.c.l.b16 %v349
    %v942 = vunpack.c.h.b16 %v349
    %v943 = vunpack.c.l.b16 %v350
    %v944 = vunpack.c.h.b16 %v350
    %v945 = vunpack.c.l.b16 %v351
    %v946 = vunpack.c.h.b16 %v351
    %v947 = vunpack.c.l.b16 %v352
    %v948 = vunpack.c.h.b16 %v352
    %v949 = vunpack.c.l.b16 %v353
    %v950 = vunpack.c.h.b16 %v353
    %v951 = vunpack.c.l.b16 %v354
    %v952 = vunpack.c.h.b16 %v354
    %v953 = vunpack.c.l.b16 %v355
    %v954 = vunpack.c.h.b16 %v355
    %v955 = vunpack.c.l.b16 %v356
    %v956 = vunpack.c.h.b16 %v356
    %v957 = vunpack.c.l.b16 %v357
    %v958 = vunpack.c.h.b16 %v357
    %v959 = vunpack.c.l.b16 %v358
    %v960 = vunpack.c.h.b16 %v358
    %v961 = vunpack.c.l.b16 %v359
    %v962 = vunpack.c.h.b16 %v359
    %v963 = vunpack.c.l.b16 %v360
    %v964 = vunpack.c.h.b16 %v360
    %v965 = vunpack.c.l.b16 %v361
    %v966 = vunpack.c.h.b16 %v361
    %v967 = vunpack.c.l.b16 %v362
    %v968 = vunpack.c.h.b16 %v362
    %v969 = vunpack.c.l.b16 %v363
    %v970 = vunpack.c.h.b16 %v363
    %v971 = vunpack.c.l.b16 %v364
    %v972 = vunpack.c.h.b16 %v364
    %v973 = vunpack.c.l.b16 %v365
    %v974 = vunpack.c.h.b16 %v365
    %v975 = vunpack.c.l.b16 %v366
    %v976 = vunpack.c.h.b16 %v366
    %v977 = vunpack.c.l.b16 %v367
    %v978 = vunpack.c.h.b16 %v367
    %v979 = vunpack.c.l.b16 %v368
    %v980 = vunpack.c.h.b16 %v368
    %v981 = vunpack.c.l.b16 %v369
    %v982 = vunpack.c.h.b16 %v369
    %v983 = vunpack.c.l.b16 %v370
    %v984 = vunpack.c.h.b16 %v370
    %v985 = vunpack.c.l.b16 %v371
    %v986 = vunpack.c.h.b16 %v371
    %v987 = vunpack.c.l.b16 %v372
    %v988 = vunpack.c.h.b16 %v372
    %v989 = vunpack.c.l.b16 %v373
    %v990 = vunpack.c.h.b16 %v373
    %v991 = vunpack.c.l.b16 %v374
    %v992 = vunpack.c.h.b16 %v374
    %v993 = vunpack.c.l.b16 %v375
    %v994 = vunpack.c.h.b16 %v375
    %v995 = vunpack.c.l.b16 %v376
    %v996 = vunpack.c.h.b16 %v376
    %v997 = vunpack.c.l.b16 %v377
    %v998 = vunpack.c.h.b16 %v377
    %v999 = vunpack.c.l.b16 %v378
    %v1000 = vunpack.c.h.b16 %v378
    %v1001 = vunpack.c.l.b16 %v379
    %v1002 = vunpack.c.h.b16 %v379
    %v1003 = vunpack.c.l.b16 %v380
    %v1004 = vunpack.c.h.b16 %v380
    %v1005 = vunpack.c.l.b16 %v381
    %v1006 = vunpack.c.h.b16 %v381
    %v1007 = vunpack.c.l.b16 %v382
    %v1008 = vunpack.c.h.b16 %v382
    %v1009 = vunpack.c.l.b16 %v383
    %v1010 = vunpack.c.h.b16 %v383
    %v1011 = vunpack.c.l.b16 %v384
    %v1012 = vunpack.c.h.b16 %v384
    %v1013 = vunpack.c.l.b16 %v385
    %v1014 = vunpack.c.h.b16 %v385
    %v1015 = vunpack.c.l.b16 %v386
    %v1016 = vunpack.c.h.b16 %v386
    %v1017 = vunpack.c.l.b16 %v387
    %v1018 = vunpack.c.h.b16 %v387
    %v1019 = vunpack.c.l.b16 %v388
    %v1020 = vunpack.c.h.b16 %v388
    %v1021 = vunpack.c.l.b16 %v389
    %v1022 = vunpack.c.h.b16 %v389
    %v1023 = vunpack.c.l.b16 %v390
    %v1024 = vunpack.c.h.b16 %v390
    %v1025 = vunpack.c.l.b16 %v391
    %v1026 = vunpack.c.h.b16 %v391
    %v1027 = vunpack.c.l.b16 %v392
    %v1028 = vunpack.c.h.b16 %v392
    %v1029 = vunpack.c.l.b16 %v393
    %v1030 = vunpack.c.h.b16 %v393
    %v1031 = vunpack.c.l.b16 %v394
    %v1032 = vunpack.c.h.b16 %v394
    %v1033 = vunpack.c.l.b16 %v395
    %v1034 = vunpack.c.h.b16 %v395
    %v1035 = vunpack.c.l.b16 %v396
    %v1036 = vunpack.c.h.b16 %v396
    %v1037 = vunpack.c.l.b16 %v397
    %v1038 = vunpack.c.h.b16 %v397
    %v1039 = vunpack.c.l.b16 %v398
    %v1040 = vunpack.c.h.b16 %v398
    %v1041 = vunpack.c.l.b16 %v399
    %v1042 = vunpack.c.h.b16 %v399
    %v1043 = vunpack.c.l.b16 %v400
    %v1044 = vunpack.c.h.b16 %v400
    %v1045 = vunpack.c.l.b16 %v401
    %v1046 = vunpack.c.h.b16 %v401
    %v1047 = vunpack.c.l.b16 %v402
    %v1048 = vunpack.c.h.b16 %v402
    %v1049 = vunpack.c.l.b16 %v403
    %v1050 = vunpack.c.h.b16 %v403
    %v1051 = vunpack.c.l.b16 %v404
    %v1052 = vunpack.c.h.b16 %v404
    %v1053 = vunpack.c.l.b16 %v405
    %v1054 = vunpack.c.h.b16 %v405
    %v1055 = vunpack.c.l.b16 %v406
    %v1056 = vunpack.c.h.b16 %v406
    %v1057 = vunpack.c.l.b16 %v407
    %v1058 = vunpack.c.h.b16 %v407
    %v1059 = vunpack.c.l.b16 %v408
    %v1060 = vunpack.c.h.b16 %v408
    %v1061 = vunpack.c.l.b16 %v409
    %v1062 = vunpack.c.h.b16 %v409
    %v1063 = vunpack.c.l.b16 %v410
    %v1064 = vunpack.c.h.b16 %v410
    %v1065 = vunpack.c.l.b16 %v411
    %v1066 = vunpack.c.h.b16 %v411
    %v1067 = vunpack.c.l.b16 %v412
    %v1068 = vunpack.c.h.b16 %v412
    %v1069 = vunpack.c.l.b16 %v413
    %v1070 = vunpack.c.h.b16 %v413
    %v1071 = vunpack.c.l.b16 %v414
    %v1072 = vunpack.c.h.b16 %v414
    %v1073 = vunpack.c.l.b16 %v415
    %v1074 = vunpack.c.h.b16 %v415
    %v1075 = vunpack.c.l.b16 %v416
    %v1076 = vunpack.c.h.b16 %v416
    %v1077 = vunpack.c.l.b16 %v417
    %v1078 = vunpack.c.h.b16 %v417
    %v1079 = vunpack.c.l.b16 %v418
    %v1080 = vunpack.c.h.b16 %v418
    %v1081 = vunpack.c.l.b16 %v419
    %v1082 = vunpack.c.h.b16 %v419
    %v1083 = vunpack.c.l.b16 %v420
    %v1084 = vunpack.c.h.b16 %v420
    %v1085 = vunpack.c.l.b16 %v421
    %v1086 = vunpack.c.h.b16 %v421
    %v1087 = vunpack.c.l.b16 %v422
    %v1088 = vunpack.c.h.b16 %v422
    %v1089 = vunpack.c.l.b16 %v423
    %v1090 = vunpack.c.h.b16 %v423
    %v1091 = vunpack.c.l.b16 %v424
    %v1092 = vunpack.c.h.b16 %v424
    %v1093 = vunpack.c.l.b16 %v425
    %v1094 = vunpack.c.h.b16 %v425
    %v1095 = vunpack.c.l.b16 %v426
    %v1096 = vunpack.c.h.b16 %v426
    %v1097 = vunpack.c.l.b16 %v427
    %v1098 = vunpack.c.h.b16 %v427
    %v1099 = vunpack.c.l.b16 %v428
    %v1100 = vunpack.c.h.b16 %v428
    %v1101 = vunpack.c.l.b16 %v429
    %v1102 = vunpack.c.h.b16 %v429
    %v1103 = vunpack.c.l.b16 %v430
    %v1104 = vunpack.c.h.b16 %v430
    %v1105 = vunpack.c.l.b16 %v431
    %v1106 = vunpack.c.h.b16 %v431
    %v1107 = vunpack.c.l.b16 %v432
    %v1108 = vunpack.c.h.b16 %v432
    %v1109 = vunpack.c.l.b16 %v433
    %v1110 = vunpack.c.h.b16 %v433
    %v1111 = vunpack.c.l.b16 %v434
    %v1112 = vunpack.c.h.b16 %v434
    %v1113 = vunpack.c.l.b16 %v435
    %v1114 = vunpack.c.h.b16 %v435
    %v1115 = vunpack.c.l.b16 %v436
    %v1116 = vunpack.c.h.b16 %v436
    %v1117 = vunpack.c.l.b16 %v437
    %v1118 = vunpack.c.h.b16 %v437
    %v1119 = vunpack.c.l.b16 %v438
    %v1120 = vunpack.c.h.b16 %v438
    %v1121 = vunpack.c.l.b16 %v439
    %v1122 = vunpack.c.h.b16 %v439
    %v1123 = vunpack.c.l.b16 %v440
    %v1124 = vunpack.c.h.b16 %v440
    %v1125 = vunpack.c.l.b16 %v441
    %v1126 = vunpack.c.h.b16 %v441
    %v1127 = vunpack.c.l.b16 %v442
    %v1128 = vunpack.c.h.b16 %v442
    %v1129 = vunpack.c.l.b16 %v443
    %v1130 = vunpack.c.h.b16 %v443
    %v1131 = vunpack.c.l.b16 %v444
    %v1132 = vunpack.c.h.b16 %v444
    %v1133 = vunpack.c.l.b16 %v445
    %v1134 = vunpack.c.h.b16 %v445
    %v1135 = vunpack.c.l.b16 %v446
    %v1136 = vunpack.c.h.b16 %v446
    %v1137 = vunpack.c.l.b16 %v447
    %v1138 = vunpack.c.h.b16 %v447
    %v1139 = vunpack.c.l.b16 %v448
    %v1140 = vunpack.c.h.b16 %v448
    %v1141 = vunpack.c.l.b16 %v449
    %v1142 = vunpack.c.h.b16 %v449
    %v1143 = vunpack.c.l.b16 %v450
    %v1144 = vunpack.c.h.b16 %v450
    %v1145 = vunpack.c.l.b16 %v451
    %v1146 = vunpack.c.h.b16 %v451
    %v1147 = vunpack.c.l.b16 %v452
    %v1148 = vunpack.c.h.b16 %v452
    %v1149 = vunpack.c.l.b16 %v453
    %v1150 = vunpack.c.h.b16 %v453
    %v1151 = vunpack.c.l.b16 %v454
    %v1152 = vunpack.c.h.b16 %v454
    %v1153 = vunpack.c.l.b16 %v455
    %v1154 = vunpack.c.h.b16 %v455
    %v1155 = vunpack.c.l.b16 %v456
    %v1156 = vunpack.c.h.b16 %v456
    %v1157 = vunpack.c.l.b16 %v457
    %v1158 = vunpack.c.h.b16 %v457
    %v1159 = vunpack.c.l.b16 %v458
    %v1160 = vunpack.c.h.b16 %v458
    %v1161 = vunpack.c.l.b16 %v459
    %v1162 = vunpack.c.h.b16 %v459
    %v1163 = vunpack.c.l.b16 %v460
    %v1164 = vunpack.c.h.b16 %v460
    %v1165 = vunpack.c.l.b16 %v461
    %v1166 = vunpack.c.h.b16 %v461
    %v1167 = vunpack.c.l.b16 %v462
    %v1168 = vunpack.c.h.b16 %v462
    %v1169 = vunpack.c.l.b16 %v463
    %v1170 = vunpack.c.h.b16 %v463
    %v1171 = vunpack.c.l.b16 %v464
    %v1172 = vunpack.c.h.b16 %v464
    %v1173 = vunpack.c.l.b16 %v465
    %v1174 = vunpack.c.h.b16 %v465
    %v1175 = vunpack.c.l.b16 %v466
    %v1176 = vunpack.c.h.b16 %v466
    %v1177 = vunpack.c.l.b16 %v467
    %v1178 = vunpack.c.h.b16 %v467
    %v1179 = vunpack.c.l.b16 %v468
    %v1180 = vunpack.c.h.b16 %v468
    %v1181 = vunpack.c.l.b16 %v469
    %v1182 = vunpack.c.h.b16 %v469
    %v1183 = vunpack.c.l.b16 %v470
    %v1184 = vunpack.c.h.b16 %v470
    %v1185 = vunpack.c.l.b16 %v471
    %v1186 = vunpack.c.h.b16 %v471
    %v1187 = vunpack.c.l.b16 %v472
    %v1188 = vunpack.c.h.b16 %v472
    %v1189 = vunpack.c.l.b16 %v473
    %v1190 = vunpack.c.h.b16 %v473
    %v1191 = vunpack.c.l.b16 %v474
    %v1192 = vunpack.c.h.b16 %v474
    %v1193 = vunpack.c.l.b16 %v475
    %v1194 = vunpack.c.h.b16 %v475
    %v1195 = vunpack.c.l.b16 %v476
    %v1196 = vunpack.c.h.b16 %v476
    %v1197 = vunpack.c.l.b16 %v477
    %v1198 = vunpack.c.h.b16 %v477
    %v1199 = vunpack.c.l.b16 %v478
    %v1200 = vunpack.c.h.b16 %v478
    %v1201 = vunpack.c.l.b16 %v479
    %v1202 = vunpack.c.h.b16 %v479
    %v1203 = vunpack.c.l.b16 %v480
    %v1204 = vunpack.c.h.b16 %v480
    %v1205 = vunpack.c.l.b16 %v481
    %v1206 = vunpack.c.h.b16 %v481
    %v1207 = vunpack.c.l.b16 %v482
    %v1208 = vunpack.c.h.b16 %v482
    %v1209 = vunpack.c.l.b16 %v483
    %v1210 = vunpack.c.h.b16 %v483
    %v1211 = vunpack.c.l.b16 %v484
    %v1212 = vunpack.c.h.b16 %v484
    %v1213 = vunpack.c.l.b16 %v485
    %v1214 = vunpack.c.h.b16 %v485
    %v1215 = vunpack.c.l.b16 %v486
    %v1216 = vunpack.c.h.b16 %v486
    %v1217 = vunpack.c.l.b16 %v487
    %v1218 = vunpack.c.h.b16 %v487
    %v1219 = vunpack.c.l.b16 %v488
    %v1220 = vunpack.c.h.b16 %v488
    %v1221 = vunpack.c.l.b16 %v489
    %v1222 = vunpack.c.h.b16 %v489
    %v1223 = vunpack.c.l.b16 %v490
    %v1224 = vunpack.c.h.b16 %v490
    %v1225 = vunpack.c.l.b16 %v491
    %v1226 = vunpack.c.h.b16 %v491
    %v1227 = vunpack.c.l.b16 %v492
    %v1228 = vunpack.c.h.b16 %v492
    %v1229 = vunpack.c.l.b16 %v493
    %v1230 = vunpack.c.h.b16 %v493
    %v1231 = vunpack.c.l.b16 %v494
    %v1232 = vunpack.c.h.b16 %v494
    %v1233 = vunpack.c.l.b16 %v495
    %v1234 = vunpack.c.h.b16 %v495
    %v1235 = vunpack.c.l.b16 %v496
    %v1236 = vunpack.c.h.b16 %v496
    %v1237 = vunpack.c.l.b16 %v497
    %v1238 = vunpack.c.h.b16 %v497
    %v1239 = vunpack.c.l.b16 %v498
    %v1240 = vunpack.c.h.b16 %v498
    %v1241 = vunpack.c.l.b16 %v499
    %v1242 = vunpack.c.h.b16 %v499
    %v1243 = vunpack.c.l.b16 %v500
    %v1244 = vunpack.c.h.b16 %v500
    %v1245 = vunpack.c.l.b16 %v501
    %v1246 = vunpack.c.h.b16 %v501
    %v1247 = vunpack.c.l.b16 %v502
    %v1248 = vunpack.c.h.b16 %v502
    %v1249 = vunpack.c.l.b16 %v503
    %v1250 = vunpack.c.h.b16 %v503
    %v1251 = vunpack.c.l.b16 %v504
    %v1252 = vunpack.c.h.b16 %v504
    %v1253 = vunpack.c.l.b16 %v505
    %v1254 = vunpack.c.h.b16 %v505
    %v1255 = vunpack.c.l.b16 %v506
    %v1256 = vunpack.c.h.b16 %v506
    %v1257 = vunpack.c.l.b16 %v507
    %v1258 = vunpack.c.h.b16 %v507
    %v1259 = vunpack.c.l.b16 %v508
    %v1260 = vunpack.c.h.b16 %v508
    %v1261 = vunpack.c.l.b16 %v509
    %v1262 = vunpack.c.h.b16 %v509
    %v1263 = vunpack.c.l.b16 %v510
    %v1264 = vunpack.c.h.b16 %v510
    %v1265 = vunpack.c.l.b16 %v511
    %v1266 = vunpack.c.h.b16 %v511
    %v1267 = vunpack.c.l.b16 %v512
    %v1268 = vunpack.c.h.b16 %v512
    %v1269 = vunpack.c.l.b16 %v513
    %v1270 = vunpack.c.h.b16 %v513
    %v1271 = vunpack.c.l.b16 %v514
    %v1272 = vunpack.c.h.b16 %v514
    %v1273 = vunpack.c.l.b16 %v515
    %v1274 = vunpack.c.h.b16 %v515
    %v1275 = vunpack.c.l.b16 %v516
    %v1276 = vunpack.c.h.b16 %v516
    %v1277 = vunpack.c.l.b16 %v517
    %v1278 = vunpack.c.h.b16 %v517
    %v1279 = vunpack.c.l.b16 %v518
    %v1280 = vunpack.c.h.b16 %v518
    %v1281 = vunpack.c.l.b16 %v519
    %v1282 = vunpack.c.h.b16 %v519
    %v1283 = vunpack.c.l.b16 %v520
    %v1284 = vunpack.c.h.b16 %v520
    %v1285 = vunpack.c.l.b16 %v521
    %v1286 = vunpack.c.h.b16 %v521
    %v1287 = vunpack.c.l.b16 %v522
    %v1288 = vunpack.c.h.b16 %v522
    %v1289 = vunpack.c.l.b16 %v523
    %v1290 = vunpack.c.h.b16 %v523
    %v1291 = vunpack.c.l.b16 %v524
    %v1292 = vunpack.c.h.b16 %v524
    %v1293 = vunpack.c.l.b16 %v525
    %v1294 = vunpack.c.h.b16 %v525
    %v1295 = vunpack.c.l.b16 %v526
    %v1296 = vunpack.c.h.b16 %v526
    %v1297 = vunpack.c.l.b16 %v527
    %v1298 = vunpack.c.h.b16 %v527
    %v1299 = vunpack.c.l.b16 %v528
    %v1300 = vunpack.c.h.b16 %v528
    %v1301 = vunpack.c.l.b16 %v529
    %v1302 = vunpack.c.h.b16 %v529
    %v1303 = vunpack.c.l.b16 %v530
    %v1304 = vunpack.c.h.b16 %v530
    %v1305 = vunpack.c.l.b16 %v531
    %v1306 = vunpack.c.h.b16 %v531
    %v1307 = vunpack.c.l.b16 %v532
    %v1308 = vunpack.c.h.b16 %v532
    %v1309 = vunpack.c.l.b16 %v533
    %v1310 = vunpack.c.h.b16 %v533
    %v1311 = vunpack.c.l.b16 %v534
    %v1312 = vunpack.c.h.b16 %v534
    %v1313 = vunpack.c.l.b16 %v535
    %v1314 = vunpack.c.h.b16 %v535
    %v1315 = vunpack.c.l.b16 %v536
    %v1316 = vunpack.c.h.b16 %v536
    %v1317 = vunpack.c.l.b16 %v537
    %v1318 = vunpack.c.h.b16 %v537
    %v1319 = vunpack.c.l.b16 %v538
    %v1320 = vunpack.c.h.b16 %v538
    %v1321 = vunpack.c.l.b16 %v539
    %v1322 = vunpack.c.h.b16 %v539
    %v1323 = vunpack.c.l.b16 %v540
    %v1324 = vunpack.c.h.b16 %v540
    %v1325 = vunpack.c.l.b16 %v541
    %v1326 = vunpack.c.h.b16 %v541
    %v1327 = vunpack.c.l.b16 %v542
    %v1328 = vunpack.c.h.b16 %v542
    %v1329 = vpack.c.b16 %v825, %v817
    %v1330 = vpack.c.b16 %v826, %v818
    %v1331 = vpack.c.b16 %v827, %v819
    %v1332 = vpack.c.b16 %v828, %v820
    %v1333 = vpack.c.b16 %v829, %v821
    %v1334 = vpack.c.b16 %v830, %v822
    %v1335 = vpack.c.b16 %v831, %v823
    %v1336 = vpack.c.b16 %v832, %v824
    %v1337 = vpack.c.b16 %v841, %v833
    %v1338 = vpack.c.b16 %v842, %v834
    %v1339 = vpack.c.b16 %v843, %v835
    %v1340 = vpack.c.b16 %v844, %v836
    %v1341 = vpack.c.b16 %v845, %v837
    %v1342 = vpack.c.b16 %v846, %v838
    %v1343 = vpack.c.b16 %v847, %v839
    %v1344 = vpack.c.b16 %v848, %v840
    %v1345 = vpack.c.b16 %v857, %v849
    %v1346 = vpack.c.b16 %v858, %v850
    %v1347 = vpack.c.b16 %v859, %v851
    %v1348 = vpack.c.b16 %v860, %v852
    %v1349 = vpack.c.b16 %v861, %v853
    %v1350 = vpack.c.b16 %v862, %v854
    %v1351 = vpack.c.b16 %v863, %v855
    %v1352 = vpack.c.b16 %v864, %v856
    %v1353 = vpack.c.b16 %v873, %v865
    %v1354 = vpack.c.b16 %v874, %v866
    %v1355 = vpack.c.b16 %v875, %v867
    %v1356 = vpack.c.b16 %v876, %v868
    %v1357 = vpack.c.b16 %v877, %v869
    %v1358 = vpack.c.b16 %v878, %v870
    %v1359 = vpack.c.b16 %v879, %v871
    %v1360 = vpack.c.b16 %v880, %v872
    %v1361 = vpack.c.b16 %v889, %v881
    %v1362 = vpack.c.b16 %v890, %v882
    %v1363 = vpack.c.b16 %v891, %v883
    %v1364 = vpack.c.b16 %v892, %v884
    %v1365 = vpack.c.b16 %v893, %v885
    %v1366 = vpack.c.b16 %v894, %v886
    %v1367 = vpack.c.b16 %v895, %v887
    %v1368 = vpack.c.b16 %v896, %v888
    %v1369 = vpack.c.b16 %v905, %v897
    %v1370 = vpack.c.b16 %v906, %v898
    %v1371 = vpack.c.b16 %v907, %v899
    %v1372 = vpack.c.b16 %v908, %v900
    %v1373 = vpack.c.b16 %v909, %v901
    %v1374 = vpack.c.b16 %v910, %v902
    %v1375 = vpack.c.b16 %v911, %v903
    %v1376 = vpack.c.b16 %v912, %v904
    %v1377 = vpack.c.b16 %v921, %v913
    %v1378 = vpack.c.b16 %v922, %v914
    %v1379 = vpack.c.b16 %v923, %v915
    %v1380 = vpack.c.b16 %v924, %v916
    %v1381 = vpack.c.b16 %v925, %v917
    %v1382 = vpack.c.b16 %v926, %v918
    %v1383 = vpack.c.b16 %v927, %v919
    %v1384 = vpack.c.b16 %v928, %v920
    %v1385 = vpack.c.b16 %v937, %v929
    %v1386 = vpack.c.b16 %v938, %v930
    %v1387 = vpack.c.b16 %v939, %v931
    %v1388 = vpack.c.b16 %v940, %v932
    %v1389 = vpack.c.b16 %v941, %v933
    %v1390 = vpack.c.b16 %v942, %v934
    %v1391 = vpack.c.b16 %v943, %v935
    %v1392 = vpack.c.b16 %v944, %v936
    %v1393 = vpack.c.b16 %v953, %v945
    %v1394 = vpack.c.b16 %v954, %v946
    %v1395 = vpack.c.b16 %v955, %v947
    %v1396 = vpack.c.b16 %v956, %v948
    %v1397 = vpack.c.b16 %v957, %v949
    %v1398 = vpack.c.b16 %v958, %v950
    %v1399 = vpack.c.b16 %v959, %v951
    %v1400 = vpack.c.b16 %v960, %v952
    %v1401 = vpack.c.b16 %v969, %v961
    %v1402 = vpack.c.b16 %v970, %v962
    %v1403 = vpack.c.b16 %v971, %v963
    %v1404 = vpack.c.b16 %v972, %v964
    %v1405 = vpack.c.b16 %v973, %v965
    %v1406 = vpack.c.b16 %v974, %v966
    %v1407 = vpack.c.b16 %v975, %v967
    %v1408 = vpack.c.b16 %v976, %v968
    %v1409 = vpack.c.b16 %v985, %v977
    %v1410 = vpack.c.b16 %v986, %v978
    %v1411 = vpack.c.b16 %v987, %v979
    %v1412 = vpack.c.b16 %v988, %v980
    %v1413 = vpack.c.b16 %v989, %v981
    %v1414 = vpack.c.b16 %v990, %v982
    %v1415 = vpack.c.b16 %v991, %v983
    %v1416 = vpack.c.b16 %v992, %v984
    %v1417 = vpack.c.b16 %v1001, %v993
    %v1418 = vpack.c.b16 %v1002, %v994
    %v1419 = vpack.c.b16 %v1003, %v995
    %v1420 = vpack.c.b16 %v1004, %v996
    %v1421 = vpack.c.b16 %v1005, %v997
    %v1422 = vpack.c.b16 %v1006, %v998
    %v1423 = vpack.c.b16 %v1007, %v999
    %v1424 = vpack.c.b16 %v1008, %v1000
    %v1425 = vpack.c.b16 %v1017, %v1009
    %v1426 = vpack.c.b16 %v1018, %v1010
    %v1427 = vpack.c.b16 %v1019, %v1011
    %v1428 = vpack.c.b16 %v1020, %v1012
    %v1429 = vpack.c.b16 %v1021, %v1013
    %v1430 = vpack.c.b16 %v1022, %v1014
    %v1431 = vpack.c.b16 %v1023, %v1015
    %v1432 = vpack.c.b16 %v1024, %v1016
    %v1433 = vpack.c.b16 %v1033, %v1025
    %v1434 = vpack.c.b16 %v1034, %v1026
    %v1435 = vpack.c.b16 %v1035, %v1027
    %v1436 = vpack.c.b16 %v1036, %v1028
    %v1437 = vpack.c.b16 %v1037, %v1029
    %v1438 = vpack.c.b16 %v1038, %v1030
    %v1439 = vpack.c.b16 %v1039, %v1031
    %v1440 = vpack.c.b16 %v1040, %v1032
    %v1441 = vpack.c.b16 %v1049, %v1041
    %v1442 = vpack.c.b16 %v1050, %v1042
    %v1443 = vpack.c.b16 %v1051, %v1043
    %v1444 = vpack.c.b16 %v1052, %v1044
    %v1445 = vpack.c.b16 %v1053, %v1045
    %v1446 = vpack.c.b16 %v1054, %v1046
    %v1447 = vpack.c.b16 %v1055, %v1047
    %v1448 = vpack.c.b16 %v1056, %v1048
    %v1449 = vpack.c.b16 %v1065, %v1057
    %v1450 = vpack.c.b16 %v1066, %v1058
    %v1451 = vpack.c.b16 %v1067, %v1059
    %v1452 = vpack.c.b16 %v1068, %v1060
    %v1453 = vpack.c.b16 %v1069, %v1061
    %v1454 = vpack.c.b16 %v1070, %v1062
    %v1455 = vpack.c.b16 %v1071, %v1063
    %v1456 = vpack.c.b16 %v1072, %v1064
    %v1457 = vpack.c.b16 %v1081, %v1073
    %v1458 = vpack.c.b16 %v1082, %v1074
    %v1459 = vpack.c.b16 %v1083, %v1075
    %v1460 = vpack.c.b16 %v1084, %v1076
    %v1461 = vpack.c.b16 %v1085, %v1077
    %v1462 = vpack.c.b16 %v1086, %v1078
    %v1463 = vpack.c.b16 %v1087, %v1079
    %v1464 = vpack.c.b16 %v1088, %v1080
    %v1465 = vpack.c.b16 %v1097, %v1089
    %v1466 = vpack.c.b16 %v1098, %v1090
    %v1467 = vpack.c.b16 %v1099, %v1091
    %v1468 = vpack.c.b16 %v1100, %v1092
    %v1469 = vpack.c.b16 %v1101, %v1093
    %v1470 = vpack.c.b16 %v1102, %v1094
    %v1471 = vpack.c.b16 %v1103, %v1095
    %v1472 = vpack.c.b16 %v1104, %v1096
    %v1473 = vpack.c.b16 %v1113, %v1105
    %v1474 = vpack.c.b16 %v1114, %v1106
    %v1475 = vpack.c.b16 %v1115, %v1107
    %v1476 = vpack.c.b16 %v1116, %v1108
    %v1477 = vpack.c.b16 %v1117, %v1109
    %v1478 = vpack.c.b16 %v1118, %v1110
    %v1479 = vpack.c.b16 %v1119, %v1111
    %v1480 = vpack.c.b16 %v1120, %v1112
    %v1481 = vpack.c.b16 %v1129, %v1121
    %v1482 = vpack.c.b16 %v1130, %v1122
    %v1483 = vpack.c.b16 %v1131, %v1123
    %v1484 = vpack.c.b16 %v1132, %v1124
    %v1485 = vpack.c.b16 %v1133, %v1125
    %v1486 = vpack.c.b16 %v1134, %v1126
    %v1487 = vpack.c.b16 %v1135, %v1127
    %v1488 = vpack.c.b16 %v1136, %v1128
    %v1489 = vpack.c.b16 %v1145, %v1137
    %v1490 = vpack.c.b16 %v1146, %v1138
    %v1491 = vpack.c.b16 %v1147, %v1139
    %v1492 = vpack.c.b16 %v1148, %v1140
    %v1493 = vpack.c.b16 %v1149, %v1141
    %v1494 = vpack.c.b16 %v1150, %v1142
    %v1495 = vpack.c.b16 %v1151, %v1143
    %v1496 = vpack.c.b16 %v1152, %v1144
    %v1497 = vpack.c.b16 %v1161, %v1153
    %v1498 = vpack.c.b16 %v1162, %v1154
    %v1499 = vpack.c.b16 %v1163, %v1155
    %v1500 = vpack.c.b16 %v1164, %v1156
    %v1501 = vpack.c.b16 %v1165, %v1157
    %v1502 = vpack.c.b16 %v1166, %v1158
    %v1503 = vpack.c.b16 %v1167, %v1159
    %v1504 = vpack.c.b16 %v1168, %v1160
    %v1505 = vpack.c.b16 %v1177, %v1169
    %v1506 = vpack.c.b16 %v1178, %v1170
    %v1507 = vpack.c.b16 %v1179, %v1171
    %v1508 = vpack.c.b16 %v1180, %v1172
    %v1509 = vpack.c.b16 %v1181, %v1173
    %v1510 = vpack.c.b16 %v1182, %v1174
    %v1511 = vpack.c.b16 %v1183, %v1175
    %v1512 = vpack.c.b16 %v1184, %v1176
    %v1513 = vpack.c.b16 %v1193, %v1185
    %v1514 = vpack.c.b16 %v1194, %v1186
    %v1515 = vpack.c.b16 %v1195, %v1187
    %v1516 = vpack.c.b16 %v1196, %v1188
    %v1517 = vpack.c.b16 %v1197, %v1189
    %v1518 = vpack.c.b16 %v1198, %v1190
    %v1519 = vpack.c.b16 %v1199, %v1191
    %v1520 = vpack.c.b16 %v1200, %v1192
    %v1521 = vpack.c.b16 %v1209, %v1201
    %v1522 = vpack.c.b16 %v1210, %v1202
    %v1523 = vpack.c.b16 %v1211, %v1203
    %v1524 = vpack.c.b16 %v1212, %v1204
    %v1525 = vpack.c.b16 %v1213, %v1205
    %v1526 = vpack.c.b16 %v1214, %v1206
    %v1527 = vpack.c.b16 %v1215, %v1207
    %v1528 = vpack.c.b16 %v1216, %v1208
    %v1529 = vpack.c.b16 %v1225, %v1217
    %v1530 = vpack.c.b16 %v1226, %v1218
    %v1531 = vpack.c.b16 %v1227, %v1219
    %v1532 = vpack.c.b16 %v1228, %v1220
    %v1533 = vpack.c.b16 %v1229, %v1221
    %v1534 = vpack.c.b16 %v1230, %v1222
    %v1535 = vpack.c.b16 %v1231, %v1223
    %v1536 = vpack.c.b16 %v1232, %v1224
    %v1537 = vpack.c.b16 %v1241, %v1233
    %v1538 = vpack.c.b16 %v1242, %v1234
    %v1539 = vpack.c.b16 %v1243, %v1235
    %v1540 = vpack.c.b16 %v1244, %v1236
    %v1541 = vpack.c.b16 %v1245, %v1237
    %v1542 = vpack.c.b16 %v1246, %v1238
    %v1543 = vpack.c.b16 %v1247, %v1239
    %v1544 = vpack.c.b16 %v1248, %v1240
    %v1545 = vpack.c.b16 %v1257, %v1249
    %v1546 = vpack.c.b16 %v1258, %v1250
    %v1547 = vpack.c.b16 %v1259, %v1251
    %v1548 = vpack.c.b16 %v1260, %v1252
    %v1549 = vpack.c.b16 %v1261, %v1253
    %v1550 = vpack.c.b16 %v1262, %v1254
    %v1551 = vpack.c.b16 %v1263, %v1255
    %v1552 = vpack.c.b16 %v1264, %v1256
    %v1553 = vpack.c.b16 %v1273, %v1265
    %v1554 = vpack.c.b16 %v1274, %v1266
    %v1555 = vpack.c.b16 %v1275, %v1267
    %v1556 = vpack.c.b16 %v1276, %v1268
    %v1557 = vpack.c.b16 %v1277, %v1269
    %v1558 = vpack.c.b16 %v1278, %v1270
    %v1559 = vpack.c.b16 %v1279, %v1271
    %v1560 = vpack.c.b16 %v1280, %v1272
    %v1561 = vpack.c.b16 %v1289, %v1281
    %v1562 = vpack.c.b16 %v1290, %v1282
    %v1563 = vpack.c.b16 %v1291, %v1283
    %v1564 = vpack.c.b16 %v1292, %v1284
    %v1565 = vpack.c.b16 %v1293, %v1285
    %v1566 = vpack.c.b16 %v1294, %v1286
    %v1567 = vpack.c.b16 %v1295, %v1287
    %v1568 = vpack.c.b16 %v1296, %v1288
    %v1569 = vpack.c.b16 %v1305, %v1297
    %v1570 = vpack.c.b16 %v1306, %v1298
    %v1571 = vpack.c.b16 %v1307, %v1299
    %v1572 = vpack.c.b16 %v1308, %v1300
    %v1573 = vpack.c.b16 %v1309, %v1301
    %v1574 = vpack.c.b16 %v1310, %v1302
    %v1575 = vpack.c.b16 %v1311, %v1303
    %v1576 = vpack.c.b16 %v1312, %v1304
    %v1577 = vpack.c.b16 %v1321, %v1313
    %v1578 = vpack.c.b16 %v1322, %v1314
    %v1579 = vpack.c.b16 %v1323, %v1315
    %v1580 = vpack.c.b16 %v1324, %v1316
    %v1581 = vpack.c.b16 %v1325, %v1317
    %v1582 = vpack.c.b16 %v1326, %v1318
    %v1583 = vpack.c.b16 %v1327, %v1319
    %v1584 = vpack.c.b16 %v1328, %v1320
    %1841 = vmatpush.bf16.msra.mxu0 %v1385
    %1842 = vmatpush.bf16.msra.mxu0 %v1377
    %1843 = vmatpush.bf16.msra.mxu0 %v1369
    %1844 = vmatpush.bf16.msra.mxu0 %v1361
    %1845 = vmatpush.bf16.msra.mxu0 %v1353
    %1846 = vmatpush.bf16.msra.mxu0 %v1345
    %1847 = vmatpush.bf16.msra.mxu0 %v1337
    %1848 = vmatpush.bf16.msra.mxu0 %v1329
    %1849 = vmatmul.bf16.gmra.mxu0 %v283
    %v1850 = vpop.f32.mrf.mxu0
    %v1851 = vadd.f32 %v545, %v1850
    %v1852 = vpop.f32.mrf.mxu0
    %1853 = vdwg.mxu0
    %1854 = vmatpush.bf16.msra.mxu0 %v1449
    %1855 = vmatpush.bf16.msra.mxu0 %v1441
    %1856 = vmatpush.bf16.msra.mxu0 %v1433
    %1857 = vmatpush.bf16.msra.mxu0 %v1425
    %1858 = vmatpush.bf16.msra.mxu0 %v1417
    %1859 = vmatpush.bf16.msra.mxu0 %v1409
    %1860 = vmatpush.bf16.msra.mxu0 %v1401
    %1861 = vmatpush.bf16.msra.mxu0 %v1393
    %1862 = vmatmul.bf16.gmra.mxu0 %v284
    %v1863 = vpop.f32.mrf.mxu0
    %v1864 = vadd.f32 %v1851, %v1863
    %v1865 = vpop.f32.mrf.mxu0
    %1866 = vdwg.mxu0
    %1867 = vmatpush.bf16.msra.mxu0 %v1513
    %1868 = vmatpush.bf16.msra.mxu0 %v1505
    %1869 = vmatpush.bf16.msra.mxu0 %v1497
    %1870 = vmatpush.bf16.msra.mxu0 %v1489
    %1871 = vmatpush.bf16.msra.mxu0 %v1481
    %1872 = vmatpush.bf16.msra.mxu0 %v1473
    %1873 = vmatpush.bf16.msra.mxu0 %v1465
    %1874 = vmatpush.bf16.msra.mxu0 %v1457
    %1875 = vmatmul.bf16.gmra.mxu0 %v285
    %v1876 = vpop.f32.mrf.mxu0
    %v1877 = vadd.f32 %v1864, %v1876
    %v1878 = vpop.f32.mrf.mxu0
    %1879 = vdwg.mxu0
    %1880 = vmatpush.bf16.msra.mxu0 %v1577
    %1881 = vmatpush.bf16.msra.mxu0 %v1569
    %1882 = vmatpush.bf16.msra.mxu0 %v1561
    %1883 = vmatpush.bf16.msra.mxu0 %v1553
    %1884 = vmatpush.bf16.msra.mxu0 %v1545
    %1885 = vmatpush.bf16.msra.mxu0 %v1537
    %1886 = vmatpush.bf16.msra.mxu0 %v1529
    %1887 = vmatpush.bf16.msra.mxu0 %v1521
    %1888 = vmatmul.bf16.gmra.mxu0 %v286
    %v1889 = vpop.f32.mrf.mxu0
    %v1890 = vadd.f32 %v1877, %v1889
    %v1891 = vpop.f32.mrf.mxu0
    %1892 = vdwg.mxu0
    %1893 = vmatpush.bf16.msra.mxu0 %v1386
    %1894 = vmatpush.bf16.msra.mxu0 %v1378
    %1895 = vmatpush.bf16.msra.mxu0 %v1370
    %1896 = vmatpush.bf16.msra.mxu0 %v1362
    %1897 = vmatpush.bf16.msra.mxu0 %v1354
    %1898 = vmatpush.bf16.msra.mxu0 %v1346
    %1899 = vmatpush.bf16.msra.mxu0 %v1338
    %1900 = vmatpush.bf16.msra.mxu0 %v1330
    %1901 = vmatmul.bf16.gmra.mxu0 %v283
    %v1902 = vpop.f32.mrf.mxu0
    %v1903 = vadd.f32 %v546, %v1902
    %v1904 = vpop.f32.mrf.mxu0
    %1905 = vdwg.mxu0
    %1906 = vmatpush.bf16.msra.mxu0 %v1450
    %1907 = vmatpush.bf16.msra.mxu0 %v1442
    %1908 = vmatpush.bf16.msra.mxu0 %v1434
    %1909 = vmatpush.bf16.msra.mxu0 %v1426
    %1910 = vmatpush.bf16.msra.mxu0 %v1418
    %1911 = vmatpush.bf16.msra.mxu0 %v1410
    %1912 = vmatpush.bf16.msra.mxu0 %v1402
    %1913 = vmatpush.bf16.msra.mxu0 %v1394
    %1914 = vmatmul.bf16.gmra.mxu0 %v284
    %v1915 = vpop.f32.mrf.mxu0
    %v1916 = vadd.f32 %v1903, %v1915
    %v1917 = vpop.f32.mrf.mxu0
    %1918 = vdwg.mxu0
    %1919 = vmatpush.bf16.msra.mxu0 %v1514
    %1920 = vmatpush.bf16.msra.mxu0 %v1506
    %1921 = vmatpush.bf16.msra.mxu0 %v1498
    %1922 = vmatpush.bf16.msra.mxu0 %v1490
    %1923 = vmatpush.bf16.msra.mxu0 %v1482
    %1924 = vmatpush.bf16.msra.mxu0 %v1474
    %1925 = vmatpush.bf16.msra.mxu0 %v1466
    %1926 = vmatpush.bf16.msra.mxu0 %v1458
    %1927 = vmatmul.bf16.gmra.mxu0 %v285
    %v1928 = vpop.f32.mrf.mxu0
    %v1929 = vadd.f32 %v1916, %v1928
    %v1930 = vpop.f32.mrf.mxu0
    %1931 = vdwg.mxu0
    %1932 = vmatpush.bf16.msra.mxu0 %v1578
    %1933 = vmatpush.bf16.msra.mxu0 %v1570
    %1934 = vmatpush.bf16.msra.mxu0 %v1562
    %1935 = vmatpush.bf16.msra.mxu0 %v1554
    %1936 = vmatpush.bf16.msra.mxu0 %v1546
    %1937 = vmatpush.bf16.msra.mxu0 %v1538
    %1938 = vmatpush.bf16.msra.mxu0 %v1530
    %1939 = vmatpush.bf16.msra.mxu0 %v1522
    %1940 = vmatmul.bf16.gmra.mxu0 %v286
    %v1941 = vpop.f32.mrf.mxu0
    %v1942 = vadd.f32 %v1929, %v1941
    %v1943 = vpop.f32.mrf.mxu0
    %1944 = vdwg.mxu0
    %1945 = vmatpush.bf16.msra.mxu0 %v1387
    %1946 = vmatpush.bf16.msra.mxu0 %v1379
    %1947 = vmatpush.bf16.msra.mxu0 %v1371
    %1948 = vmatpush.bf16.msra.mxu0 %v1363
    %1949 = vmatpush.bf16.msra.mxu0 %v1355
    %1950 = vmatpush.bf16.msra.mxu0 %v1347
    %1951 = vmatpush.bf16.msra.mxu0 %v1339
    %1952 = vmatpush.bf16.msra.mxu0 %v1331
    %1953 = vmatmul.bf16.gmra.mxu0 %v283
    %v1954 = vpop.f32.mrf.mxu0
    %v1955 = vadd.f32 %v547, %v1954
    %v1956 = vpop.f32.mrf.mxu0
    %1957 = vdwg.mxu0
    %1958 = vmatpush.bf16.msra.mxu0 %v1451
    %1959 = vmatpush.bf16.msra.mxu0 %v1443
    %1960 = vmatpush.bf16.msra.mxu0 %v1435
    %1961 = vmatpush.bf16.msra.mxu0 %v1427
    %1962 = vmatpush.bf16.msra.mxu0 %v1419
    %1963 = vmatpush.bf16.msra.mxu0 %v1411
    %1964 = vmatpush.bf16.msra.mxu0 %v1403
    %1965 = vmatpush.bf16.msra.mxu0 %v1395
    %1966 = vmatmul.bf16.gmra.mxu0 %v284
    %v1967 = vpop.f32.mrf.mxu0
    %v1968 = vadd.f32 %v1955, %v1967
    %v1969 = vpop.f32.mrf.mxu0
    %1970 = vdwg.mxu0
    %1971 = vmatpush.bf16.msra.mxu0 %v1515
    %1972 = vmatpush.bf16.msra.mxu0 %v1507
    %1973 = vmatpush.bf16.msra.mxu0 %v1499
    %1974 = vmatpush.bf16.msra.mxu0 %v1491
    %1975 = vmatpush.bf16.msra.mxu0 %v1483
    %1976 = vmatpush.bf16.msra.mxu0 %v1475
    %1977 = vmatpush.bf16.msra.mxu0 %v1467
    %1978 = vmatpush.bf16.msra.mxu0 %v1459
    %1979 = vmatmul.bf16.gmra.mxu0 %v285
    %v1980 = vpop.f32.mrf.mxu0
    %v1981 = vadd.f32 %v1968, %v1980
    %v1982 = vpop.f32.mrf.mxu0
    %1983 = vdwg.mxu0
    %1984 = vmatpush.bf16.msra.mxu0 %v1579
    %1985 = vmatpush.bf16.msra.mxu0 %v1571
    %1986 = vmatpush.bf16.msra.mxu0 %v1563
    %1987 = vmatpush.bf16.msra.mxu0 %v1555
    %1988 = vmatpush.bf16.msra.mxu0 %v1547
    %1989 = vmatpush.bf16.msra.mxu0 %v1539
    %1990 = vmatpush.bf16.msra.mxu0 %v1531
    %1991 = vmatpush.bf16.msra.mxu0 %v1523
    %1992 = vmatmul.bf16.gmra.mxu0 %v286
    %v1993 = vpop.f32.mrf.mxu0
    %v1994 = vadd.f32 %v1981, %v1993
    %v1995 = vpop.f32.mrf.mxu0
    %1996 = vdwg.mxu0
    %1997 = vmatpush.bf16.msra.mxu0 %v1388
    %1998 = vmatpush.bf16.msra.mxu0 %v1380
    %1999 = vmatpush.bf16.msra.mxu0 %v1372
    %2000 = vmatpush.bf16.msra.mxu0 %v1364
    %2001 = vmatpush.bf16.msra.mxu0 %v1356
    %2002 = vmatpush.bf16.msra.mxu0 %v1348
    %2003 = vmatpush.bf16.msra.mxu0 %v1340
    %2004 = vmatpush.bf16.msra.mxu0 %v1332
    %2005 = vmatmul.bf16.gmra.mxu0 %v283
    %v2006 = vpop.f32.mrf.mxu0
    %v2007 = vadd.f32 %v548, %v2006
    %v2008 = vpop.f32.mrf.mxu0
    %2009 = vdwg.mxu0
    %2010 = vmatpush.bf16.msra.mxu0 %v1452
    %2011 = vmatpush.bf16.msra.mxu0 %v1444
    %2012 = vmatpush.bf16.msra.mxu0 %v1436
    %2013 = vmatpush.bf16.msra.mxu0 %v1428
    %2014 = vmatpush.bf16.msra.mxu0 %v1420
    %2015 = vmatpush.bf16.msra.mxu0 %v1412
    %2016 = vmatpush.bf16.msra.mxu0 %v1404
    %2017 = vmatpush.bf16.msra.mxu0 %v1396
    %2018 = vmatmul.bf16.gmra.mxu0 %v284
    %v2019 = vpop.f32.mrf.mxu0
    %v2020 = vadd.f32 %v2007, %v2019
    %v2021 = vpop.f32.mrf.mxu0
    %2022 = vdwg.mxu0
    %2023 = vmatpush.bf16.msra.mxu0 %v1516
    %2024 = vmatpush.bf16.msra.mxu0 %v1508
    %2025 = vmatpush.bf16.msra.mxu0 %v1500
    %2026 = vmatpush.bf16.msra.mxu0 %v1492
    %2027 = vmatpush.bf16.msra.mxu0 %v1484
    %2028 = vmatpush.bf16.msra.mxu0 %v1476
    %2029 = vmatpush.bf16.msra.mxu0 %v1468
    %2030 = vmatpush.bf16.msra.mxu0 %v1460
    %2031 = vmatmul.bf16.gmra.mxu0 %v285
    %v2032 = vpop.f32.mrf.mxu0
    %v2033 = vadd.f32 %v2020, %v2032
    %v2034 = vpop.f32.mrf.mxu0
    %2035 = vdwg.mxu0
    %2036 = vmatpush.bf16.msra.mxu0 %v1580
    %2037 = vmatpush.bf16.msra.mxu0 %v1572
    %2038 = vmatpush.bf16.msra.mxu0 %v1564
    %2039 = vmatpush.bf16.msra.mxu0 %v1556
    %2040 = vmatpush.bf16.msra.mxu0 %v1548
    %2041 = vmatpush.bf16.msra.mxu0 %v1540
    %2042 = vmatpush.bf16.msra.mxu0 %v1532
    %2043 = vmatpush.bf16.msra.mxu0 %v1524
    %2044 = vmatmul.bf16.gmra.mxu0 %v286
    %v2045 = vpop.f32.mrf.mxu0
    %v2046 = vadd.f32 %v2033, %v2045
    %v2047 = vpop.f32.mrf.mxu0
    %2048 = vdwg.mxu0
    %2049 = vmatpush.bf16.msra.mxu0 %v1389
    %2050 = vmatpush.bf16.msra.mxu0 %v1381
    %2051 = vmatpush.bf16.msra.mxu0 %v1373
    %2052 = vmatpush.bf16.msra.mxu0 %v1365
    %2053 = vmatpush.bf16.msra.mxu0 %v1357
    %2054 = vmatpush.bf16.msra.mxu0 %v1349
    %2055 = vmatpush.bf16.msra.mxu0 %v1341
    %2056 = vmatpush.bf16.msra.mxu0 %v1333
    %2057 = vmatmul.bf16.gmra.mxu0 %v283
    %v2058 = vpop.f32.mrf.mxu0
    %v2059 = vadd.f32 %v549, %v2058
    %v2060 = vpop.f32.mrf.mxu0
    %2061 = vdwg.mxu0
    %2062 = vmatpush.bf16.msra.mxu0 %v1453
    %2063 = vmatpush.bf16.msra.mxu0 %v1445
    %2064 = vmatpush.bf16.msra.mxu0 %v1437
    %2065 = vmatpush.bf16.msra.mxu0 %v1429
    %2066 = vmatpush.bf16.msra.mxu0 %v1421
    %2067 = vmatpush.bf16.msra.mxu0 %v1413
    %2068 = vmatpush.bf16.msra.mxu0 %v1405
    %2069 = vmatpush.bf16.msra.mxu0 %v1397
    %2070 = vmatmul.bf16.gmra.mxu0 %v284
    %v2071 = vpop.f32.mrf.mxu0
    %v2072 = vadd.f32 %v2059, %v2071
    %v2073 = vpop.f32.mrf.mxu0
    %2074 = vdwg.mxu0
    %2075 = vmatpush.bf16.msra.mxu0 %v1517
    %2076 = vmatpush.bf16.msra.mxu0 %v1509
    %2077 = vmatpush.bf16.msra.mxu0 %v1501
    %2078 = vmatpush.bf16.msra.mxu0 %v1493
    %2079 = vmatpush.bf16.msra.mxu0 %v1485
    %2080 = vmatpush.bf16.msra.mxu0 %v1477
    %2081 = vmatpush.bf16.msra.mxu0 %v1469
    %2082 = vmatpush.bf16.msra.mxu0 %v1461
    %2083 = vmatmul.bf16.gmra.mxu0 %v285
    %v2084 = vpop.f32.mrf.mxu0
    %v2085 = vadd.f32 %v2072, %v2084
    %v2086 = vpop.f32.mrf.mxu0
    %2087 = vdwg.mxu0
    %2088 = vmatpush.bf16.msra.mxu0 %v1581
    %2089 = vmatpush.bf16.msra.mxu0 %v1573
    %2090 = vmatpush.bf16.msra.mxu0 %v1565
    %2091 = vmatpush.bf16.msra.mxu0 %v1557
    %2092 = vmatpush.bf16.msra.mxu0 %v1549
    %2093 = vmatpush.bf16.msra.mxu0 %v1541
    %2094 = vmatpush.bf16.msra.mxu0 %v1533
    %2095 = vmatpush.bf16.msra.mxu0 %v1525
    %2096 = vmatmul.bf16.gmra.mxu0 %v286
    %v2097 = vpop.f32.mrf.mxu0
    %v2098 = vadd.f32 %v2085, %v2097
    %v2099 = vpop.f32.mrf.mxu0
    %2100 = vdwg.mxu0
    %2101 = vmatpush.bf16.msra.mxu0 %v1390
    %2102 = vmatpush.bf16.msra.mxu0 %v1382
    %2103 = vmatpush.bf16.msra.mxu0 %v1374
    %2104 = vmatpush.bf16.msra.mxu0 %v1366
    %2105 = vmatpush.bf16.msra.mxu0 %v1358
    %2106 = vmatpush.bf16.msra.mxu0 %v1350
    %2107 = vmatpush.bf16.msra.mxu0 %v1342
    %2108 = vmatpush.bf16.msra.mxu0 %v1334
    %2109 = vmatmul.bf16.gmra.mxu0 %v283
    %v2110 = vpop.f32.mrf.mxu0
    %v2111 = vadd.f32 %v550, %v2110
    %v2112 = vpop.f32.mrf.mxu0
    %2113 = vdwg.mxu0
    %2114 = vmatpush.bf16.msra.mxu0 %v1454
    %2115 = vmatpush.bf16.msra.mxu0 %v1446
    %2116 = vmatpush.bf16.msra.mxu0 %v1438
    %2117 = vmatpush.bf16.msra.mxu0 %v1430
    %2118 = vmatpush.bf16.msra.mxu0 %v1422
    %2119 = vmatpush.bf16.msra.mxu0 %v1414
    %2120 = vmatpush.bf16.msra.mxu0 %v1406
    %2121 = vmatpush.bf16.msra.mxu0 %v1398
    %2122 = vmatmul.bf16.gmra.mxu0 %v284
    %v2123 = vpop.f32.mrf.mxu0
    %v2124 = vadd.f32 %v2111, %v2123
    %v2125 = vpop.f32.mrf.mxu0
    %2126 = vdwg.mxu0
    %2127 = vmatpush.bf16.msra.mxu0 %v1518
    %2128 = vmatpush.bf16.msra.mxu0 %v1510
    %2129 = vmatpush.bf16.msra.mxu0 %v1502
    %2130 = vmatpush.bf16.msra.mxu0 %v1494
    %2131 = vmatpush.bf16.msra.mxu0 %v1486
    %2132 = vmatpush.bf16.msra.mxu0 %v1478
    %2133 = vmatpush.bf16.msra.mxu0 %v1470
    %2134 = vmatpush.bf16.msra.mxu0 %v1462
    %2135 = vmatmul.bf16.gmra.mxu0 %v285
    %v2136 = vpop.f32.mrf.mxu0
    %v2137 = vadd.f32 %v2124, %v2136
    %v2138 = vpop.f32.mrf.mxu0
    %2139 = vdwg.mxu0
    %2140 = vmatpush.bf16.msra.mxu0 %v1582
    %2141 = vmatpush.bf16.msra.mxu0 %v1574
    %2142 = vmatpush.bf16.msra.mxu0 %v1566
    %2143 = vmatpush.bf16.msra.mxu0 %v1558
    %2144 = vmatpush.bf16.msra.mxu0 %v1550
    %2145 = vmatpush.bf16.msra.mxu0 %v1542
    %2146 = vmatpush.bf16.msra.mxu0 %v1534
    %2147 = vmatpush.bf16.msra.mxu0 %v1526
    %2148 = vmatmul.bf16.gmra.mxu0 %v286
    %v2149 = vpop.f32.mrf.mxu0
    %v2150 = vadd.f32 %v2137, %v2149
    %v2151 = vpop.f32.mrf.mxu0
    %2152 = vdwg.mxu0
    %2153 = vmatpush.bf16.msra.mxu0 %v1391
    %2154 = vmatpush.bf16.msra.mxu0 %v1383
    %2155 = vmatpush.bf16.msra.mxu0 %v1375
    %2156 = vmatpush.bf16.msra.mxu0 %v1367
    %2157 = vmatpush.bf16.msra.mxu0 %v1359
    %2158 = vmatpush.bf16.msra.mxu0 %v1351
    %2159 = vmatpush.bf16.msra.mxu0 %v1343
    %2160 = vmatpush.bf16.msra.mxu0 %v1335
    %2161 = vmatmul.bf16.gmra.mxu0 %v283
    %v2162 = vpop.f32.mrf.mxu0
    %v2163 = vadd.f32 %v551, %v2162
    %v2164 = vpop.f32.mrf.mxu0
    %2165 = vdwg.mxu0
    %2166 = vmatpush.bf16.msra.mxu0 %v1455
    %2167 = vmatpush.bf16.msra.mxu0 %v1447
    %2168 = vmatpush.bf16.msra.mxu0 %v1439
    %2169 = vmatpush.bf16.msra.mxu0 %v1431
    %2170 = vmatpush.bf16.msra.mxu0 %v1423
    %2171 = vmatpush.bf16.msra.mxu0 %v1415
    %2172 = vmatpush.bf16.msra.mxu0 %v1407
    %2173 = vmatpush.bf16.msra.mxu0 %v1399
    %2174 = vmatmul.bf16.gmra.mxu0 %v284
    %v2175 = vpop.f32.mrf.mxu0
    %v2176 = vadd.f32 %v2163, %v2175
    %v2177 = vpop.f32.mrf.mxu0
    %2178 = vdwg.mxu0
    %2179 = vmatpush.bf16.msra.mxu0 %v1519
    %2180 = vmatpush.bf16.msra.mxu0 %v1511
    %2181 = vmatpush.bf16.msra.mxu0 %v1503
    %2182 = vmatpush.bf16.msra.mxu0 %v1495
    %2183 = vmatpush.bf16.msra.mxu0 %v1487
    %2184 = vmatpush.bf16.msra.mxu0 %v1479
    %2185 = vmatpush.bf16.msra.mxu0 %v1471
    %2186 = vmatpush.bf16.msra.mxu0 %v1463
    %2187 = vmatmul.bf16.gmra.mxu0 %v285
    %v2188 = vpop.f32.mrf.mxu0
    %v2189 = vadd.f32 %v2176, %v2188
    %v2190 = vpop.f32.mrf.mxu0
    %2191 = vdwg.mxu0
    %2192 = vmatpush.bf16.msra.mxu0 %v1583
    %2193 = vmatpush.bf16.msra.mxu0 %v1575
    %2194 = vmatpush.bf16.msra.mxu0 %v1567
    %2195 = vmatpush.bf16.msra.mxu0 %v1559
    %2196 = vmatpush.bf16.msra.mxu0 %v1551
    %2197 = vmatpush.bf16.msra.mxu0 %v1543
    %2198 = vmatpush.bf16.msra.mxu0 %v1535
    %2199 = vmatpush.bf16.msra.mxu0 %v1527
    %2200 = vmatmul.bf16.gmra.mxu0 %v286
    %v2201 = vpop.f32.mrf.mxu0
    %v2202 = vadd.f32 %v2189, %v2201
    %v2203 = vpop.f32.mrf.mxu0
    %2204 = vdwg.mxu0
    %2205 = vmatpush.bf16.msra.mxu0 %v1392
    %2206 = vmatpush.bf16.msra.mxu0 %v1384
    %2207 = vmatpush.bf16.msra.mxu0 %v1376
    %2208 = vmatpush.bf16.msra.mxu0 %v1368
    %2209 = vmatpush.bf16.msra.mxu0 %v1360
    %2210 = vmatpush.bf16.msra.mxu0 %v1352
    %2211 = vmatpush.bf16.msra.mxu0 %v1344
    %2212 = vmatpush.bf16.msra.mxu0 %v1336
    %2213 = vmatmul.bf16.gmra.mxu0 %v283
    %v2214 = vpop.f32.mrf.mxu0
    %v2215 = vadd.f32 %v552, %v2214
    %v2216 = vpop.f32.mrf.mxu0
    %2217 = vdwg.mxu0
    %2218 = vmatpush.bf16.msra.mxu0 %v1456
    %2219 = vmatpush.bf16.msra.mxu0 %v1448
    %2220 = vmatpush.bf16.msra.mxu0 %v1440
    %2221 = vmatpush.bf16.msra.mxu0 %v1432
    %2222 = vmatpush.bf16.msra.mxu0 %v1424
    %2223 = vmatpush.bf16.msra.mxu0 %v1416
    %2224 = vmatpush.bf16.msra.mxu0 %v1408
    %2225 = vmatpush.bf16.msra.mxu0 %v1400
    %2226 = vmatmul.bf16.gmra.mxu0 %v284
    %v2227 = vpop.f32.mrf.mxu0
    %v2228 = vadd.f32 %v2215, %v2227
    %v2229 = vpop.f32.mrf.mxu0
    %2230 = vdwg.mxu0
    %2231 = vmatpush.bf16.msra.mxu0 %v1520
    %2232 = vmatpush.bf16.msra.mxu0 %v1512
    %2233 = vmatpush.bf16.msra.mxu0 %v1504
    %2234 = vmatpush.bf16.msra.mxu0 %v1496
    %2235 = vmatpush.bf16.msra.mxu0 %v1488
    %2236 = vmatpush.bf16.msra.mxu0 %v1480
    %2237 = vmatpush.bf16.msra.mxu0 %v1472
    %2238 = vmatpush.bf16.msra.mxu0 %v1464
    %2239 = vmatmul.bf16.gmra.mxu0 %v285
    %v2240 = vpop.f32.mrf.mxu0
    %v2241 = vadd.f32 %v2228, %v2240
    %v2242 = vpop.f32.mrf.mxu0
    %2243 = vdwg.mxu0
    %2244 = vmatpush.bf16.msra.mxu0 %v1584
    %2245 = vmatpush.bf16.msra.mxu0 %v1576
    %2246 = vmatpush.bf16.msra.mxu0 %v1568
    %2247 = vmatpush.bf16.msra.mxu0 %v1560
    %2248 = vmatpush.bf16.msra.mxu0 %v1552
    %2249 = vmatpush.bf16.msra.mxu0 %v1544
    %2250 = vmatpush.bf16.msra.mxu0 %v1536
    %2251 = vmatpush.bf16.msra.mxu0 %v1528
    %2252 = vmatmul.bf16.gmra.mxu0 %v286
    %v2253 = vpop.f32.mrf.mxu0
    %v2254 = vadd.f32 %v2241, %v2253
    %v2255 = vpop.f32.mrf.mxu0
    %2256 = vdwg.mxu0
    %v2257 = vmax.f32 %v1890, 0.0
    %v2258 = vmax.f32 %v1942, 0.0
    %v2259 = vmax.f32 %v1994, 0.0
    %v2260 = vmax.f32 %v2046, 0.0
    %v2261 = vmax.f32 %v2098, 0.0
    %v2262 = vmax.f32 %v2150, 0.0
    %v2263 = vmax.f32 %v2202, 0.0
    %v2264 = vmax.f32 %v2254, 0.0
    %v2265 = vpack.c.bf16 %v2257, %v2257
    %v2266 = vpack.c.bf16 %v2258, %v2258
    %v2267 = vpack.c.bf16 %v2259, %v2259
    %v2268 = vpack.c.bf16 %v2260, %v2260
    %v2269 = vpack.c.bf16 %v2261, %v2261
    %v2270 = vpack.c.bf16 %v2262, %v2262
    %v2271 = vpack.c.bf16 %v2263, %v2263
    %v2272 = vpack.c.bf16 %v2264, %v2264
    %v2273 = vld [vmem:[#allocation11] sm:$0xf]
    %v2274 = vld [vmem:[#allocation11 + $0x4] sm:$0xf]
    %v2275 = vld [vmem:[#allocation11 + $0x8] sm:$0xf]
    %v2276 = vld [vmem:[#allocation11 + $0xc] sm:$0xf]
    %v2277 = vld [vmem:[#allocation11 + $0x10] sm:$0xf]
    %v2278 = vld [vmem:[#allocation11 + $0x14] sm:$0xf]
    %v2279 = vld [vmem:[#allocation11 + $0x18] sm:$0xf]
    %v2280 = vld [vmem:[#allocation11 + $0x1c] sm:$0xf]
    %v2281 = vld [vmem:[#allocation11 + $0x20] sm:$0xf]
    %v2282 = vld [vmem:[#allocation11 + $0x24] sm:$0xf]
    %v2283 = vld [vmem:[#allocation11 + $0x28] sm:$0xf]
    %v2284 = vld [vmem:[#allocation11 + $0x2c] sm:$0xf]
    %v2285 = vld [vmem:[#allocation11 + $0x30] sm:$0xf]
    %v2286 = vld [vmem:[#allocation11 + $0x34] sm:$0xf]
    %v2287 = vld [vmem:[#allocation11 + $0x38] sm:$0xf]
    %v2288 = vld [vmem:[#allocation11 + $0x3c] sm:$0xf]
    %v2289 = vld [vmem:[#allocation11 + $0x40] sm:$0xf]
    %v2290 = vld [vmem:[#allocation11 + $0x44] sm:$0xf]
    %v2291 = vld [vmem:[#allocation11 + $0x48] sm:$0xf]
    %v2292 = vld [vmem:[#allocation11 + $0x4c] sm:$0xf]
    %v2293 = vld [vmem:[#allocation11 + $0x50] sm:$0xf]
    %v2294 = vld [vmem:[#allocation11 + $0x54] sm:$0xf]
    %v2295 = vld [vmem:[#allocation11 + $0x58] sm:$0xf]
    %v2296 = vld [vmem:[#allocation11 + $0x5c] sm:$0xf]
    %v2297 = vld [vmem:[#allocation11 + $0x60] sm:$0xf]
    %v2298 = vld [vmem:[#allocation11 + $0x64] sm:$0xf]
    %v2299 = vld [vmem:[#allocation11 + $0x68] sm:$0xf]
    %v2300 = vld [vmem:[#allocation11 + $0x6c] sm:$0xf]
    %v2301 = vld [vmem:[#allocation11 + $0x70] sm:$0xf]
    %v2302 = vld [vmem:[#allocation11 + $0x74] sm:$0xf]
    %v2303 = vld [vmem:[#allocation11 + $0x78] sm:$0xf]
    %v2304 = vld [vmem:[#allocation11 + $0x7c] sm:$0xf]
    %v2305 = vld [vmem:[#allocation11 + $0x80] sm:$0xf]
    %v2306 = vld [vmem:[#allocation11 + $0x84] sm:$0xf]
    %v2307 = vld [vmem:[#allocation11 + $0x88] sm:$0xf]
    %v2308 = vld [vmem:[#allocation11 + $0x8c] sm:$0xf]
    %v2309 = vld [vmem:[#allocation11 + $0x90] sm:$0xf]
    %v2310 = vld [vmem:[#allocation11 + $0x94] sm:$0xf]
    %v2311 = vld [vmem:[#allocation11 + $0x98] sm:$0xf]
    %v2312 = vld [vmem:[#allocation11 + $0x9c] sm:$0xf]
    %v2313 = vld [vmem:[#allocation11 + $0xa0] sm:$0xf]
    %v2314 = vld [vmem:[#allocation11 + $0xa4] sm:$0xf]
    %v2315 = vld [vmem:[#allocation11 + $0xa8] sm:$0xf]
    %v2316 = vld [vmem:[#allocation11 + $0xac] sm:$0xf]
    %v2317 = vld [vmem:[#allocation11 + $0xb0] sm:$0xf]
    %v2318 = vld [vmem:[#allocation11 + $0xb4] sm:$0xf]
    %v2319 = vld [vmem:[#allocation11 + $0xb8] sm:$0xf]
    %v2320 = vld [vmem:[#allocation11 + $0xbc] sm:$0xf]
    %v2321 = vld [vmem:[#allocation11 + $0xc0] sm:$0xf]
    %v2322 = vld [vmem:[#allocation11 + $0xc4] sm:$0xf]
    %v2323 = vld [vmem:[#allocation11 + $0xc8] sm:$0xf]
    %v2324 = vld [vmem:[#allocation11 + $0xcc] sm:$0xf]
    %v2325 = vld [vmem:[#allocation11 + $0xd0] sm:$0xf]
    %v2326 = vld [vmem:[#allocation11 + $0xd4] sm:$0xf]
    %v2327 = vld [vmem:[#allocation11 + $0xd8] sm:$0xf]
    %v2328 = vld [vmem:[#allocation11 + $0xdc] sm:$0xf]
    %v2329 = vld [vmem:[#allocation11 + $0xe0] sm:$0xf]
    %v2330 = vld [vmem:[#allocation11 + $0xe4] sm:$0xf]
    %v2331 = vld [vmem:[#allocation11 + $0xe8] sm:$0xf]
    %v2332 = vld [vmem:[#allocation11 + $0xec] sm:$0xf]
    %v2333 = vld [vmem:[#allocation11 + $0xf0] sm:$0xf]
    %v2334 = vld [vmem:[#allocation11 + $0xf4] sm:$0xf]
    %v2335 = vld [vmem:[#allocation11 + $0xf8] sm:$0xf]
    %v2336 = vld [vmem:[#allocation11 + $0xfc] sm:$0xf]
    %v2337 = vld [vmem:[#allocation11 + $0x100] sm:$0xf]
    %v2338 = vld [vmem:[#allocation11 + $0x104] sm:$0xf]
    %v2339 = vld [vmem:[#allocation11 + $0x108] sm:$0xf]
    %v2340 = vld [vmem:[#allocation11 + $0x10c] sm:$0xf]
    %v2341 = vld [vmem:[#allocation11 + $0x110] sm:$0xf]
    %v2342 = vld [vmem:[#allocation11 + $0x114] sm:$0xf]
    %v2343 = vld [vmem:[#allocation11 + $0x118] sm:$0xf]
    %v2344 = vld [vmem:[#allocation11 + $0x11c] sm:$0xf]
    %v2345 = vld [vmem:[#allocation11 + $0x120] sm:$0xf]
    %v2346 = vld [vmem:[#allocation11 + $0x124] sm:$0xf]
    %v2347 = vld [vmem:[#allocation11 + $0x128] sm:$0xf]
    %v2348 = vld [vmem:[#allocation11 + $0x12c] sm:$0xf]
    %v2349 = vld [vmem:[#allocation11 + $0x130] sm:$0xf]
    %v2350 = vld [vmem:[#allocation11 + $0x134] sm:$0xf]
    %v2351 = vld [vmem:[#allocation11 + $0x138] sm:$0xf]
    %v2352 = vld [vmem:[#allocation11 + $0x13c] sm:$0xf]
    %v2353 = vld [vmem:[#allocation11 + $0x140] sm:$0xf]
    %v2354 = vld [vmem:[#allocation11 + $0x144] sm:$0xf]
    %v2355 = vld [vmem:[#allocation11 + $0x148] sm:$0xf]
    %v2356 = vld [vmem:[#allocation11 + $0x14c] sm:$0xf]
    %v2357 = vld [vmem:[#allocation11 + $0x150] sm:$0xf]
    %v2358 = vld [vmem:[#allocation11 + $0x154] sm:$0xf]
    %v2359 = vld [vmem:[#allocation11 + $0x158] sm:$0xf]
    %v2360 = vld [vmem:[#allocation11 + $0x15c] sm:$0xf]
    %v2361 = vld [vmem:[#allocation11 + $0x160] sm:$0xf]
    %v2362 = vld [vmem:[#allocation11 + $0x164] sm:$0xf]
    %v2363 = vld [vmem:[#allocation11 + $0x168] sm:$0xf]
    %v2364 = vld [vmem:[#allocation11 + $0x16c] sm:$0xf]
    %v2365 = vld [vmem:[#allocation11 + $0x170] sm:$0xf]
    %v2366 = vld [vmem:[#allocation11 + $0x174] sm:$0xf]
    %v2367 = vld [vmem:[#allocation11 + $0x178] sm:$0xf]
    %v2368 = vld [vmem:[#allocation11 + $0x17c] sm:$0xf]
    %v2369 = vld [vmem:[#allocation11 + $0x180] sm:$0xf]
    %v2370 = vld [vmem:[#allocation11 + $0x184] sm:$0xf]
    %v2371 = vld [vmem:[#allocation11 + $0x188] sm:$0xf]
    %v2372 = vld [vmem:[#allocation11 + $0x18c] sm:$0xf]
    %v2373 = vld [vmem:[#allocation11 + $0x190] sm:$0xf]
    %v2374 = vld [vmem:[#allocation11 + $0x194] sm:$0xf]
    %v2375 = vld [vmem:[#allocation11 + $0x198] sm:$0xf]
    %v2376 = vld [vmem:[#allocation11 + $0x19c] sm:$0xf]
    %v2377 = vld [vmem:[#allocation11 + $0x1a0] sm:$0xf]
    %v2378 = vld [vmem:[#allocation11 + $0x1a4] sm:$0xf]
    %v2379 = vld [vmem:[#allocation11 + $0x1a8] sm:$0xf]
    %v2380 = vld [vmem:[#allocation11 + $0x1ac] sm:$0xf]
    %v2381 = vld [vmem:[#allocation11 + $0x1b0] sm:$0xf]
    %v2382 = vld [vmem:[#allocation11 + $0x1b4] sm:$0xf]
    %v2383 = vld [vmem:[#allocation11 + $0x1b8] sm:$0xf]
    %v2384 = vld [vmem:[#allocation11 + $0x1bc] sm:$0xf]
    %v2385 = vld [vmem:[#allocation11 + $0x1c0] sm:$0xf]
    %v2386 = vld [vmem:[#allocation11 + $0x1c4] sm:$0xf]
    %v2387 = vld [vmem:[#allocation11 + $0x1c8] sm:$0xf]
    %v2388 = vld [vmem:[#allocation11 + $0x1cc] sm:$0xf]
    %v2389 = vld [vmem:[#allocation11 + $0x1d0] sm:$0xf]
    %v2390 = vld [vmem:[#allocation11 + $0x1d4] sm:$0xf]
    %v2391 = vld [vmem:[#allocation11 + $0x1d8] sm:$0xf]
    %v2392 = vld [vmem:[#allocation11 + $0x1dc] sm:$0xf]
    %v2393 = vld [vmem:[#allocation11 + $0x1e0] sm:$0xf]
    %v2394 = vld [vmem:[#allocation11 + $0x1e4] sm:$0xf]
    %v2395 = vld [vmem:[#allocation11 + $0x1e8] sm:$0xf]
    %v2396 = vld [vmem:[#allocation11 + $0x1ec] sm:$0xf]
    %v2397 = vld [vmem:[#allocation11 + $0x1f0] sm:$0xf]
    %v2398 = vld [vmem:[#allocation11 + $0x1f4] sm:$0xf]
    %v2399 = vld [vmem:[#allocation11 + $0x1f8] sm:$0xf]
    %v2400 = vld [vmem:[#allocation11 + $0x1fc] sm:$0xf]
    %v2401 = vld [vmem:[%s6] sm:$0x1]
    %v2403 = vperm.slane %v2401, 0
    %v2533 = vunpack.c.l.b16 %v2273
    %v2534 = vunpack.c.l.b16 %v2274
    %v2535 = vunpack.c.l.b16 %v2275
    %v2536 = vunpack.c.l.b16 %v2276
    %v2537 = vunpack.c.l.b16 %v2277
    %v2538 = vunpack.c.l.b16 %v2278
    %v2539 = vunpack.c.l.b16 %v2279
    %v2540 = vunpack.c.l.b16 %v2280
    %v2541 = vunpack.c.l.b16 %v2281
    %v2542 = vunpack.c.l.b16 %v2282
    %v2543 = vunpack.c.l.b16 %v2283
    %v2544 = vunpack.c.l.b16 %v2284
    %v2545 = vunpack.c.l.b16 %v2285
    %v2546 = vunpack.c.l.b16 %v2286
    %v2547 = vunpack.c.l.b16 %v2287
    %v2548 = vunpack.c.l.b16 %v2288
    %v2549 = vunpack.c.l.b16 %v2289
    %v2550 = vunpack.c.l.b16 %v2290
    %v2551 = vunpack.c.l.b16 %v2291
    %v2552 = vunpack.c.l.b16 %v2292
    %v2553 = vunpack.c.l.b16 %v2293
    %v2554 = vunpack.c.l.b16 %v2294
    %v2555 = vunpack.c.l.b16 %v2295
    %v2556 = vunpack.c.l.b16 %v2296
    %v2557 = vunpack.c.l.b16 %v2297
    %v2558 = vunpack.c.l.b16 %v2298
    %v2559 = vunpack.c.l.b16 %v2299
    %v2560 = vunpack.c.l.b16 %v2300
    %v2561 = vunpack.c.l.b16 %v2301
    %v2562 = vunpack.c.l.b16 %v2302
    %v2563 = vunpack.c.l.b16 %v2303
    %v2564 = vunpack.c.l.b16 %v2304
    %v2565 = vunpack.c.l.b16 %v2305
    %v2566 = vunpack.c.l.b16 %v2306
    %v2567 = vunpack.c.l.b16 %v2307
    %v2568 = vunpack.c.l.b16 %v2308
    %v2569 = vunpack.c.l.b16 %v2309
    %v2570 = vunpack.c.l.b16 %v2310
    %v2571 = vunpack.c.l.b16 %v2311
    %v2572 = vunpack.c.l.b16 %v2312
    %v2573 = vunpack.c.l.b16 %v2313
    %v2574 = vunpack.c.l.b16 %v2314
    %v2575 = vunpack.c.l.b16 %v2315
    %v2576 = vunpack.c.l.b16 %v2316
    %v2577 = vunpack.c.l.b16 %v2317
    %v2578 = vunpack.c.l.b16 %v2318
    %v2579 = vunpack.c.l.b16 %v2319
    %v2580 = vunpack.c.l.b16 %v2320
    %v2581 = vunpack.c.l.b16 %v2321
    %v2582 = vunpack.c.l.b16 %v2322
    %v2583 = vunpack.c.l.b16 %v2323
    %v2584 = vunpack.c.l.b16 %v2324
    %v2585 = vunpack.c.l.b16 %v2325
    %v2586 = vunpack.c.l.b16 %v2326
    %v2587 = vunpack.c.l.b16 %v2327
    %v2588 = vunpack.c.l.b16 %v2328
    %v2589 = vunpack.c.l.b16 %v2329
    %v2590 = vunpack.c.l.b16 %v2330
    %v2591 = vunpack.c.l.b16 %v2331
    %v2592 = vunpack.c.l.b16 %v2332
    %v2593 = vunpack.c.l.b16 %v2333
    %v2594 = vunpack.c.l.b16 %v2334
    %v2595 = vunpack.c.l.b16 %v2335
    %v2596 = vunpack.c.l.b16 %v2336
    %v2597 = vunpack.c.l.b16 %v2337
    %v2598 = vunpack.c.l.b16 %v2338
    %v2599 = vunpack.c.l.b16 %v2339
    %v2600 = vunpack.c.l.b16 %v2340
    %v2601 = vunpack.c.l.b16 %v2341
    %v2602 = vunpack.c.l.b16 %v2342
    %v2603 = vunpack.c.l.b16 %v2343
    %v2604 = vunpack.c.l.b16 %v2344
    %v2605 = vunpack.c.l.b16 %v2345
    %v2606 = vunpack.c.l.b16 %v2346
    %v2607 = vunpack.c.l.b16 %v2347
    %v2608 = vunpack.c.l.b16 %v2348
    %v2609 = vunpack.c.l.b16 %v2349
    %v2610 = vunpack.c.l.b16 %v2350
    %v2611 = vunpack.c.l.b16 %v2351
    %v2612 = vunpack.c.l.b16 %v2352
    %v2613 = vunpack.c.l.b16 %v2353
    %v2614 = vunpack.c.l.b16 %v2354
    %v2615 = vunpack.c.l.b16 %v2355
    %v2616 = vunpack.c.l.b16 %v2356
    %v2617 = vunpack.c.l.b16 %v2357
    %v2618 = vunpack.c.l.b16 %v2358
    %v2619 = vunpack.c.l.b16 %v2359
    %v2620 = vunpack.c.l.b16 %v2360
    %v2621 = vunpack.c.l.b16 %v2361
    %v2622 = vunpack.c.l.b16 %v2362
    %v2623 = vunpack.c.l.b16 %v2363
    %v2624 = vunpack.c.l.b16 %v2364
    %v2625 = vunpack.c.l.b16 %v2365
    %v2626 = vunpack.c.l.b16 %v2366
    %v2627 = vunpack.c.l.b16 %v2367
    %v2628 = vunpack.c.l.b16 %v2368
    %v2629 = vunpack.c.l.b16 %v2369
    %v2630 = vunpack.c.l.b16 %v2370
    %v2631 = vunpack.c.l.b16 %v2371
    %v2632 = vunpack.c.l.b16 %v2372
    %v2633 = vunpack.c.l.b16 %v2373
    %v2634 = vunpack.c.l.b16 %v2374
    %v2635 = vunpack.c.l.b16 %v2375
    %v2636 = vunpack.c.l.b16 %v2376
    %v2637 = vunpack.c.l.b16 %v2377
    %v2638 = vunpack.c.l.b16 %v2378
    %v2639 = vunpack.c.l.b16 %v2379
    %v2640 = vunpack.c.l.b16 %v2380
    %v2641 = vunpack.c.l.b16 %v2381
    %v2642 = vunpack.c.l.b16 %v2382
    %v2643 = vunpack.c.l.b16 %v2383
    %v2644 = vunpack.c.l.b16 %v2384
    %v2645 = vunpack.c.l.b16 %v2385
    %v2646 = vunpack.c.l.b16 %v2386
    %v2647 = vunpack.c.l.b16 %v2387
    %v2648 = vunpack.c.l.b16 %v2388
    %v2649 = vunpack.c.l.b16 %v2389
    %v2650 = vunpack.c.l.b16 %v2390
    %v2651 = vunpack.c.l.b16 %v2391
    %v2652 = vunpack.c.l.b16 %v2392
    %v2653 = vunpack.c.l.b16 %v2393
    %v2654 = vunpack.c.l.b16 %v2394
    %v2655 = vunpack.c.l.b16 %v2395
    %v2656 = vunpack.c.l.b16 %v2396
    %v2657 = vunpack.c.l.b16 %v2397
    %v2658 = vunpack.c.l.b16 %v2398
    %v2659 = vunpack.c.l.b16 %v2399
    %v2660 = vunpack.c.l.b16 %v2400
    %v2661 = vpack.c.b16 %v2534, %v2533
    %v2662 = vpack.c.b16 %v2536, %v2535
    %v2663 = vpack.c.b16 %v2538, %v2537
    %v2664 = vpack.c.b16 %v2540, %v2539
    %v2665 = vpack.c.b16 %v2542, %v2541
    %v2666 = vpack.c.b16 %v2544, %v2543
    %v2667 = vpack.c.b16 %v2546, %v2545
    %v2668 = vpack.c.b16 %v2548, %v2547
    %v2669 = vpack.c.b16 %v2550, %v2549
    %v2670 = vpack.c.b16 %v2552, %v2551
    %v2671 = vpack.c.b16 %v2554, %v2553
    %v2672 = vpack.c.b16 %v2556, %v2555
    %v2673 = vpack.c.b16 %v2558, %v2557
    %v2674 = vpack.c.b16 %v2560, %v2559
    %v2675 = vpack.c.b16 %v2562, %v2561
    %v2676 = vpack.c.b16 %v2564, %v2563
    %v2677 = vpack.c.b16 %v2566, %v2565
    %v2678 = vpack.c.b16 %v2568, %v2567
    %v2679 = vpack.c.b16 %v2570, %v2569
    %v2680 = vpack.c.b16 %v2572, %v2571
    %v2681 = vpack.c.b16 %v2574, %v2573
    %v2682 = vpack.c.b16 %v2576, %v2575
    %v2683 = vpack.c.b16 %v2578, %v2577
    %v2684 = vpack.c.b16 %v2580, %v2579
    %v2685 = vpack.c.b16 %v2582, %v2581
    %v2686 = vpack.c.b16 %v2584, %v2583
    %v2687 = vpack.c.b16 %v2586, %v2585
    %v2688 = vpack.c.b16 %v2588, %v2587
    %v2689 = vpack.c.b16 %v2590, %v2589
    %v2690 = vpack.c.b16 %v2592, %v2591
    %v2691 = vpack.c.b16 %v2594, %v2593
    %v2692 = vpack.c.b16 %v2596, %v2595
    %v2693 = vpack.c.b16 %v2598, %v2597
    %v2694 = vpack.c.b16 %v2600, %v2599
    %v2695 = vpack.c.b16 %v2602, %v2601
    %v2696 = vpack.c.b16 %v2604, %v2603
    %v2697 = vpack.c.b16 %v2606, %v2605
    %v2698 = vpack.c.b16 %v2608, %v2607
    %v2699 = vpack.c.b16 %v2610, %v2609
    %v2700 = vpack.c.b16 %v2612, %v2611
    %v2701 = vpack.c.b16 %v2614, %v2613
    %v2702 = vpack.c.b16 %v2616, %v2615
    %v2703 = vpack.c.b16 %v2618, %v2617
    %v2704 = vpack.c.b16 %v2620, %v2619
    %v2705 = vpack.c.b16 %v2622, %v2621
    %v2706 = vpack.c.b16 %v2624, %v2623
    %v2707 = vpack.c.b16 %v2626, %v2625
    %v2708 = vpack.c.b16 %v2628, %v2627
    %v2709 = vpack.c.b16 %v2630, %v2629
    %v2710 = vpack.c.b16 %v2632, %v2631
    %v2711 = vpack.c.b16 %v2634, %v2633
    %v2712 = vpack.c.b16 %v2636, %v2635
    %v2713 = vpack.c.b16 %v2638, %v2637
    %v2714 = vpack.c.b16 %v2640, %v2639
    %v2715 = vpack.c.b16 %v2642, %v2641
    %v2716 = vpack.c.b16 %v2644, %v2643
    %v2717 = vpack.c.b16 %v2646, %v2645
    %v2718 = vpack.c.b16 %v2648, %v2647
    %v2719 = vpack.c.b16 %v2650, %v2649
    %v2720 = vpack.c.b16 %v2652, %v2651
    %v2721 = vpack.c.b16 %v2654, %v2653
    %v2722 = vpack.c.b16 %v2656, %v2655
    %v2723 = vpack.c.b16 %v2658, %v2657
    %v2724 = vpack.c.b16 %v2660, %v2659
    %2789 = vmatpush.bf16.msra.mxu0 %v2668
    %2790 = vmatpush.bf16.msra.mxu0 %v2667
    %2791 = vmatpush.bf16.msra.mxu0 %v2666
    %2792 = vmatpush.bf16.msra.mxu0 %v2665
    %2793 = vmatpush.bf16.msra.mxu0 %v2664
    %2794 = vmatpush.bf16.msra.mxu0 %v2663
    %2795 = vmatpush.bf16.msra.mxu0 %v2662
    %2796 = vmatpush.bf16.msra.mxu0 %v2661
    %2797 = vmatmul.bf16.gmra.mxu0 %v2265
    %v2798 = vpop.f32.mrf.mxu0
    %v2799 = vadd.f32 %v2403, %v2798
    %v2800 = vpop.f32.mrf.mxu0
    %2801 = vdwg.mxu0
    %2802 = vmatpush.bf16.msra.mxu0 %v2676
    %2803 = vmatpush.bf16.msra.mxu0 %v2675
    %2804 = vmatpush.bf16.msra.mxu0 %v2674
    %2805 = vmatpush.bf16.msra.mxu0 %v2673
    %2806 = vmatpush.bf16.msra.mxu0 %v2672
    %2807 = vmatpush.bf16.msra.mxu0 %v2671
    %2808 = vmatpush.bf16.msra.mxu0 %v2670
    %2809 = vmatpush.bf16.msra.mxu0 %v2669
    %2810 = vmatmul.bf16.gmra.mxu0 %v2266
    %v2811 = vpop.f32.mrf.mxu0
    %v2812 = vadd.f32 %v2799, %v2811
    %v2813 = vpop.f32.mrf.mxu0
    %2814 = vdwg.mxu0
    %2815 = vmatpush.bf16.msra.mxu0 %v2684
    %2816 = vmatpush.bf16.msra.mxu0 %v2683
    %2817 = vmatpush.bf16.msra.mxu0 %v2682
    %2818 = vmatpush.bf16.msra.mxu0 %v2681
    %2819 = vmatpush.bf16.msra.mxu0 %v2680
    %2820 = vmatpush.bf16.msra.mxu0 %v2679
    %2821 = vmatpush.bf16.msra.mxu0 %v2678
    %2822 = vmatpush.bf16.msra.mxu0 %v2677
    %2823 = vmatmul.bf16.gmra.mxu0 %v2267
    %v2824 = vpop.f32.mrf.mxu0
    %v2825 = vadd.f32 %v2812, %v2824
    %v2826 = vpop.f32.mrf.mxu0
    %2827 = vdwg.mxu0
    %2828 = vmatpush.bf16.msra.mxu0 %v2692
    %2829 = vmatpush.bf16.msra.mxu0 %v2691
    %2830 = vmatpush.bf16.msra.mxu0 %v2690
    %2831 = vmatpush.bf16.msra.mxu0 %v2689
    %2832 = vmatpush.bf16.msra.mxu0 %v2688
    %2833 = vmatpush.bf16.msra.mxu0 %v2687
    %2834 = vmatpush.bf16.msra.mxu0 %v2686
    %2835 = vmatpush.bf16.msra.mxu0 %v2685
    %2836 = vmatmul.bf16.gmra.mxu0 %v2268
    %v2837 = vpop.f32.mrf.mxu0
    %v2838 = vadd.f32 %v2825, %v2837
    %v2839 = vpop.f32.mrf.mxu0
    %2840 = vdwg.mxu0
    %2841 = vmatpush.bf16.msra.mxu0 %v2700
    %2842 = vmatpush.bf16.msra.mxu0 %v2699
    %2843 = vmatpush.bf16.msra.mxu0 %v2698
    %2844 = vmatpush.bf16.msra.mxu0 %v2697
    %2845 = vmatpush.bf16.msra.mxu0 %v2696
    %2846 = vmatpush.bf16.msra.mxu0 %v2695
    %2847 = vmatpush.bf16.msra.mxu0 %v2694
    %2848 = vmatpush.bf16.msra.mxu0 %v2693
    %2849 = vmatmul.bf16.gmra.mxu0 %v2269
    %v2850 = vpop.f32.mrf.mxu0
    %v2851 = vadd.f32 %v2838, %v2850
    %v2852 = vpop.f32.mrf.mxu0
    %2853 = vdwg.mxu0
    %2854 = vmatpush.bf16.msra.mxu0 %v2708
    %2855 = vmatpush.bf16.msra.mxu0 %v2707
    %2856 = vmatpush.bf16.msra.mxu0 %v2706
    %2857 = vmatpush.bf16.msra.mxu0 %v2705
    %2858 = vmatpush.bf16.msra.mxu0 %v2704
    %2859 = vmatpush.bf16.msra.mxu0 %v2703
    %2860 = vmatpush.bf16.msra.mxu0 %v2702
    %2861 = vmatpush.bf16.msra.mxu0 %v2701
    %2862 = vmatmul.bf16.gmra.mxu0 %v2270
    %v2863 = vpop.f32.mrf.mxu0
    %v2864 = vadd.f32 %v2851, %v2863
    %v2865 = vpop.f32.mrf.mxu0
    %2866 = vdwg.mxu0
    %2867 = vmatpush.bf16.msra.mxu0 %v2716
    %2868 = vmatpush.bf16.msra.mxu0 %v2715
    %2869 = vmatpush.bf16.msra.mxu0 %v2714
    %2870 = vmatpush.bf16.msra.mxu0 %v2713
    %2871 = vmatpush.bf16.msra.mxu0 %v2712
    %2872 = vmatpush.bf16.msra.mxu0 %v2711
    %2873 = vmatpush.bf16.msra.mxu0 %v2710
    %2874 = vmatpush.bf16.msra.mxu0 %v2709
    %2875 = vmatmul.bf16.gmra.mxu0 %v2271
    %v2876 = vpop.f32.mrf.mxu0
    %v2877 = vadd.f32 %v2864, %v2876
    %v2878 = vpop.f32.mrf.mxu0
    %2879 = vdwg.mxu0
    %2880 = vmatpush.bf16.msra.mxu0 %v2724
    %2881 = vmatpush.bf16.msra.mxu0 %v2723
    %2882 = vmatpush.bf16.msra.mxu0 %v2722
    %2883 = vmatpush.bf16.msra.mxu0 %v2721
    %2884 = vmatpush.bf16.msra.mxu0 %v2720
    %2885 = vmatpush.bf16.msra.mxu0 %v2719
    %2886 = vmatpush.bf16.msra.mxu0 %v2718
    %2887 = vmatpush.bf16.msra.mxu0 %v2717
    %2888 = vmatmul.bf16.gmra.mxu0 %v2272
    %v2889 = vpop.f32.mrf.mxu0
    %v2890 = vadd.f32 %v2877, %v2889
    %v2891 = vpop.f32.mrf.mxu0
    %2892 = vdwg.mxu0
    %2893 = vst [vmem:[#allocation13] sm:$0xf] %v2890
    // Predicated region
    $region54: #{tpu_custom_call.1} parent=1 // pred_check
      _
    $region55: #{tpu_custom_call.1} parent=1 // pred_check_branch
      %2895 = sbr.rel (0) target = $region57
    $region56: #{tpu_custom_call.1} parent=1 // pred_region
      %2897 = vsyncadd [#allocation4], 0
      %s2899 = sshll.u32 [#allocation13], 4
      %s2900 = int_to_ptr.vmem [resolvable:$true] %s2899
      %s2901 = sshll.u32 %s7, 4
      %s2902 = int_to_ptr.hbm [resolvable:$true] %s2901
      %2904 = dma.vmem_to_hbm [thread:$0]  %s2900, 64, %s2902, [#allocation4]
    $region57: #{tpu_custom_call.1} parent=1 // pred_fallthru
      _
    // Predicated region
    $region58: #{tpu_custom_call.1} parent=1 // pred_check
      _
    $region59: #{tpu_custom_call.1} parent=1 // pred_check_branch
      %2906 = sbr.rel (0) target = $region61
    $region60: #{tpu_custom_call.1} parent=1 // pred_region
      %2908 = dma.done [#allocation4], 64
    $region61: #{tpu_custom_call.1} parent=1 // pred_fallthru
      _
    %2909 = vsyncpa [#allocation3], 1
    %2910 = vsyncpa [#allocation6], 1
    %2911 = vsyncpa [#allocation9], 1
    %2912 = vsyncpa [#allocation12], 1
    %2913 = vsyncpa [#allocation4], 1

// kernel: tpu_custom_call.1
$region0: #{tpu_custom_call.1}
  #allocation0 [shape = 'u32[]', space=smem, size = 0x4, offset = 0x4, fixed_abs, tag = 'smem constant byte address 0x4 - core index']
  #allocation1 [shape = 'u32[72,128]{1,0:T(1,128)}', space=vmem, size = 0x9000, scoped, tag = 'internal scratch']
  %s0 = inlined_call_operand.hbm [shape: bf16[4,64], index: 0, kind: input, shape index: {}]
  %s1 = inlined_call_operand.hbm [shape: bf16[64,512], index: 1, kind: input, shape index: {}]
  %s2 = inlined_call_operand.hbm [shape: f32[1,512], index: 2, kind: input, shape index: {}]
  %s3 = inlined_call_operand.hbm [shape: bf16[512,1024], index: 3, kind: input, shape index: {}]
  %s4 = inlined_call_operand.hbm [shape: f32[1,1024], index: 4, kind: input, shape index: {}]
  %s5 = inlined_call_operand.hbm [shape: bf16[1024,128], index: 5, kind: input, shape index: {}]
  %s6 = inlined_call_operand.vmem [shape: f32[1,128], index: 6, kind: input, shape index: {}]
  %s7 = inlined_call_operand.hbm [shape: f32[4,128], index: 7, kind: output, shape index: {}]
  %s8 = sld [smem:[#allocation0]]
  $region62: #{tpu_custom_call.1} parent=0
    _
  %s10 = ssub.s32 1, %s8
  %s11 = scalar_select 0, %s10, %s8
  $region1: #{tpu_custom_call.1} parent=0
    #allocation2 [shape = 'u8[1024]{0}', space=vmem, size = 0x400, scoped, tag = 'input window, operand 0, single buffered']
    #allocation3 [shape = 's32[1]{0}', space=sflag, size = 0x4, scoped, tag = 'scoped memory for tpu_custom_call.1']
    #allocation4 [shape = 's32[1]{0}', space=sflag, size = 0x4, scoped, tag = 'scoped memory for tpu_custom_call.1']
    #allocation5 [shape = 'u8[65536]{0}', space=vmem, size = 0x10000, scoped, tag = 'input window, operand 1, single buffered']
    #allocation6 [shape = 's32[1]{0}', space=sflag, size = 0x4, scoped, tag = 'scoped memory for tpu_custom_call.1']
    #allocation7 [shape = 'u8[2048]{0}', space=vmem, size = 0x800, scoped, tag = 'input window, operand 2, single buffered']
    #allocation8 [shape = 'u8[1048576]{0}', space=vmem, size = 0x100000, scoped, tag = 'input window, operand 3, single buffered']
    #allocation9 [shape = 's32[1]{0}', space=sflag, size = 0x4, scoped, tag = 'scoped memory for tpu_custom_call.1']
    #allocation10 [shape = 'u8[4096]{0}', space=vmem, size = 0x1000, scoped, tag = 'input window, operand 4, single buffered']
    #allocation11 [shape = 'u8[262144]{0}', space=vmem, size = 0x40000, scoped, tag = 'input window, operand 5, single buffered']
    #allocation12 [shape = 's32[1]{0}', space=sflag, size = 0x4, scoped, tag = 'scoped memory for tpu_custom_call.1']
    #allocation13 [shape = 'u8[2048]{0}', space=vmem, size = 0x800, scoped, tag = 'output window, operand 0, single buffered']
    %12 = vsyncpa [#allocation3], 0
    %13 = vsyncpa [#allocation6], 0
    %14 = vsyncpa [#allocation9], 0
    %15 = vsyncpa [#allocation12], 0
    %16 = vsyncpa [#allocation4], 0
    // Predicated region
    $region2: #{tpu_custom_call.1} parent=1 // pred_check
      _
    $region3: #{tpu_custom_call.1} parent=1 // pred_check_branch
      %18 = sbr.rel (0) target = $region5
    $region4: #{tpu_custom_call.1} parent=1 // pred_region
      %20 = vsyncadd [#allocation3], 0
      %s22 = sshll.u32 %s0, 4
      %s23 = int_to_ptr.hbm [resolvable:$true] %s22
      %s24 = sshll.u32 [#allocation2], 4
      %s25 = int_to_ptr.vmem [resolvable:$true] %s24
      %27 = dma.hbm_to_vmem [thread:$0]  %s23, 32, %s25, [#allocation3]
    $region5: #{tpu_custom_call.1} parent=1 // pred_fallthru
      _
    // Predicated region
    $region6: #{tpu_custom_call.1} parent=1 // pred_check
      _
    $region7: #{tpu_custom_call.1} parent=1 // pred_check_branch
      %29 = sbr.rel (0) target = $region9
    $region8: #{tpu_custom_call.1} parent=1 // pred_region
      %31 = vsyncadd [#allocation6], 0
      %s32 = sshll.u32 %s1, 4
      %s33 = int_to_ptr.hbm [resolvable:$true] %s32
      %s34 = sshll.u32 [#allocation5], 4
      %s35 = int_to_ptr.vmem [resolvable:$true] %s34
      %40 = dma.hbm_to_vmem [thread:$0]  %s33, 2048, %s35, [#allocation6], 256, 256, 16
    $region9: #{tpu_custom_call.1} parent=1 // pred_fallthru
      _
    // Predicated region
    $region10: #{tpu_custom_call.1} parent=1 // pred_check
      _
    $region11: #{tpu_custom_call.1} parent=1 // pred_check_branch
      %42 = sbr.rel (0) target = $region13
    $region12: #{tpu_custom_call.1} parent=1 // pred_region
      %44 = vsyncadd [#allocation6], 0
      %s46 = sshll.u32 %s2, 4
      %s47 = int_to_ptr.hbm [resolvable:$true] %s46
      %s48 = sshll.u32 [#allocation7], 4
      %s49 = int_to_ptr.vmem [resolvable:$true] %s48
      %51 = dma.hbm_to_vmem [thread:$0]  %s47, 64, %s49, [#allocation6]
    $region13: #{tpu_custom_call.1} parent=1 // pred_fallthru
      _
    // Predicated region
    $region14: #{tpu_custom_call.1} parent=1 // pred_check
      _
    $region15: #{tpu_custom_call.1} parent=1 // pred_check_branch
      %53 = sbr.rel (0) target = $region17
    $region16: #{tpu_custom_call.1} parent=1 // pred_region
      %55 = vsyncadd [#allocation9], 0
      %s56 = sshll.u32 %s3, 4
      %s57 = int_to_ptr.hbm [resolvable:$true] %s56
      %s58 = sshll.u32 [#allocation8], 4
      %s59 = int_to_ptr.vmem [resolvable:$true] %s58
      %64 = dma.hbm_to_vmem [thread:$0]  %s57, 32768, %s59, [#allocation9], 512, 512, 32
    $region17: #{tpu_custom_call.1} parent=1 // pred_fallthru
      _
    // Predicated region
    $region18: #{tpu_custom_call.1} parent=1 // pred_check
      _
    $region19: #{tpu_custom_call.1} parent=1 // pred_check_branch
      %66 = sbr.rel (0) target = $region21
    $region20: #{tpu_custom_call.1} parent=1 // pred_region
      %68 = vsyncadd [#allocation9], 0
      %s70 = sshll.u32 %s4, 4
      %s71 = int_to_ptr.hbm [resolvable:$true] %s70
      %s72 = sshll.u32 [#allocation10], 4
      %s73 = int_to_ptr.vmem [resolvable:$true] %s72
      %75 = dma.hbm_to_vmem [thread:$0]  %s71, 128, %s73, [#allocation9]
    $region21: #{tpu_custom_call.1} parent=1 // pred_fallthru
      _
    // Predicated region
    $region22: #{tpu_custom_call.1} parent=1 // pred_check
      _
    $region23: #{tpu_custom_call.1} parent=1 // pred_check_branch
      %77 = sbr.rel (0) target = $region25
    $region24: #{tpu_custom_call.1} parent=1 // pred_region
      %79 = vsyncadd [#allocation12], 0
      %s80 = sshll.u32 %s5, 4
      %s81 = int_to_ptr.hbm [resolvable:$true] %s80
      %s82 = sshll.u32 [#allocation11], 4
      %s83 = int_to_ptr.vmem [resolvable:$true] %s82
      %88 = dma.hbm_to_vmem [thread:$0]  %s81, 8192, %s83, [#allocation12], 64, 64, 4
    $region25: #{tpu_custom_call.1} parent=1 // pred_fallthru
      _
    // Predicated region
    $region26: #{tpu_custom_call.1} parent=1 // pred_check
      _
    $region27: #{tpu_custom_call.1} parent=1 // pred_check_branch
      %90 = sbr.rel (0) target = $region29
    $region28: #{tpu_custom_call.1} parent=1 // pred_region
      _
    $region29: #{tpu_custom_call.1} parent=1 // pred_fallthru
      _
    // Predicated region
    $region30: #{tpu_custom_call.1} parent=1 // pred_check
      _
    $region31: #{tpu_custom_call.1} parent=1 // pred_check_branch
      %92 = sbr.rel (0) target = $region33
    $region32: #{tpu_custom_call.1} parent=1 // pred_region
      %94 = dma.done [#allocation3], 32
    $region33: #{tpu_custom_call.1} parent=1 // pred_fallthru
      _
    // Predicated region
    $region34: #{tpu_custom_call.1} parent=1 // pred_check
      _
    $region35: #{tpu_custom_call.1} parent=1 // pred_check_branch
      %96 = sbr.rel (0) target = $region37
    $region36: #{tpu_custom_call.1} parent=1 // pred_region
      %98 = dma.done [#allocation6], 2048
    $region37: #{tpu_custom_call.1} parent=1 // pred_fallthru
      _
    // Predicated region
    $region38: #{tpu_custom_call.1} parent=1 // pred_check
      _
    $region39: #{tpu_custom_call.1} parent=1 // pred_check_branch
      %100 = sbr.rel (0) target = $region41
    $region40: #{tpu_custom_call.1} parent=1 // pred_region
      %102 = dma.done [#allocation6], 64
    $region41: #{tpu_custom_call.1} parent=1 // pred_fallthru
      _
    // Predicated region
    $region42: #{tpu_custom_call.1} parent=1 // pred_check
      _
    $region43: #{tpu_custom_call.1} parent=1 // pred_check_branch
      %104 = sbr.rel (0) target = $region45
    $region44: #{tpu_custom_call.1} parent=1 // pred_region
      %106 = dma.done [#allocation9], 32768
    $region45: #{tpu_custom_call.1} parent=1 // pred_fallthru
      _
    // Predicated region
    $region46: #{tpu_custom_call.1} parent=1 // pred_check
      _
    $region47: #{tpu_custom_call.1} parent=1 // pred_check_branch
      %108 = sbr.rel (0) target = $region49
    $region48: #{tpu_custom_call.1} parent=1 // pred_region
      %110 = dma.done [#allocation9], 128
    $region49: #{tpu_custom_call.1} parent=1 // pred_fallthru
      _
    // Predicated region
    $region50: #{tpu_custom_call.1} parent=1 // pred_check
      _
    $region51: #{tpu_custom_call.1} parent=1 // pred_check_branch
      %112 = sbr.rel (0) target = $region53
    $region52: #{tpu_custom_call.1} parent=1 // pred_region
      %114 = dma.done [#allocation12], 8192
    $region53: #{tpu_custom_call.1} parent=1 // pred_fallthru
      _
    %v116 = vld [vmem:[#allocation2] sm:$0x3]
    %v117 = vld [vmem:[#allocation5] sm:$0xff]
    %v118 = vld [vmem:[#allocation5 + $0x8] sm:$0xff]
    %v119 = vld [vmem:[#allocation5 + $0x10] sm:$0xff]
    %v120 = vld [vmem:[#allocation5 + $0x18] sm:$0xff]
    %v121 = vld [vmem:[#allocation5 + $0x20] sm:$0xff]
    %v122 = vld [vmem:[#allocation5 + $0x28] sm:$0xff]
    %v123 = vld [vmem:[#allocation5 + $0x30] sm:$0xff]
    %v124 = vld [vmem:[#allocation5 + $0x38] sm:$0xff]
    %v125 = vld [vmem:[#allocation5 + $0x40] sm:$0xff]
    %v126 = vld [vmem:[#allocation5 + $0x48] sm:$0xff]
    %v127 = vld [vmem:[#allocation5 + $0x50] sm:$0xff]
    %v128 = vld [vmem:[#allocation5 + $0x58] sm:$0xff]
    %v129 = vld [vmem:[#allocation5 + $0x60] sm:$0xff]
    %v130 = vld [vmem:[#allocation5 + $0x68] sm:$0xff]
    %v131 = vld [vmem:[#allocation5 + $0x70] sm:$0xff]
    %v132 = vld [vmem:[#allocation5 + $0x78] sm:$0xff]
    %v133 = vld [vmem:[#allocation7] sm:$0xf]
    %v135 = vperm.slane %v133, 0
    %v136 = vperm.slane %v133, 1
    %v137 = vperm.slane %v133, 2
    %v138 = vperm.slane %v133, 3
    %v159 = vunpack.c.l.b16 %v117
    %v160 = vunpack.c.h.b16 %v117
    %v161 = vunpack.c.l.b16 %v118
    %v162 = vunpack.c.h.b16 %v118
    %v163 = vunpack.c.l.b16 %v119
    %v164 = vunpack.c.h.b16 %v119
    %v165 = vunpack.c.l.b16 %v120
    %v166 = vunpack.c.h.b16 %v120
    %v167 = vunpack.c.l.b16 %v121
    %v168 = vunpack.c.h.b16 %v121
    %v169 = vunpack.c.l.b16 %v122
    %v170 = vunpack.c.h.b16 %v122
    %v171 = vunpack.c.l.b16 %v123
    %v172 = vunpack.c.h.b16 %v123
    %v173 = vunpack.c.l.b16 %v124
    %v174 = vunpack.c.h.b16 %v124
    %v175 = vunpack.c.l.b16 %v125
    %v176 = vunpack.c.h.b16 %v125
    %v177 = vunpack.c.l.b16 %v126
    %v178 = vunpack.c.h.b16 %v126
    %v179 = vunpack.c.l.b16 %v127
    %v180 = vunpack.c.h.b16 %v127
    %v181 = vunpack.c.l.b16 %v128
    %v182 = vunpack.c.h.b16 %v128
    %v183 = vunpack.c.l.b16 %v129
    %v184 = vunpack.c.h.b16 %v129
    %v185 = vunpack.c.l.b16 %v130
    %v186 = vunpack.c.h.b16 %v130
    %v187 = vunpack.c.l.b16 %v131
    %v188 = vunpack.c.h.b16 %v131
    %v189 = vunpack.c.l.b16 %v132
    %v190 = vunpack.c.h.b16 %v132
    %v191 = vpack.c.b16 %v163, %v159
    %v192 = vpack.c.b16 %v164, %v160
    %v193 = vpack.c.b16 %v165, %v161
    %v194 = vpack.c.b16 %v166, %v162
    %v195 = vpack.c.b16 %v171, %v167
    %v196 = vpack.c.b16 %v172, %v168
    %v197 = vpack.c.b16 %v173, %v169
    %v198 = vpack.c.b16 %v174, %v170
    %v199 = vpack.c.b16 %v179, %v175
    %v200 = vpack.c.b16 %v180, %v176
    %v201 = vpack.c.b16 %v181, %v177
    %v202 = vpack.c.b16 %v182, %v178
    %v203 = vpack.c.b16 %v187, %v183
    %v204 = vpack.c.b16 %v188, %v184
    %v205 = vpack.c.b16 %v189, %v185
    %v206 = vpack.c.b16 %v190, %v186
    %vm223 = vcmask 523264
    %v225 = vsel %vm223, %v116, 0
    %227 = vmatpush.bf16.msra.mxu0 0
    %228 = vmatpush.bf16.msra.mxu0 0
    %229 = vmatpush.bf16.msra.mxu0 0
    %230 = vmatpush.bf16.msra.mxu0 0
    %231 = vmatpush.bf16.msra.mxu0 %v203
    %232 = vmatpush.bf16.msra.mxu0 %v199
    %233 = vmatpush.bf16.msra.mxu0 %v195
    %234 = vmatpush.bf16.msra.mxu0 %v191
    %235 = vmatmul.bf16.gmra.mxu0 %v225
    %v236 = vpop.f32.mrf.mxu0
    %v237 = vadd.f32 %v135, %v236
    %v238 = vpop.f32.mrf.mxu0
    %239 = vdwg.mxu0
    %240 = vmatpush.bf16.msra.mxu0 0
    %241 = vmatpush.bf16.msra.mxu0 0
    %242 = vmatpush.bf16.msra.mxu0 0
    %243 = vmatpush.bf16.msra.mxu0 0
    %244 = vmatpush.bf16.msra.mxu0 %v204
    %245 = vmatpush.bf16.msra.mxu0 %v200
    %246 = vmatpush.bf16.msra.mxu0 %v196
    %247 = vmatpush.bf16.msra.mxu0 %v192
    %248 = vmatmul.bf16.gmra.mxu0 %v225
    %v249 = vpop.f32.mrf.mxu0
    %v250 = vadd.f32 %v136, %v249
    %v251 = vpop.f32.mrf.mxu0
    %252 = vdwg.mxu0
    %253 = vmatpush.bf16.msra.mxu0 0
    %254 = vmatpush.bf16.msra.mxu0 0
    %255 = vmatpush.bf16.msra.mxu0 0
    %256 = vmatpush.bf16.msra.mxu0 0
    %257 = vmatpush.bf16.msra.mxu0 %v205
    %258 = vmatpush.bf16.msra.mxu0 %v201
    %259 = vmatpush.bf16.msra.mxu0 %v197
    %260 = vmatpush.bf16.msra.mxu0 %v193
    %261 = vmatmul.bf16.gmra.mxu0 %v225
    %v262 = vpop.f32.mrf.mxu0
    %v263 = vadd.f32 %v137, %v262
    %v264 = vpop.f32.mrf.mxu0
    %265 = vdwg.mxu0
    %266 = vmatpush.bf16.msra.mxu0 0
    %267 = vmatpush.bf16.msra.mxu0 0
    %268 = vmatpush.bf16.msra.mxu0 0
    %269 = vmatpush.bf16.msra.mxu0 0
    %270 = vmatpush.bf16.msra.mxu0 %v206
    %271 = vmatpush.bf16.msra.mxu0 %v202
    %272 = vmatpush.bf16.msra.mxu0 %v198
    %273 = vmatpush.bf16.msra.mxu0 %v194
    %274 = vmatmul.bf16.gmra.mxu0 %v225
    %v275 = vpop.f32.mrf.mxu0
    %v276 = vadd.f32 %v138, %v275
    %v277 = vpop.f32.mrf.mxu0
    %278 = vdwg.mxu0
    %v279 = vmax.f32 %v237, 0.0
    %v280 = vmax.f32 %v250, 0.0
    %v281 = vmax.f32 %v263, 0.0
    %v282 = vmax.f32 %v276, 0.0
    %v283 = vpack.c.bf16 %v279, %v279
    %v284 = vpack.c.bf16 %v280, %v280
    %v285 = vpack.c.bf16 %v281, %v281
    %v286 = vpack.c.bf16 %v282, %v282
    %v287 = vld [vmem:[#allocation8] sm:$0xff]
    %v288 = vld [vmem:[#allocation8 + $0x8] sm:$0xff]
    %v289 = vld [vmem:[#allocation8 + $0x10] sm:$0xff]
    %v290 = vld [vmem:[#allocation8 + $0x18] sm:$0xff]
    %v291 = vld [vmem:[#allocation8 + $0x20] sm:$0xff]
    %v292 = vld [vmem:[#allocation8 + $0x28] sm:$0xff]
    %v293 = vld [vmem:[#allocation8 + $0x30] sm:$0xff]
    %v294 = vld [vmem:[#allocation8 + $0x38] sm:$0xff]
    %v295 = vld [vmem:[#allocation8 + $0x40] sm:$0xff]
    %v296 = vld [vmem:[#allocation8 + $0x48] sm:$0xff]
    %v297 = vld [vmem:[#allocation8 + $0x50] sm:$0xff]
    %v298 = vld [vmem:[#allocation8 + $0x58] sm:$0xff]
    %v299 = vld [vmem:[#allocation8 + $0x60] sm:$0xff]
    %v300 = vld [vmem:[#allocation8 + $0x68] sm:$0xff]
    %v301 = vld [vmem:[#allocation8 + $0x70] sm:$0xff]
    %v302 = vld [vmem:[#allocation8 + $0x78] sm:$0xff]
    %v303 = vld [vmem:[#allocation8 + $0x80] sm:$0xff]
    %v304 = vld [vmem:[#allocation8 + $0x88] sm:$0xff]
    %v305 = vld [vmem:[#allocation8 + $0x90] sm:$0xff]
    %v306 = vld [vmem:[#allocation8 + $0x98] sm:$0xff]
    %v307 = vld [vmem:[#allocation8 + $0xa0] sm:$0xff]
    %v308 = vld [vmem:[#allocation8 + $0xa8] sm:$0xff]
    %v309 = vld [vmem:[#allocation8 + $0xb0] sm:$0xff]
    %v310 = vld [vmem:[#allocation8 + $0xb8] sm:$0xff]
    %v311 = vld [vmem:[#allocation8 + $0xc0] sm:$0xff]
    %v312 = vld [vmem:[#allocation8 + $0xc8] sm:$0xff]
    %v313 = vld [vmem:[#allocation8 + $0xd0] sm:$0xff]
    %v314 = vld [vmem:[#allocation8 + $0xd8] sm:$0xff]
    %v315 = vld [vmem:[#allocation8 + $0xe0] sm:$0xff]
    %v316 = vld [vmem:[#allocation8 + $0xe8] sm:$0xff]
    %v317 = vld [vmem:[#allocation8 + $0xf0] sm:$0xff]
    %v318 = vld [vmem:[#allocation8 + $0xf8] sm:$0xff]
    %v319 = vld [vmem:[#allocation8 + $0x100] sm:$0xff]
    %v320 = vld [vmem:[#allocation8 + $0x108] sm:$0xff]
    %v321 = vld [vmem:[#allocation8 + $0x110] sm:$0xff]
    %v322 = vld [vmem:[#allocation8 + $0x118] sm:$0xff]
    %v323 = vld [vmem:[#allocation8 + $0x120] sm:$0xff]
    %v324 = vld [vmem:[#allocation8 + $0x128] sm:$0xff]
    %v325 = vld [vmem:[#allocation8 + $0x130] sm:$0xff]
    %v326 = vld [vmem:[#allocation8 + $0x138] sm:$0xff]
    %v327 = vld [vmem:[#allocation8 + $0x140] sm:$0xff]
    %v328 = vld [vmem:[#allocation8 + $0x148] sm:$0xff]
    %v329 = vld [vmem:[#allocation8 + $0x150] sm:$0xff]
    %v330 = vld [vmem:[#allocation8 + $0x158] sm:$0xff]
    %v331 = vld [vmem:[#allocation8 + $0x160] sm:$0xff]
    %v332 = vld [vmem:[#allocation8 + $0x168] sm:$0xff]
    %v333 = vld [vmem:[#allocation8 + $0x170] sm:$0xff]
    %v334 = vld [vmem:[#allocation8 + $0x178] sm:$0xff]
    %v335 = vld [vmem:[#allocation8 + $0x180] sm:$0xff]
    %v336 = vld [vmem:[#allocation8 + $0x188] sm:$0xff]
    %v337 = vld [vmem:[#allocation8 + $0x190] sm:$0xff]
    %v338 = vld [vmem:[#allocation8 + $0x198] sm:$0xff]
    %v339 = vld [vmem:[#allocation8 + $0x1a0] sm:$0xff]
    %v340 = vld [vmem:[#allocation8 + $0x1a8] sm:$0xff]
    %v341 = vld [vmem:[#allocation8 + $0x1b0] sm:$0xff]
    %v342 = vld [vmem:[#allocation8 + $0x1b8] sm:$0xff]
    %v343 = vld [vmem:[#allocation8 + $0x1c0] sm:$0xff]
    %v344 = vld [vmem:[#allocation8 + $0x1c8] sm:$0xff]
    %v345 = vld [vmem:[#allocation8 + $0x1d0] sm:$0xff]
    %v346 = vld [vmem:[#allocation8 + $0x1d8] sm:$0xff]
    %v347 = vld [vmem:[#allocation8 + $0x1e0] sm:$0xff]
    %v348 = vld [vmem:[#allocation8 + $0x1e8] sm:$0xff]
    %v349 = vld [vmem:[#allocation8 + $0x1f0] sm:$0xff]
    %v350 = vld [vmem:[#allocation8 + $0x1f8] sm:$0xff]
    %v351 = vld [vmem:[#allocation8 + $0x200] sm:$0xff]
    %v352 = vld [vmem:[#allocation8 + $0x208] sm:$0xff]
    %v353 = vld [vmem:[#allocation8 + $0x210] sm:$0xff]
    %v354 = vld [vmem:[#allocation8 + $0x218] sm:$0xff]
    %v355 = vld [vmem:[#allocation8 + $0x220] sm:$0xff]
    %v356 = vld [vmem:[#allocation8 + $0x228] sm:$0xff]
    %v357 = vld [vmem:[#allocation8 + $0x230] sm:$0xff]
    %v358 = vld [vmem:[#allocation8 + $0x238] sm:$0xff]
    %v359 = vld [vmem:[#allocation8 + $0x240] sm:$0xff]
    %v360 = vld [vmem:[#allocation8 + $0x248] sm:$0xff]
    %v361 = vld [vmem:[#allocation8 + $0x250] sm:$0xff]
    %v362 = vld [vmem:[#allocation8 + $0x258] sm:$0xff]
    %v363 = vld [vmem:[#allocation8 + $0x260] sm:$0xff]
    %v364 = vld [vmem:[#allocation8 + $0x268] sm:$0xff]
    %v365 = vld [vmem:[#allocation8 + $0x270] sm:$0xff]
    %v366 = vld [vmem:[#allocation8 + $0x278] sm:$0xff]
    %v367 = vld [vmem:[#allocation8 + $0x280] sm:$0xff]
    %v368 = vld [vmem:[#allocation8 + $0x288] sm:$0xff]
    %v369 = vld [vmem:[#allocation8 + $0x290] sm:$0xff]
    %v370 = vld [vmem:[#allocation8 + $0x298] sm:$0xff]
    %v371 = vld [vmem:[#allocation8 + $0x2a0] sm:$0xff]
    %v372 = vld [vmem:[#allocation8 + $0x2a8] sm:$0xff]
    %v373 = vld [vmem:[#allocation8 + $0x2b0] sm:$0xff]
    %v374 = vld [vmem:[#allocation8 + $0x2b8] sm:$0xff]
    %v375 = vld [vmem:[#allocation8 + $0x2c0] sm:$0xff]
    %v376 = vld [vmem:[#allocation8 + $0x2c8] sm:$0xff]
    %v377 = vld [vmem:[#allocation8 + $0x2d0] sm:$0xff]
    %v378 = vld [vmem:[#allocation8 + $0x2d8] sm:$0xff]
    %v379 = vld [vmem:[#allocation8 + $0x2e0] sm:$0xff]
    %v380 = vld [vmem:[#allocation8 + $0x2e8] sm:$0xff]
    %v381 = vld [vmem:[#allocation8 + $0x2f0] sm:$0xff]
    %v382 = vld [vmem:[#allocation8 + $0x2f8] sm:$0xff]
    %v383 = vld [vmem:[#allocation8 + $0x300] sm:$0xff]
    %v384 = vld [vmem:[#allocation8 + $0x308] sm:$0xff]
    %v385 = vld [vmem:[#allocation8 + $0x310] sm:$0xff]
    %v386 = vld [vmem:[#allocation8 + $0x318] sm:$0xff]
    %v387 = vld [vmem:[#allocation8 + $0x320] sm:$0xff]
    %v388 = vld [vmem:[#allocation8 + $0x328] sm:$0xff]
    %v389 = vld [vmem:[#allocation8 + $0x330] sm:$0xff]
    %v390 = vld [vmem:[#allocation8 + $0x338] sm:$0xff]
    %v391 = vld [vmem:[#allocation8 + $0x340] sm:$0xff]
    %v392 = vld [vmem:[#allocation8 + $0x348] sm:$0xff]
    %v393 = vld [vmem:[#allocation8 + $0x350] sm:$0xff]
    %v394 = vld [vmem:[#allocation8 + $0x358] sm:$0xff]
    %v395 = vld [vmem:[#allocation8 + $0x360] sm:$0xff]
    %v396 = vld [vmem:[#allocation8 + $0x368] sm:$0xff]
    %v397 = vld [vmem:[#allocation8 + $0x370] sm:$0xff]
    %v398 = vld [vmem:[#allocation8 + $0x378] sm:$0xff]
    %v399 = vld [vmem:[#allocation8 + $0x380] sm:$0xff]
    %v400 = vld [vmem:[#allocation8 + $0x388] sm:$0xff]
    %v401 = vld [vmem:[#allocation8 + $0x390] sm:$0xff]
    %v402 = vld [vmem:[#allocation8 + $0x398] sm:$0xff]
    %v403 = vld [vmem:[#allocation8 + $0x3a0] sm:$0xff]
    %v404 = vld [vmem:[#allocation8 + $0x3a8] sm:$0xff]
    %v405 = vld [vmem:[#allocation8 + $0x3b0] sm:$0xff]
    %v406 = vld [vmem:[#allocation8 + $0x3b8] sm:$0xff]
    %v407 = vld [vmem:[#allocation8 + $0x3c0] sm:$0xff]
    %v408 = vld [vmem:[#allocation8 + $0x3c8] sm:$0xff]
    %v409 = vld [vmem:[#allocation8 + $0x3d0] sm:$0xff]
    %v410 = vld [vmem:[#allocation8 + $0x3d8] sm:$0xff]
    %v411 = vld [vmem:[#allocation8 + $0x3e0] sm:$0xff]
    %v412 = vld [vmem:[#allocation8 + $0x3e8] sm:$0xff]
    %v413 = vld [vmem:[#allocation8 + $0x3f0] sm:$0xff]
    %v414 = vld [vmem:[#allocation8 + $0x3f8] sm:$0xff]
    %v415 = vld [vmem:[#allocation8 + $0x400] sm:$0xff]
    %v416 = vld [vmem:[#allocation8 + $0x408] sm:$0xff]
    %v417 = vld [vmem:[#allocation8 + $0x410] sm:$0xff]
    %v418 = vld [vmem:[#allocation8 + $0x418] sm:$0xff]
    %v419 = vld [vmem:[#allocation8 + $0x420] sm:$0xff]
    %v420 = vld [vmem:[#allocation8 + $0x428] sm:$0xff]
    %v421 = vld [vmem:[#allocation8 + $0x430] sm:$0xff]
    %v422 = vld [vmem:[#allocation8 + $0x438] sm:$0xff]
    %v423 = vld [vmem:[#allocation8 + $0x440] sm:$0xff]
    %v424 = vld [vmem:[#allocation8 + $0x448] sm:$0xff]
    %v425 = vld [vmem:[#allocation8 + $0x450] sm:$0xff]
    %v426 = vld [vmem:[#allocation8 + $0x458] sm:$0xff]
    %v427 = vld [vmem:[#allocation8 + $0x460] sm:$0xff]
    %v428 = vld [vmem:[#allocation8 + $0x468] sm:$0xff]
    %v429 = vld [vmem:[#allocation8 + $0x470] sm:$0xff]
    %v430 = vld [vmem:[#allocation8 + $0x478] sm:$0xff]
    %v431 = vld [vmem:[#allocation8 + $0x480] sm:$0xff]
    %v432 = vld [vmem:[#allocation8 + $0x488] sm:$0xff]
    %v433 = vld [vmem:[#allocation8 + $0x490] sm:$0xff]
    %v434 = vld [vmem:[#allocation8 + $0x498] sm:$0xff]
    %v435 = vld [vmem:[#allocation8 + $0x4a0] sm:$0xff]
    %v436 = vld [vmem:[#allocation8 + $0x4a8] sm:$0xff]
    %v437 = vld [vmem:[#allocation8 + $0x4b0] sm:$0xff]
    %v438 = vld [vmem:[#allocation8 + $0x4b8] sm:$0xff]
    %v439 = vld [vmem:[#allocation8 + $0x4c0] sm:$0xff]
    %v440 = vld [vmem:[#allocation8 + $0x4c8] sm:$0xff]
    %v441 = vld [vmem:[#allocation8 + $0x4d0] sm:$0xff]
    %v442 = vld [vmem:[#allocation8 + $0x4d8] sm:$0xff]
    %v443 = vld [vmem:[#allocation8 + $0x4e0] sm:$0xff]
    %v444 = vld [vmem:[#allocation8 + $0x4e8] sm:$0xff]
    %v445 = vld [vmem:[#allocation8 + $0x4f0] sm:$0xff]
    %v446 = vld [vmem:[#allocation8 + $0x4f8] sm:$0xff]
    %v447 = vld [vmem:[#allocation8 + $0x500] sm:$0xff]
    %v448 = vld [vmem:[#allocation8 + $0x508] sm:$0xff]
    %v449 = vld [vmem:[#allocation8 + $0x510] sm:$0xff]
    %v450 = vld [vmem:[#allocation8 + $0x518] sm:$0xff]
    %v451 = vld [vmem:[#allocation8 + $0x520] sm:$0xff]
    %v452 = vld [vmem:[#allocation8 + $0x528] sm:$0xff]
    %v453 = vld [vmem:[#allocation8 + $0x530] sm:$0xff]
    %v454 = vld [vmem:[#allocation8 + $0x538] sm:$0xff]
    %v455 = vld [vmem:[#allocation8 + $0x540] sm:$0xff]
    %v456 = vld [vmem:[#allocation8 + $0x548] sm:$0xff]
    %v457 = vld [vmem:[#allocation8 + $0x550] sm:$0xff]
    %v458 = vld [vmem:[#allocation8 + $0x558] sm:$0xff]
    %v459 = vld [vmem:[#allocation8 + $0x560] sm:$0xff]
    %v460 = vld [vmem:[#allocation8 + $0x568] sm:$0xff]
    %v461 = vld [vmem:[#allocation8 + $0x570] sm:$0xff]
    %v462 = vld [vmem:[#allocation8 + $0x578] sm:$0xff]
    %v463 = vld [vmem:[#allocation8 + $0x580] sm:$0xff]
    %v464 = vld [vmem:[#allocation8 + $0x588] sm:$0xff]
    %v465 = vld [vmem:[#allocation8 + $0x590] sm:$0xff]
    %v466 = vld [vmem:[#allocation8 + $0x598] sm:$0xff]
    %v467 = vld [vmem:[#allocation8 + $0x5a0] sm:$0xff]
    %v468 = vld [vmem:[#allocation8 + $0x5a8] sm:$0xff]
    %v469 = vld [vmem:[#allocation8 + $0x5b0] sm:$0xff]
    %v470 = vld [vmem:[#allocation8 + $0x5b8] sm:$0xff]
    %v471 = vld [vmem:[#allocation8 + $0x5c0] sm:$0xff]
    %v472 = vld [vmem:[#allocation8 + $0x5c8] sm:$0xff]
    %v473 = vld [vmem:[#allocation8 + $0x5d0] sm:$0xff]
    %v474 = vld [vmem:[#allocation8 + $0x5d8] sm:$0xff]
    %v475 = vld [vmem:[#allocation8 + $0x5e0] sm:$0xff]
    %v476 = vld [vmem:[#allocation8 + $0x5e8] sm:$0xff]
    %v477 = vld [vmem:[#allocation8 + $0x5f0] sm:$0xff]
    %v478 = vld [vmem:[#allocation8 + $0x5f8] sm:$0xff]
    %v479 = vld [vmem:[#allocation8 + $0x600] sm:$0xff]
    %v480 = vld [vmem:[#allocation8 + $0x608] sm:$0xff]
    %v481 = vld [vmem:[#allocation8 + $0x610] sm:$0xff]
    %v482 = vld [vmem:[#allocation8 + $0x618] sm:$0xff]
    %v483 = vld [vmem:[#allocation8 + $0x620] sm:$0xff]
    %v484 = vld [vmem:[#allocation8 + $0x628] sm:$0xff]
    %v485 = vld [vmem:[#allocation8 + $0x630] sm:$0xff]
    %v486 = vld [vmem:[#allocation8 + $0x638] sm:$0xff]
    %v487 = vld [vmem:[#allocation8 + $0x640] sm:$0xff]
    %v488 = vld [vmem:[#allocation8 + $0x648] sm:$0xff]
    %v489 = vld [vmem:[#allocation8 + $0x650] sm:$0xff]
    %v490 = vld [vmem:[#allocation8 + $0x658] sm:$0xff]
    %v491 = vld [vmem:[#allocation8 + $0x660] sm:$0xff]
    %v492 = vld [vmem:[#allocation8 + $0x668] sm:$0xff]
    %v493 = vld [vmem:[#allocation8 + $0x670] sm:$0xff]
    %v494 = vld [vmem:[#allocation8 + $0x678] sm:$0xff]
    %v495 = vld [vmem:[#allocation8 + $0x680] sm:$0xff]
    %v496 = vld [vmem:[#allocation8 + $0x688] sm:$0xff]
    %v497 = vld [vmem:[#allocation8 + $0x690] sm:$0xff]
    %v498 = vld [vmem:[#allocation8 + $0x698] sm:$0xff]
    %v499 = vld [vmem:[#allocation8 + $0x6a0] sm:$0xff]
    %v500 = vld [vmem:[#allocation8 + $0x6a8] sm:$0xff]
    %v501 = vld [vmem:[#allocation8 + $0x6b0] sm:$0xff]
    %v502 = vld [vmem:[#allocation8 + $0x6b8] sm:$0xff]
    %v503 = vld [vmem:[#allocation8 + $0x6c0] sm:$0xff]
    %v504 = vld [vmem:[#allocation8 + $0x6c8] sm:$0xff]
    %v505 = vld [vmem:[#allocation8 + $0x6d0] sm:$0xff]
    %v506 = vld [vmem:[#allocation8 + $0x6d8] sm:$0xff]
    %v507 = vld [vmem:[#allocation8 + $0x6e0] sm:$0xff]
    %v508 = vld [vmem:[#allocation8 + $0x6e8] sm:$0xff]
    %v509 = vld [vmem:[#allocation8 + $0x6f0] sm:$0xff]
    %v510 = vld [vmem:[#allocation8 + $0x6f8] sm:$0xff]
    %v511 = vld [vmem:[#allocation8 + $0x700] sm:$0xff]
    %v512 = vld [vmem:[#allocation8 + $0x708] sm:$0xff]
    %v513 = vld [vmem:[#allocation8 + $0x710] sm:$0xff]
    %v514 = vld [vmem:[#allocation8 + $0x718] sm:$0xff]
    %v515 = vld [vmem:[#allocation8 + $0x720] sm:$0xff]
    %v516 = vld [vmem:[#allocation8 + $0x728] sm:$0xff]
    %v517 = vld [vmem:[#allocation8 + $0x730] sm:$0xff]
    %v518 = vld [vmem:[#allocation8 + $0x738] sm:$0xff]
    %v519 = vld [vmem:[#allocation8 + $0x740] sm:$0xff]
    %v520 = vld [vmem:[#allocation8 + $0x748] sm:$0xff]
    %v521 = vld [vmem:[#allocation8 + $0x750] sm:$0xff]
    %v522 = vld [vmem:[#allocation8 + $0x758] sm:$0xff]
    %v523 = vld [vmem:[#allocation8 + $0x760] sm:$0xff]
    %v524 = vld [vmem:[#allocation8 + $0x768] sm:$0xff]
    %v525 = vld [vmem:[#allocation8 + $0x770] sm:$0xff]
    %v526 = vld [vmem:[#allocation8 + $0x778] sm:$0xff]
    %v527 = vld [vmem:[#allocation8 + $0x780] sm:$0xff]
    %v528 = vld [vmem:[#allocation8 + $0x788] sm:$0xff]
    %v529 = vld [vmem:[#allocation8 + $0x790] sm:$0xff]
    %v530 = vld [vmem:[#allocation8 + $0x798] sm:$0xff]
    %v531 = vld [vmem:[#allocation8 + $0x7a0] sm:$0xff]
    %v532 = vld [vmem:[#allocation8 + $0x7a8] sm:$0xff]
    %v533 = vld [vmem:[#allocation8 + $0x7b0] sm:$0xff]
    %v534 = vld [vmem:[#allocation8 + $0x7b8] sm:$0xff]
    %v535 = vld [vmem:[#allocation8 + $0x7c0] sm:$0xff]
    %v536 = vld [vmem:[#allocation8 + $0x7c8] sm:$0xff]
    %v537 = vld [vmem:[#allocation8 + $0x7d0] sm:$0xff]
    %v538 = vld [vmem:[#allocation8 + $0x7d8] sm:$0xff]
    %v539 = vld [vmem:[#allocation8 + $0x7e0] sm:$0xff]
    %v540 = vld [vmem:[#allocation8 + $0x7e8] sm:$0xff]
    %v541 = vld [vmem:[#allocation8 + $0x7f0] sm:$0xff]
    %v542 = vld [vmem:[#allocation8 + $0x7f8] sm:$0xff]
    %v543 = vld [vmem:[#allocation10] sm:$0xff]
    %v545 = vperm.slane %v543, 0
    %v546 = vperm.slane %v543, 1
    %v547 = vperm.slane %v543, 2
    %v548 = vperm.slane %v543, 3
    %v549 = vperm.slane %v543, 4
    %v550 = vperm.slane %v543, 5
    %v551 = vperm.slane %v543, 6
    %v552 = vperm.slane %v543, 7
    %v817 = vunpack.c.l.b16 %v287
    %v818 = vunpack.c.h.b16 %v287
    %v819 = vunpack.c.l.b16 %v288
    %v820 = vunpack.c.h.b16 %v288
    %v821 = vunpack.c.l.b16 %v289
    %v822 = vunpack.c.h.b16 %v289
    %v823 = vunpack.c.l.b16 %v290
    %v824 = vunpack.c.h.b16 %v290
    %v825 = vunpack.c.l.b16 %v291
    %v826 = vunpack.c.h.b16 %v291
    %v827 = vunpack.c.l.b16 %v292
    %v828 = vunpack.c.h.b16 %v292
    %v829 = vunpack.c.l.b16 %v293
    %v830 = vunpack.c.h.b16 %v293
    %v831 = vunpack.c.l.b16 %v294
    %v832 = vunpack.c.h.b16 %v294
    %v833 = vunpack.c.l.b16 %v295
    %v834 = vunpack.c.h.b16 %v295
    %v835 = vunpack.c.l.b16 %v296
    %v836 = vunpack.c.h.b16 %v296
    %v837 = vunpack.c.l.b16 %v297
    %v838 = vunpack.c.h.b16 %v297
    %v839 = vunpack.c.l.b16 %v298
    %v840 = vunpack.c.h.b16 %v298
    %v841 = vunpack.c.l.b16 %v299
    %v842 = vunpack.c.h.b16 %v299
    %v843 = vunpack.c.l.b16 %v300
    %v844 = vunpack.c.h.b16 %v300
    %v845 = vunpack.c.l.b16 %v301
    %v846 = vunpack.c.h.b16 %v301
    %v847 = vunpack.c.l.b16 %v302
    %v848 = vunpack.c.h.b16 %v302
    %v849 = vunpack.c.l.b16 %v303
    %v850 = vunpack.c.h.b16 %v303
    %v851 = vunpack.c.l.b16 %v304
    %v852 = vunpack.c.h.b16 %v304
    %v853 = vunpack.c.l.b16 %v305
    %v854 = vunpack.c.h.b16 %v305
    %v855 = vunpack.c.l.b16 %v306
    %v856 = vunpack.c.h.b16 %v306
    %v857 = vunpack.c.l.b16 %v307
    %v858 = vunpack.c.h.b16 %v307
    %v859 = vunpack.c.l.b16 %v308
    %v860 = vunpack.c.h.b16 %v308
    %v861 = vunpack.c.l.b16 %v309
    %v862 = vunpack.c.h.b16 %v309
    %v863 = vunpack.c.l.b16 %v310
    %v864 = vunpack.c.h.b16 %v310
    %v865 = vunpack.c.l.b16 %v311
    %v866 = vunpack.c.h.b16 %v311
    %v867 = vunpack.c.l.b16 %v312
    %v868 = vunpack.c.h.b16 %v312
    %v869 = vunpack.c.l.b16 %v313
    %v870 = vunpack.c.h.b16 %v313
    %v871 = vunpack.c.l.b16 %v314
    %v872 = vunpack.c.h.b16 %v314
    %v873 = vunpack.c.l.b16 %v315
    %v874 = vunpack.c.h.b16 %v315
    %v875 = vunpack.c.l.b16 %v316
    %v876 = vunpack.c.h.b16 %v316
    %v877 = vunpack.c.l.b16 %v317
    %v878 = vunpack.c.h.b16 %v317
    %v879 = vunpack.c.l.b16 %v318
    %v880 = vunpack.c.h.b16 %v318
    %v881 = vunpack.c.l.b16 %v319
    %v882 = vunpack.c.h.b16 %v319
    %v883 = vunpack.c.l.b16 %v320
    %v884 = vunpack.c.h.b16 %v320
    %v885 = vunpack.c.l.b16 %v321
    %v886 = vunpack.c.h.b16 %v321
    %v887 = vunpack.c.l.b16 %v322
    %v888 = vunpack.c.h.b16 %v322
    %v889 = vunpack.c.l.b16 %v323
    %v890 = vunpack.c.h.b16 %v323
    %v891 = vunpack.c.l.b16 %v324
    %v892 = vunpack.c.h.b16 %v324
    %v893 = vunpack.c.l.b16 %v325
    %v894 = vunpack.c.h.b16 %v325
    %v895 = vunpack.c.l.b16 %v326
    %v896 = vunpack.c.h.b16 %v326
    %v897 = vunpack.c.l.b16 %v327
    %v898 = vunpack.c.h.b16 %v327
    %v899 = vunpack.c.l.b16 %v328
    %v900 = vunpack.c.h.b16 %v328
    %v901 = vunpack.c.l.b16 %v329
    %v902 = vunpack.c.h.b16 %v329
    %v903 = vunpack.c.l.b16 %v330
    %v904 = vunpack.c.h.b16 %v330
    %v905 = vunpack.c.l.b16 %v331
    %v906 = vunpack.c.h.b16 %v331
    %v907 = vunpack.c.l.b16 %v332
    %v908 = vunpack.c.h.b16 %v332
    %v909 = vunpack.c.l.b16 %v333
    %v910 = vunpack.c.h.b16 %v333
    %v911 = vunpack.c.l.b16 %v334
    %v912 = vunpack.c.h.b16 %v334
    %v913 = vunpack.c.l.b16 %v335
    %v914 = vunpack.c.h.b16 %v335
    %v915 = vunpack.c.l.b16 %v336
    %v916 = vunpack.c.h.b16 %v336
    %v917 = vunpack.c.l.b16 %v337
    %v918 = vunpack.c.h.b16 %v337
    %v919 = vunpack.c.l.b16 %v338
    %v920 = vunpack.c.h.b16 %v338
    %v921 = vunpack.c.l.b16 %v339
    %v922 = vunpack.c.h.b16 %v339
    %v923 = vunpack.c.l.b16 %v340
    %v924 = vunpack.c.h.b16 %v340
    %v925 = vunpack.c.l.b16 %v341
    %v926 = vunpack.c.h.b16 %v341
    %v927 = vunpack.c.l.b16 %v342
    %v928 = vunpack.c.h.b16 %v342
    %v929 = vunpack.c.l.b16 %v343
    %v930 = vunpack.c.h.b16 %v343
    %v931 = vunpack.c.l.b16 %v344
    %v932 = vunpack.c.h.b16 %v344
    %v933 = vunpack.c.l.b16 %v345
    %v934 = vunpack.c.h.b16 %v345
    %v935 = vunpack.c.l.b16 %v346
    %v936 = vunpack.c.h.b16 %v346
    %v937 = vunpack.c.l.b16 %v347
    %v938 = vunpack.c.h.b16 %v347
    %v939 = vunpack.c.l.b16 %v348
    %v940 = vunpack.c.h.b16 %v348
    %v941 = vunpack.c.l.b16 %v349
    %v942 = vunpack.c.h.b16 %v349
    %v943 = vunpack.c.l.b16 %v350
    %v944 = vunpack.c.h.b16 %v350
    %v945 = vunpack.c.l.b16 %v351
    %v946 = vunpack.c.h.b16 %v351
    %v947 = vunpack.c.l.b16 %v352
    %v948 = vunpack.c.h.b16 %v352
    %v949 = vunpack.c.l.b16 %v353
    %v950 = vunpack.c.h.b16 %v353
    %v951 = vunpack.c.l.b16 %v354
    %v952 = vunpack.c.h.b16 %v354
    %v953 = vunpack.c.l.b16 %v355
    %v954 = vunpack.c.h.b16 %v355
    %v955 = vunpack.c.l.b16 %v356
    %v956 = vunpack.c.h.b16 %v356
    %v957 = vunpack.c.l.b16 %v357
    %v958 = vunpack.c.h.b16 %v357
    %v959 = vunpack.c.l.b16 %v358
    %v960 = vunpack.c.h.b16 %v358
    %v961 = vunpack.c.l.b16 %v359
    %v962 = vunpack.c.h.b16 %v359
    %v963 = vunpack.c.l.b16 %v360
    %v964 = vunpack.c.h.b16 %v360
    %v965 = vunpack.c.l.b16 %v361
    %v966 = vunpack.c.h.b16 %v361
    %v967 = vunpack.c.l.b16 %v362
    %v968 = vunpack.c.h.b16 %v362
    %v969 = vunpack.c.l.b16 %v363
    %v970 = vunpack.c.h.b16 %v363
    %v971 = vunpack.c.l.b16 %v364
    %v972 = vunpack.c.h.b16 %v364
    %v973 = vunpack.c.l.b16 %v365
    %v974 = vunpack.c.h.b16 %v365
    %v975 = vunpack.c.l.b16 %v366
    %v976 = vunpack.c.h.b16 %v366
    %v977 = vunpack.c.l.b16 %v367
    %v978 = vunpack.c.h.b16 %v367
    %v979 = vunpack.c.l.b16 %v368
    %v980 = vunpack.c.h.b16 %v368
    %v981 = vunpack.c.l.b16 %v369
    %v982 = vunpack.c.h.b16 %v369
    %v983 = vunpack.c.l.b16 %v370
    %v984 = vunpack.c.h.b16 %v370
    %v985 = vunpack.c.l.b16 %v371
    %v986 = vunpack.c.h.b16 %v371
    %v987 = vunpack.c.l.b16 %v372
    %v988 = vunpack.c.h.b16 %v372
    %v989 = vunpack.c.l.b16 %v373
    %v990 = vunpack.c.h.b16 %v373
    %v991 = vunpack.c.l.b16 %v374
    %v992 = vunpack.c.h.b16 %v374
    %v993 = vunpack.c.l.b16 %v375
    %v994 = vunpack.c.h.b16 %v375
    %v995 = vunpack.c.l.b16 %v376
    %v996 = vunpack.c.h.b16 %v376
    %v997 = vunpack.c.l.b16 %v377
    %v998 = vunpack.c.h.b16 %v377
    %v999 = vunpack.c.l.b16 %v378
    %v1000 = vunpack.c.h.b16 %v378
    %v1001 = vunpack.c.l.b16 %v379
    %v1002 = vunpack.c.h.b16 %v379
    %v1003 = vunpack.c.l.b16 %v380
    %v1004 = vunpack.c.h.b16 %v380
    %v1005 = vunpack.c.l.b16 %v381
    %v1006 = vunpack.c.h.b16 %v381
    %v1007 = vunpack.c.l.b16 %v382
    %v1008 = vunpack.c.h.b16 %v382
    %v1009 = vunpack.c.l.b16 %v383
    %v1010 = vunpack.c.h.b16 %v383
    %v1011 = vunpack.c.l.b16 %v384
    %v1012 = vunpack.c.h.b16 %v384
    %v1013 = vunpack.c.l.b16 %v385
    %v1014 = vunpack.c.h.b16 %v385
    %v1015 = vunpack.c.l.b16 %v386
    %v1016 = vunpack.c.h.b16 %v386
    %v1017 = vunpack.c.l.b16 %v387
    %v1018 = vunpack.c.h.b16 %v387
    %v1019 = vunpack.c.l.b16 %v388
    %v1020 = vunpack.c.h.b16 %v388
    %v1021 = vunpack.c.l.b16 %v389
    %v1022 = vunpack.c.h.b16 %v389
    %v1023 = vunpack.c.l.b16 %v390
    %v1024 = vunpack.c.h.b16 %v390
    %v1025 = vunpack.c.l.b16 %v391
    %v1026 = vunpack.c.h.b16 %v391
    %v1027 = vunpack.c.l.b16 %v392
    %v1028 = vunpack.c.h.b16 %v392
    %v1029 = vunpack.c.l.b16 %v393
    %v1030 = vunpack.c.h.b16 %v393
    %v1031 = vunpack.c.l.b16 %v394
    %v1032 = vunpack.c.h.b16 %v394
    %v1033 = vunpack.c.l.b16 %v395
    %v1034 = vunpack.c.h.b16 %v395
    %v1035 = vunpack.c.l.b16 %v396
    %v1036 = vunpack.c.h.b16 %v396
    %v1037 = vunpack.c.l.b16 %v397
    %v1038 = vunpack.c.h.b16 %v397
    %v1039 = vunpack.c.l.b16 %v398
    %v1040 = vunpack.c.h.b16 %v398
    %v1041 = vunpack.c.l.b16 %v399
    %v1042 = vunpack.c.h.b16 %v399
    %v1043 = vunpack.c.l.b16 %v400
    %v1044 = vunpack.c.h.b16 %v400
    %v1045 = vunpack.c.l.b16 %v401
    %v1046 = vunpack.c.h.b16 %v401
    %v1047 = vunpack.c.l.b16 %v402
    %v1048 = vunpack.c.h.b16 %v402
    %v1049 = vunpack.c.l.b16 %v403
    %v1050 = vunpack.c.h.b16 %v403
    %v1051 = vunpack.c.l.b16 %v404
    %v1052 = vunpack.c.h.b16 %v404
    %v1053 = vunpack.c.l.b16 %v405
    %v1054 = vunpack.c.h.b16 %v405
    %v1055 = vunpack.c.l.b16 %v406
    %v1056 = vunpack.c.h.b16 %v406
    %v1057 = vunpack.c.l.b16 %v407
    %v1058 = vunpack.c.h.b16 %v407
    %v1059 = vunpack.c.l.b16 %v408
    %v1060 = vunpack.c.h.b16 %v408
    %v1061 = vunpack.c.l.b16 %v409
    %v1062 = vunpack.c.h.b16 %v409
    %v1063 = vunpack.c.l.b16 %v410
    %v1064 = vunpack.c.h.b16 %v410
    %v1065 = vunpack.c.l.b16 %v411
    %v1066 = vunpack.c.h.b16 %v411
    %v1067 = vunpack.c.l.b16 %v412
    %v1068 = vunpack.c.h.b16 %v412
    %v1069 = vunpack.c.l.b16 %v413
    %v1070 = vunpack.c.h.b16 %v413
    %v1071 = vunpack.c.l.b16 %v414
    %v1072 = vunpack.c.h.b16 %v414
    %v1073 = vunpack.c.l.b16 %v415
    %v1074 = vunpack.c.h.b16 %v415
    %v1075 = vunpack.c.l.b16 %v416
    %v1076 = vunpack.c.h.b16 %v416
    %v1077 = vunpack.c.l.b16 %v417
    %v1078 = vunpack.c.h.b16 %v417
    %v1079 = vunpack.c.l.b16 %v418
    %v1080 = vunpack.c.h.b16 %v418
    %v1081 = vunpack.c.l.b16 %v419
    %v1082 = vunpack.c.h.b16 %v419
    %v1083 = vunpack.c.l.b16 %v420
    %v1084 = vunpack.c.h.b16 %v420
    %v1085 = vunpack.c.l.b16 %v421
    %v1086 = vunpack.c.h.b16 %v421
    %v1087 = vunpack.c.l.b16 %v422
    %v1088 = vunpack.c.h.b16 %v422
    %v1089 = vunpack.c.l.b16 %v423
    %v1090 = vunpack.c.h.b16 %v423
    %v1091 = vunpack.c.l.b16 %v424
    %v1092 = vunpack.c.h.b16 %v424
    %v1093 = vunpack.c.l.b16 %v425
    %v1094 = vunpack.c.h.b16 %v425
    %v1095 = vunpack.c.l.b16 %v426
    %v1096 = vunpack.c.h.b16 %v426
    %v1097 = vunpack.c.l.b16 %v427
    %v1098 = vunpack.c.h.b16 %v427
    %v1099 = vunpack.c.l.b16 %v428
    %v1100 = vunpack.c.h.b16 %v428
    %v1101 = vunpack.c.l.b16 %v429
    %v1102 = vunpack.c.h.b16 %v429
    %v1103 = vunpack.c.l.b16 %v430
    %v1104 = vunpack.c.h.b16 %v430
    %v1105 = vunpack.c.l.b16 %v431
    %v1106 = vunpack.c.h.b16 %v431
    %v1107 = vunpack.c.l.b16 %v432
    %v1108 = vunpack.c.h.b16 %v432
    %v1109 = vunpack.c.l.b16 %v433
    %v1110 = vunpack.c.h.b16 %v433
    %v1111 = vunpack.c.l.b16 %v434
    %v1112 = vunpack.c.h.b16 %v434
    %v1113 = vunpack.c.l.b16 %v435
    %v1114 = vunpack.c.h.b16 %v435
    %v1115 = vunpack.c.l.b16 %v436
    %v1116 = vunpack.c.h.b16 %v436
    %v1117 = vunpack.c.l.b16 %v437
    %v1118 = vunpack.c.h.b16 %v437
    %v1119 = vunpack.c.l.b16 %v438
    %v1120 = vunpack.c.h.b16 %v438
    %v1121 = vunpack.c.l.b16 %v439
    %v1122 = vunpack.c.h.b16 %v439
    %v1123 = vunpack.c.l.b16 %v440
    %v1124 = vunpack.c.h.b16 %v440
    %v1125 = vunpack.c.l.b16 %v441
    %v1126 = vunpack.c.h.b16 %v441
    %v1127 = vunpack.c.l.b16 %v442
    %v1128 = vunpack.c.h.b16 %v442
    %v1129 = vunpack.c.l.b16 %v443
    %v1130 = vunpack.c.h.b16 %v443
    %v1131 = vunpack.c.l.b16 %v444
    %v1132 = vunpack.c.h.b16 %v444
    %v1133 = vunpack.c.l.b16 %v445
    %v1134 = vunpack.c.h.b16 %v445
    %v1135 = vunpack.c.l.b16 %v446
    %v1136 = vunpack.c.h.b16 %v446
    %v1137 = vunpack.c.l.b16 %v447
    %v1138 = vunpack.c.h.b16 %v447
    %v1139 = vunpack.c.l.b16 %v448
    %v1140 = vunpack.c.h.b16 %v448
    %v1141 = vunpack.c.l.b16 %v449
    %v1142 = vunpack.c.h.b16 %v449
    %v1143 = vunpack.c.l.b16 %v450
    %v1144 = vunpack.c.h.b16 %v450
    %v1145 = vunpack.c.l.b16 %v451
    %v1146 = vunpack.c.h.b16 %v451
    %v1147 = vunpack.c.l.b16 %v452
    %v1148 = vunpack.c.h.b16 %v452
    %v1149 = vunpack.c.l.b16 %v453
    %v1150 = vunpack.c.h.b16 %v453
    %v1151 = vunpack.c.l.b16 %v454
    %v1152 = vunpack.c.h.b16 %v454
    %v1153 = vunpack.c.l.b16 %v455
    %v1154 = vunpack.c.h.b16 %v455
    %v1155 = vunpack.c.l.b16 %v456
    %v1156 = vunpack.c.h.b16 %v456
    %v1157 = vunpack.c.l.b16 %v457
    %v1158 = vunpack.c.h.b16 %v457
    %v1159 = vunpack.c.l.b16 %v458
    %v1160 = vunpack.c.h.b16 %v458
    %v1161 = vunpack.c.l.b16 %v459
    %v1162 = vunpack.c.h.b16 %v459
    %v1163 = vunpack.c.l.b16 %v460
    %v1164 = vunpack.c.h.b16 %v460
    %v1165 = vunpack.c.l.b16 %v461
    %v1166 = vunpack.c.h.b16 %v461
    %v1167 = vunpack.c.l.b16 %v462
    %v1168 = vunpack.c.h.b16 %v462
    %v1169 = vunpack.c.l.b16 %v463
    %v1170 = vunpack.c.h.b16 %v463
    %v1171 = vunpack.c.l.b16 %v464
    %v1172 = vunpack.c.h.b16 %v464
    %v1173 = vunpack.c.l.b16 %v465
    %v1174 = vunpack.c.h.b16 %v465
    %v1175 = vunpack.c.l.b16 %v466
    %v1176 = vunpack.c.h.b16 %v466
    %v1177 = vunpack.c.l.b16 %v467
    %v1178 = vunpack.c.h.b16 %v467
    %v1179 = vunpack.c.l.b16 %v468
    %v1180 = vunpack.c.h.b16 %v468
    %v1181 = vunpack.c.l.b16 %v469
    %v1182 = vunpack.c.h.b16 %v469
    %v1183 = vunpack.c.l.b16 %v470
    %v1184 = vunpack.c.h.b16 %v470
    %v1185 = vunpack.c.l.b16 %v471
    %v1186 = vunpack.c.h.b16 %v471
    %v1187 = vunpack.c.l.b16 %v472
    %v1188 = vunpack.c.h.b16 %v472
    %v1189 = vunpack.c.l.b16 %v473
    %v1190 = vunpack.c.h.b16 %v473
    %v1191 = vunpack.c.l.b16 %v474
    %v1192 = vunpack.c.h.b16 %v474
    %v1193 = vunpack.c.l.b16 %v475
    %v1194 = vunpack.c.h.b16 %v475
    %v1195 = vunpack.c.l.b16 %v476
    %v1196 = vunpack.c.h.b16 %v476
    %v1197 = vunpack.c.l.b16 %v477
    %v1198 = vunpack.c.h.b16 %v477
    %v1199 = vunpack.c.l.b16 %v478
    %v1200 = vunpack.c.h.b16 %v478
    %v1201 = vunpack.c.l.b16 %v479
    %v1202 = vunpack.c.h.b16 %v479
    %v1203 = vunpack.c.l.b16 %v480
    %v1204 = vunpack.c.h.b16 %v480
    %v1205 = vunpack.c.l.b16 %v481
    %v1206 = vunpack.c.h.b16 %v481
    %v1207 = vunpack.c.l.b16 %v482
    %v1208 = vunpack.c.h.b16 %v482
    %v1209 = vunpack.c.l.b16 %v483
    %v1210 = vunpack.c.h.b16 %v483
    %v1211 = vunpack.c.l.b16 %v484
    %v1212 = vunpack.c.h.b16 %v484
    %v1213 = vunpack.c.l.b16 %v485
    %v1214 = vunpack.c.h.b16 %v485
    %v1215 = vunpack.c.l.b16 %v486
    %v1216 = vunpack.c.h.b16 %v486
    %v1217 = vunpack.c.l.b16 %v487
    %v1218 = vunpack.c.h.b16 %v487
    %v1219 = vunpack.c.l.b16 %v488
    %v1220 = vunpack.c.h.b16 %v488
    %v1221 = vunpack.c.l.b16 %v489
    %v1222 = vunpack.c.h.b16 %v489
    %v1223 = vunpack.c.l.b16 %v490
    %v1224 = vunpack.c.h.b16 %v490
    %v1225 = vunpack.c.l.b16 %v491
    %v1226 = vunpack.c.h.b16 %v491
    %v1227 = vunpack.c.l.b16 %v492
    %v1228 = vunpack.c.h.b16 %v492
    %v1229 = vunpack.c.l.b16 %v493
    %v1230 = vunpack.c.h.b16 %v493
    %v1231 = vunpack.c.l.b16 %v494
    %v1232 = vunpack.c.h.b16 %v494
    %v1233 = vunpack.c.l.b16 %v495
    %v1234 = vunpack.c.h.b16 %v495
    %v1235 = vunpack.c.l.b16 %v496
    %v1236 = vunpack.c.h.b16 %v496
    %v1237 = vunpack.c.l.b16 %v497
    %v1238 = vunpack.c.h.b16 %v497
    %v1239 = vunpack.c.l.b16 %v498
    %v1240 = vunpack.c.h.b16 %v498
    %v1241 = vunpack.c.l.b16 %v499
    %v1242 = vunpack.c.h.b16 %v499
    %v1243 = vunpack.c.l.b16 %v500
    %v1244 = vunpack.c.h.b16 %v500
    %v1245 = vunpack.c.l.b16 %v501
    %v1246 = vunpack.c.h.b16 %v501
    %v1247 = vunpack.c.l.b16 %v502
    %v1248 = vunpack.c.h.b16 %v502
    %v1249 = vunpack.c.l.b16 %v503
    %v1250 = vunpack.c.h.b16 %v503
    %v1251 = vunpack.c.l.b16 %v504
    %v1252 = vunpack.c.h.b16 %v504
    %v1253 = vunpack.c.l.b16 %v505
    %v1254 = vunpack.c.h.b16 %v505
    %v1255 = vunpack.c.l.b16 %v506
    %v1256 = vunpack.c.h.b16 %v506
    %v1257 = vunpack.c.l.b16 %v507
    %v1258 = vunpack.c.h.b16 %v507
    %v1259 = vunpack.c.l.b16 %v508
    %v1260 = vunpack.c.h.b16 %v508
    %v1261 = vunpack.c.l.b16 %v509
    %v1262 = vunpack.c.h.b16 %v509
    %v1263 = vunpack.c.l.b16 %v510
    %v1264 = vunpack.c.h.b16 %v510
    %v1265 = vunpack.c.l.b16 %v511
    %v1266 = vunpack.c.h.b16 %v511
    %v1267 = vunpack.c.l.b16 %v512
    %v1268 = vunpack.c.h.b16 %v512
    %v1269 = vunpack.c.l.b16 %v513
    %v1270 = vunpack.c.h.b16 %v513
    %v1271 = vunpack.c.l.b16 %v514
    %v1272 = vunpack.c.h.b16 %v514
    %v1273 = vunpack.c.l.b16 %v515
    %v1274 = vunpack.c.h.b16 %v515
    %v1275 = vunpack.c.l.b16 %v516
    %v1276 = vunpack.c.h.b16 %v516
    %v1277 = vunpack.c.l.b16 %v517
    %v1278 = vunpack.c.h.b16 %v517
    %v1279 = vunpack.c.l.b16 %v518
    %v1280 = vunpack.c.h.b16 %v518
    %v1281 = vunpack.c.l.b16 %v519
    %v1282 = vunpack.c.h.b16 %v519
    %v1283 = vunpack.c.l.b16 %v520
    %v1284 = vunpack.c.h.b16 %v520
    %v1285 = vunpack.c.l.b16 %v521
    %v1286 = vunpack.c.h.b16 %v521
    %v1287 = vunpack.c.l.b16 %v522
    %v1288 = vunpack.c.h.b16 %v522
    %v1289 = vunpack.c.l.b16 %v523
    %v1290 = vunpack.c.h.b16 %v523
    %v1291 = vunpack.c.l.b16 %v524
    %v1292 = vunpack.c.h.b16 %v524
    %v1293 = vunpack.c.l.b16 %v525
    %v1294 = vunpack.c.h.b16 %v525
    %v1295 = vunpack.c.l.b16 %v526
    %v1296 = vunpack.c.h.b16 %v526
    %v1297 = vunpack.c.l.b16 %v527
    %v1298 = vunpack.c.h.b16 %v527
    %v1299 = vunpack.c.l.b16 %v528
    %v1300 = vunpack.c.h.b16 %v528
    %v1301 = vunpack.c.l.b16 %v529
    %v1302 = vunpack.c.h.b16 %v529
    %v1303 = vunpack.c.l.b16 %v530
    %v1304 = vunpack.c.h.b16 %v530
    %v1305 = vunpack.c.l.b16 %v531
    %v1306 = vunpack.c.h.b16 %v531
    %v1307 = vunpack.c.l.b16 %v532
    %v1308 = vunpack.c.h.b16 %v532
    %v1309 = vunpack.c.l.b16 %v533
    %v1310 = vunpack.c.h.b16 %v533
    %v1311 = vunpack.c.l.b16 %v534
    %v1312 = vunpack.c.h.b16 %v534
    %v1313 = vunpack.c.l.b16 %v535
    %v1314 = vunpack.c.h.b16 %v535
    %v1315 = vunpack.c.l.b16 %v536
    %v1316 = vunpack.c.h.b16 %v536
    %v1317 = vunpack.c.l.b16 %v537
    %v1318 = vunpack.c.h.b16 %v537
    %v1319 = vunpack.c.l.b16 %v538
    %v1320 = vunpack.c.h.b16 %v538
    %v1321 = vunpack.c.l.b16 %v539
    %v1322 = vunpack.c.h.b16 %v539
    %v1323 = vunpack.c.l.b16 %v540
    %v1324 = vunpack.c.h.b16 %v540
    %v1325 = vunpack.c.l.b16 %v541
    %v1326 = vunpack.c.h.b16 %v541
    %v1327 = vunpack.c.l.b16 %v542
    %v1328 = vunpack.c.h.b16 %v542
    %v1329 = vpack.c.b16 %v825, %v817
    %v1330 = vpack.c.b16 %v826, %v818
    %v1331 = vpack.c.b16 %v827, %v819
    %v1332 = vpack.c.b16 %v828, %v820
    %v1333 = vpack.c.b16 %v829, %v821
    %v1334 = vpack.c.b16 %v830, %v822
    %v1335 = vpack.c.b16 %v831, %v823
    %v1336 = vpack.c.b16 %v832, %v824
    %v1337 = vpack.c.b16 %v841, %v833
    %v1338 = vpack.c.b16 %v842, %v834
    %v1339 = vpack.c.b16 %v843, %v835
    %v1340 = vpack.c.b16 %v844, %v836
    %v1341 = vpack.c.b16 %v845, %v837
    %v1342 = vpack.c.b16 %v846, %v838
    %v1343 = vpack.c.b16 %v847, %v839
    %v1344 = vpack.c.b16 %v848, %v840
    %v1345 = vpack.c.b16 %v857, %v849
    %v1346 = vpack.c.b16 %v858, %v850
    %v1347 = vpack.c.b16 %v859, %v851
    %v1348 = vpack.c.b16 %v860, %v852
    %v1349 = vpack.c.b16 %v861, %v853
    %v1350 = vpack.c.b16 %v862, %v854
    %v1351 = vpack.c.b16 %v863, %v855
    %v1352 = vpack.c.b16 %v864, %v856
    %v1353 = vpack.c.b16 %v873, %v865
    %v1354 = vpack.c.b16 %v874, %v866
    %v1355 = vpack.c.b16 %v875, %v867
    %v1356 = vpack.c.b16 %v876, %v868
    %v1357 = vpack.c.b16 %v877, %v869
    %v1358 = vpack.c.b16 %v878, %v870
    %v1359 = vpack.c.b16 %v879, %v871
    %v1360 = vpack.c.b16 %v880, %v872
    %v1361 = vpack.c.b16 %v889, %v881
    %v1362 = vpack.c.b16 %v890, %v882
    %v1363 = vpack.c.b16 %v891, %v883
    %v1364 = vpack.c.b16 %v892, %v884
    %v1365 = vpack.c.b16 %v893, %v885
    %v1366 = vpack.c.b16 %v894, %v886
    %v1367 = vpack.c.b16 %v895, %v887
    %v1368 = vpack.c.b16 %v896, %v888
    %v1369 = vpack.c.b16 %v905, %v897
    %v1370 = vpack.c.b16 %v906, %v898
    %v1371 = vpack.c.b16 %v907, %v899
    %v1372 = vpack.c.b16 %v908, %v900
    %v1373 = vpack.c.b16 %v909, %v901
    %v1374 = vpack.c.b16 %v910, %v902
    %v1375 = vpack.c.b16 %v911, %v903
    %v1376 = vpack.c.b16 %v912, %v904
    %v1377 = vpack.c.b16 %v921, %v913
    %v1378 = vpack.c.b16 %v922, %v914
    %v1379 = vpack.c.b16 %v923, %v915
    %v1380 = vpack.c.b16 %v924, %v916
    %v1381 = vpack.c.b16 %v925, %v917
    %v1382 = vpack.c.b16 %v926, %v918
    %v1383 = vpack.c.b16 %v927, %v919
    %v1384 = vpack.c.b16 %v928, %v920
    %v1385 = vpack.c.b16 %v937, %v929
    %v1386 = vpack.c.b16 %v938, %v930
    %v1387 = vpack.c.b16 %v939, %v931
    %v1388 = vpack.c.b16 %v940, %v932
    %v1389 = vpack.c.b16 %v941, %v933
    %v1390 = vpack.c.b16 %v942, %v934
    %v1391 = vpack.c.b16 %v943, %v935
    %v1392 = vpack.c.b16 %v944, %v936
    %v1393 = vpack.c.b16 %v953, %v945
    %v1394 = vpack.c.b16 %v954, %v946
    %v1395 = vpack.c.b16 %v955, %v947
    %v1396 = vpack.c.b16 %v956, %v948
    %v1397 = vpack.c.b16 %v957, %v949
    %v1398 = vpack.c.b16 %v958, %v950
    %v1399 = vpack.c.b16 %v959, %v951
    %v1400 = vpack.c.b16 %v960, %v952
    %v1401 = vpack.c.b16 %v969, %v961
    %v1402 = vpack.c.b16 %v970, %v962
    %v1403 = vpack.c.b16 %v971, %v963
    %v1404 = vpack.c.b16 %v972, %v964
    %v1405 = vpack.c.b16 %v973, %v965
    %v1406 = vpack.c.b16 %v974, %v966
    %v1407 = vpack.c.b16 %v975, %v967
    %v1408 = vpack.c.b16 %v976, %v968
    %v1409 = vpack.c.b16 %v985, %v977
    %v1410 = vpack.c.b16 %v986, %v978
    %v1411 = vpack.c.b16 %v987, %v979
    %v1412 = vpack.c.b16 %v988, %v980
    %v1413 = vpack.c.b16 %v989, %v981
    %v1414 = vpack.c.b16 %v990, %v982
    %v1415 = vpack.c.b16 %v991, %v983
    %v1416 = vpack.c.b16 %v992, %v984
    %v1417 = vpack.c.b16 %v1001, %v993
    %v1418 = vpack.c.b16 %v1002, %v994
    %v1419 = vpack.c.b16 %v1003, %v995
    %v1420 = vpack.c.b16 %v1004, %v996
    %v1421 = vpack.c.b16 %v1005, %v997
    %v1422 = vpack.c.b16 %v1006, %v998
    %v1423 = vpack.c.b16 %v1007, %v999
    %v1424 = vpack.c.b16 %v1008, %v1000
    %v1425 = vpack.c.b16 %v1017, %v1009
    %v1426 = vpack.c.b16 %v1018, %v1010
    %v1427 = vpack.c.b16 %v1019, %v1011
    %v1428 = vpack.c.b16 %v1020, %v1012
    %v1429 = vpack.c.b16 %v1021, %v1013
    %v1430 = vpack.c.b16 %v1022, %v1014
    %v1431 = vpack.c.b16 %v1023, %v1015
    %v1432 = vpack.c.b16 %v1024, %v1016
    %v1433 = vpack.c.b16 %v1033, %v1025
    %v1434 = vpack.c.b16 %v1034, %v1026
    %v1435 = vpack.c.b16 %v1035, %v1027
    %v1436 = vpack.c.b16 %v1036, %v1028
    %v1437 = vpack.c.b16 %v1037, %v1029
    %v1438 = vpack.c.b16 %v1038, %v1030
    %v1439 = vpack.c.b16 %v1039, %v1031
    %v1440 = vpack.c.b16 %v1040, %v1032
    %v1441 = vpack.c.b16 %v1049, %v1041
    %v1442 = vpack.c.b16 %v1050, %v1042
    %v1443 = vpack.c.b16 %v1051, %v1043
    %v1444 = vpack.c.b16 %v1052, %v1044
    %v1445 = vpack.c.b16 %v1053, %v1045
    %v1446 = vpack.c.b16 %v1054, %v1046
    %v1447 = vpack.c.b16 %v1055, %v1047
    %v1448 = vpack.c.b16 %v1056, %v1048
    %v1449 = vpack.c.b16 %v1065, %v1057
    %v1450 = vpack.c.b16 %v1066, %v1058
    %v1451 = vpack.c.b16 %v1067, %v1059
    %v1452 = vpack.c.b16 %v1068, %v1060
    %v1453 = vpack.c.b16 %v1069, %v1061
    %v1454 = vpack.c.b16 %v1070, %v1062
    %v1455 = vpack.c.b16 %v1071, %v1063
    %v1456 = vpack.c.b16 %v1072, %v1064
    %v1457 = vpack.c.b16 %v1081, %v1073
    %v1458 = vpack.c.b16 %v1082, %v1074
    %v1459 = vpack.c.b16 %v1083, %v1075
    %v1460 = vpack.c.b16 %v1084, %v1076
    %v1461 = vpack.c.b16 %v1085, %v1077
    %v1462 = vpack.c.b16 %v1086, %v1078
    %v1463 = vpack.c.b16 %v1087, %v1079
    %v1464 = vpack.c.b16 %v1088, %v1080
    %v1465 = vpack.c.b16 %v1097, %v1089
    %v1466 = vpack.c.b16 %v1098, %v1090
    %v1467 = vpack.c.b16 %v1099, %v1091
    %v1468 = vpack.c.b16 %v1100, %v1092
    %v1469 = vpack.c.b16 %v1101, %v1093
    %v1470 = vpack.c.b16 %v1102, %v1094
    %v1471 = vpack.c.b16 %v1103, %v1095
    %v1472 = vpack.c.b16 %v1104, %v1096
    %v1473 = vpack.c.b16 %v1113, %v1105
    %v1474 = vpack.c.b16 %v1114, %v1106
    %v1475 = vpack.c.b16 %v1115, %v1107
    %v1476 = vpack.c.b16 %v1116, %v1108
    %v1477 = vpack.c.b16 %v1117, %v1109
    %v1478 = vpack.c.b16 %v1118, %v1110
    %v1479 = vpack.c.b16 %v1119, %v1111
    %v1480 = vpack.c.b16 %v1120, %v1112
    %v1481 = vpack.c.b16 %v1129, %v1121
    %v1482 = vpack.c.b16 %v1130, %v1122
    %v1483 = vpack.c.b16 %v1131, %v1123
    %v1484 = vpack.c.b16 %v1132, %v1124
    %v1485 = vpack.c.b16 %v1133, %v1125
    %v1486 = vpack.c.b16 %v1134, %v1126
    %v1487 = vpack.c.b16 %v1135, %v1127
    %v1488 = vpack.c.b16 %v1136, %v1128
    %v1489 = vpack.c.b16 %v1145, %v1137
    %v1490 = vpack.c.b16 %v1146, %v1138
    %v1491 = vpack.c.b16 %v1147, %v1139
    %v1492 = vpack.c.b16 %v1148, %v1140
    %v1493 = vpack.c.b16 %v1149, %v1141
    %v1494 = vpack.c.b16 %v1150, %v1142
    %v1495 = vpack.c.b16 %v1151, %v1143
    %v1496 = vpack.c.b16 %v1152, %v1144
    %v1497 = vpack.c.b16 %v1161, %v1153
    %v1498 = vpack.c.b16 %v1162, %v1154
    %v1499 = vpack.c.b16 %v1163, %v1155
    %v1500 = vpack.c.b16 %v1164, %v1156
    %v1501 = vpack.c.b16 %v1165, %v1157
    %v1502 = vpack.c.b16 %v1166, %v1158
    %v1503 = vpack.c.b16 %v1167, %v1159
    %v1504 = vpack.c.b16 %v1168, %v1160
    %v1505 = vpack.c.b16 %v1177, %v1169
    %v1506 = vpack.c.b16 %v1178, %v1170
    %v1507 = vpack.c.b16 %v1179, %v1171
    %v1508 = vpack.c.b16 %v1180, %v1172
    %v1509 = vpack.c.b16 %v1181, %v1173
    %v1510 = vpack.c.b16 %v1182, %v1174
    %v1511 = vpack.c.b16 %v1183, %v1175
    %v1512 = vpack.c.b16 %v1184, %v1176
    %v1513 = vpack.c.b16 %v1193, %v1185
    %v1514 = vpack.c.b16 %v1194, %v1186
    %v1515 = vpack.c.b16 %v1195, %v1187
    %v1516 = vpack.c.b16 %v1196, %v1188
    %v1517 = vpack.c.b16 %v1197, %v1189
    %v1518 = vpack.c.b16 %v1198, %v1190
    %v1519 = vpack.c.b16 %v1199, %v1191
    %v1520 = vpack.c.b16 %v1200, %v1192
    %v1521 = vpack.c.b16 %v1209, %v1201
    %v1522 = vpack.c.b16 %v1210, %v1202
    %v1523 = vpack.c.b16 %v1211, %v1203
    %v1524 = vpack.c.b16 %v1212, %v1204
    %v1525 = vpack.c.b16 %v1213, %v1205
    %v1526 = vpack.c.b16 %v1214, %v1206
    %v1527 = vpack.c.b16 %v1215, %v1207
    %v1528 = vpack.c.b16 %v1216, %v1208
    %v1529 = vpack.c.b16 %v1225, %v1217
    %v1530 = vpack.c.b16 %v1226, %v1218
    %v1531 = vpack.c.b16 %v1227, %v1219
    %v1532 = vpack.c.b16 %v1228, %v1220
    %v1533 = vpack.c.b16 %v1229, %v1221
    %v1534 = vpack.c.b16 %v1230, %v1222
    %v1535 = vpack.c.b16 %v1231, %v1223
    %v1536 = vpack.c.b16 %v1232, %v1224
    %v1537 = vpack.c.b16 %v1241, %v1233
    %v1538 = vpack.c.b16 %v1242, %v1234
    %v1539 = vpack.c.b16 %v1243, %v1235
    %v1540 = vpack.c.b16 %v1244, %v1236
    %v1541 = vpack.c.b16 %v1245, %v1237
    %v1542 = vpack.c.b16 %v1246, %v1238
    %v1543 = vpack.c.b16 %v1247, %v1239
    %v1544 = vpack.c.b16 %v1248, %v1240
    %v1545 = vpack.c.b16 %v1257, %v1249
    %v1546 = vpack.c.b16 %v1258, %v1250
    %v1547 = vpack.c.b16 %v1259, %v1251
    %v1548 = vpack.c.b16 %v1260, %v1252
    %v1549 = vpack.c.b16 %v1261, %v1253
    %v1550 = vpack.c.b16 %v1262, %v1254
    %v1551 = vpack.c.b16 %v1263, %v1255
    %v1552 = vpack.c.b16 %v1264, %v1256
    %v1553 = vpack.c.b16 %v1273, %v1265
    %v1554 = vpack.c.b16 %v1274, %v1266
    %v1555 = vpack.c.b16 %v1275, %v1267
    %v1556 = vpack.c.b16 %v1276, %v1268
    %v1557 = vpack.c.b16 %v1277, %v1269
    %v1558 = vpack.c.b16 %v1278, %v1270
    %v1559 = vpack.c.b16 %v1279, %v1271
    %v1560 = vpack.c.b16 %v1280, %v1272
    %v1561 = vpack.c.b16 %v1289, %v1281
    %v1562 = vpack.c.b16 %v1290, %v1282
    %v1563 = vpack.c.b16 %v1291, %v1283
    %v1564 = vpack.c.b16 %v1292, %v1284
    %v1565 = vpack.c.b16 %v1293, %v1285
    %v1566 = vpack.c.b16 %v1294, %v1286
    %v1567 = vpack.c.b16 %v1295, %v1287
    %v1568 = vpack.c.b16 %v1296, %v1288
    %v1569 = vpack.c.b16 %v1305, %v1297
    %v1570 = vpack.c.b16 %v1306, %v1298
    %v1571 = vpack.c.b16 %v1307, %v1299
    %v1572 = vpack.c.b16 %v1308, %v1300
    %v1573 = vpack.c.b16 %v1309, %v1301
    %v1574 = vpack.c.b16 %v1310, %v1302
    %v1575 = vpack.c.b16 %v1311, %v1303
    %v1576 = vpack.c.b16 %v1312, %v1304
    %v1577 = vpack.c.b16 %v1321, %v1313
    %v1578 = vpack.c.b16 %v1322, %v1314
    %v1579 = vpack.c.b16 %v1323, %v1315
    %v1580 = vpack.c.b16 %v1324, %v1316
    %v1581 = vpack.c.b16 %v1325, %v1317
    %v1582 = vpack.c.b16 %v1326, %v1318
    %v1583 = vpack.c.b16 %v1327, %v1319
    %v1584 = vpack.c.b16 %v1328, %v1320
    %1841 = vmatpush.bf16.msra.mxu0 %v1385
    %1842 = vmatpush.bf16.msra.mxu0 %v1377
    %1843 = vmatpush.bf16.msra.mxu0 %v1369
    %1844 = vmatpush.bf16.msra.mxu0 %v1361
    %1845 = vmatpush.bf16.msra.mxu0 %v1353
    %1846 = vmatpush.bf16.msra.mxu0 %v1345
    %1847 = vmatpush.bf16.msra.mxu0 %v1337
    %1848 = vmatpush.bf16.msra.mxu0 %v1329
    %1849 = vmatmul.bf16.gmra.mxu0 %v283
    %v1850 = vpop.f32.mrf.mxu0
    %v1851 = vadd.f32 %v545, %v1850
    %v1852 = vpop.f32.mrf.mxu0
    %1853 = vdwg.mxu0
    %1854 = vmatpush.bf16.msra.mxu0 %v1449
    %1855 = vmatpush.bf16.msra.mxu0 %v1441
    %1856 = vmatpush.bf16.msra.mxu0 %v1433
    %1857 = vmatpush.bf16.msra.mxu0 %v1425
    %1858 = vmatpush.bf16.msra.mxu0 %v1417
    %1859 = vmatpush.bf16.msra.mxu0 %v1409
    %1860 = vmatpush.bf16.msra.mxu0 %v1401
    %1861 = vmatpush.bf16.msra.mxu0 %v1393
    %1862 = vmatmul.bf16.gmra.mxu0 %v284
    %v1863 = vpop.f32.mrf.mxu0
    %v1864 = vadd.f32 %v1851, %v1863
    %v1865 = vpop.f32.mrf.mxu0
    %1866 = vdwg.mxu0
    %1867 = vmatpush.bf16.msra.mxu0 %v1513
    %1868 = vmatpush.bf16.msra.mxu0 %v1505
    %1869 = vmatpush.bf16.msra.mxu0 %v1497
    %1870 = vmatpush.bf16.msra.mxu0 %v1489
    %1871 = vmatpush.bf16.msra.mxu0 %v1481
    %1872 = vmatpush.bf16.msra.mxu0 %v1473
    %1873 = vmatpush.bf16.msra.mxu0 %v1465
    %1874 = vmatpush.bf16.msra.mxu0 %v1457
    %1875 = vmatmul.bf16.gmra.mxu0 %v285
    %v1876 = vpop.f32.mrf.mxu0
    %v1877 = vadd.f32 %v1864, %v1876
    %v1878 = vpop.f32.mrf.mxu0
    %1879 = vdwg.mxu0
    %1880 = vmatpush.bf16.msra.mxu0 %v1577
    %1881 = vmatpush.bf16.msra.mxu0 %v1569
    %1882 = vmatpush.bf16.msra.mxu0 %v1561
    %1883 = vmatpush.bf16.msra.mxu0 %v1553
    %1884 = vmatpush.bf16.msra.mxu0 %v1545
    %1885 = vmatpush.bf16.msra.mxu0 %v1537
    %1886 = vmatpush.bf16.msra.mxu0 %v1529
    %1887 = vmatpush.bf16.msra.mxu0 %v1521
    %1888 = vmatmul.bf16.gmra.mxu0 %v286
    %v1889 = vpop.f32.mrf.mxu0
    %v1890 = vadd.f32 %v1877, %v1889
    %v1891 = vpop.f32.mrf.mxu0
    %1892 = vdwg.mxu0
    %1893 = vmatpush.bf16.msra.mxu0 %v1386
    %1894 = vmatpush.bf16.msra.mxu0 %v1378
    %1895 = vmatpush.bf16.msra.mxu0 %v1370
    %1896 = vmatpush.bf16.msra.mxu0 %v1362
    %1897 = vmatpush.bf16.msra.mxu0 %v1354
    %1898 = vmatpush.bf16.msra.mxu0 %v1346
    %1899 = vmatpush.bf16.msra.mxu0 %v1338
    %1900 = vmatpush.bf16.msra.mxu0 %v1330
    %1901 = vmatmul.bf16.gmra.mxu0 %v283
    %v1902 = vpop.f32.mrf.mxu0
    %v1903 = vadd.f32 %v546, %v1902
    %v1904 = vpop.f32.mrf.mxu0
    %1905 = vdwg.mxu0
    %1906 = vmatpush.bf16.msra.mxu0 %v1450
    %1907 = vmatpush.bf16.msra.mxu0 %v1442
    %1908 = vmatpush.bf16.msra.mxu0 %v1434
    %1909 = vmatpush.bf16.msra.mxu0 %v1426
    %1910 = vmatpush.bf16.msra.mxu0 %v1418
    %1911 = vmatpush.bf16.msra.mxu0 %v1410
    %1912 = vmatpush.bf16.msra.mxu0 %v1402
    %1913 = vmatpush.bf16.msra.mxu0 %v1394
    %1914 = vmatmul.bf16.gmra.mxu0 %v284
    %v1915 = vpop.f32.mrf.mxu0
    %v1916 = vadd.f32 %v1903, %v1915
    %v1917 = vpop.f32.mrf.mxu0
    %1918 = vdwg.mxu0
    %1919 = vmatpush.bf16.msra.mxu0 %v1514
    %1920 = vmatpush.bf16.msra.mxu0 %v1506
    %1921 = vmatpush.bf16.msra.mxu0 %v1498
    %1922 = vmatpush.bf16.msra.mxu0 %v1490
    %1923 = vmatpush.bf16.msra.mxu0 %v1482
    %1924 = vmatpush.bf16.msra.mxu0 %v1474
    %1925 = vmatpush.bf16.msra.mxu0 %v1466
    %1926 = vmatpush.bf16.msra.mxu0 %v1458
    %1927 = vmatmul.bf16.gmra.mxu0 %v285
    %v1928 = vpop.f32.mrf.mxu0
    %v1929 = vadd.f32 %v1916, %v1928
    %v1930 = vpop.f32.mrf.mxu0
    %1931 = vdwg.mxu0
    %1932 = vmatpush.bf16.msra.mxu0 %v1578
    %1933 = vmatpush.bf16.msra.mxu0 %v1570
    %1934 = vmatpush.bf16.msra.mxu0 %v1562
    %1935 = vmatpush.bf16.msra.mxu0 %v1554
    %1936 = vmatpush.bf16.msra.mxu0 %v1546
    %1937 = vmatpush.bf16.msra.mxu0 %v1538
    %1938 = vmatpush.bf16.msra.mxu0 %v1530
    %1939 = vmatpush.bf16.msra.mxu0 %v1522
    %1940 = vmatmul.bf16.gmra.mxu0 %v286
    %v1941 = vpop.f32.mrf.mxu0
    %v1942 = vadd.f32 %v1929, %v1941
    %v1943 = vpop.f32.mrf.mxu0
    %1944 = vdwg.mxu0
    %1945 = vmatpush.bf16.msra.mxu0 %v1387
    %1946 = vmatpush.bf16.msra.mxu0 %v1379
    %1947 = vmatpush.bf16.msra.mxu0 %v1371
    %1948 = vmatpush.bf16.msra.mxu0 %v1363
    %1949 = vmatpush.bf16.msra.mxu0 %v1355
    %1950 = vmatpush.bf16.msra.mxu0 %v1347
    %1951 = vmatpush.bf16.msra.mxu0 %v1339
    %1952 = vmatpush.bf16.msra.mxu0 %v1331
    %1953 = vmatmul.bf16.gmra.mxu0 %v283
    %v1954 = vpop.f32.mrf.mxu0
    %v1955 = vadd.f32 %v547, %v1954
    %v1956 = vpop.f32.mrf.mxu0
    %1957 = vdwg.mxu0
    %1958 = vmatpush.bf16.msra.mxu0 %v1451
    %1959 = vmatpush.bf16.msra.mxu0 %v1443
    %1960 = vmatpush.bf16.msra.mxu0 %v1435
    %1961 = vmatpush.bf16.msra.mxu0 %v1427
    %1962 = vmatpush.bf16.msra.mxu0 %v1419
    %1963 = vmatpush.bf16.msra.mxu0 %v1411
    %1964 = vmatpush.bf16.msra.mxu0 %v1403
    %1965 = vmatpush.bf16.msra.mxu0 %v1395
    %1966 = vmatmul.bf16.gmra.mxu0 %v284
    %v1967 = vpop.f32.mrf.mxu0
    %v1968 = vadd.f32 %v1955, %v1967
    %v1969 = vpop.f32.mrf.mxu0
    %1970 = vdwg.mxu0
    %1971 = vmatpush.bf16.msra.mxu0 %v1515
    %1972 = vmatpush.bf16.msra.mxu0 %v1507
    %1973 = vmatpush.bf16.msra.mxu0 %v1499
    %1974 = vmatpush.bf16.msra.mxu0 %v1491
    %1975 = vmatpush.bf16.msra.mxu0 %v1483
    %1976 = vmatpush.bf16.msra.mxu0 %v1475
    %1977 = vmatpush.bf16.msra.mxu0 %v1467
    %1978 = vmatpush.bf16.msra.mxu0 %v1459
    %1979 = vmatmul.bf16.gmra.mxu0 %v285
    %v1980 = vpop.f32.mrf.mxu0
    %v1981 = vadd.f32 %v1968, %v1980
    %v1982 = vpop.f32.mrf.mxu0
    %1983 = vdwg.mxu0
    %1984 = vmatpush.bf16.msra.mxu0 %v1579
    %1985 = vmatpush.bf16.msra.mxu0 %v1571
    %1986 = vmatpush.bf16.msra.mxu0 %v1563
    %1987 = vmatpush.bf16.msra.mxu0 %v1555
    %1988 = vmatpush.bf16.msra.mxu0 %v1547
    %1989 = vmatpush.bf16.msra.mxu0 %v1539
    %1990 = vmatpush.bf16.msra.mxu0 %v1531
    %1991 = vmatpush.bf16.msra.mxu0 %v1523
    %1992 = vmatmul.bf16.gmra.mxu0 %v286
    %v1993 = vpop.f32.mrf.mxu0
    %v1994 = vadd.f32 %v1981, %v1993
    %v1995 = vpop.f32.mrf.mxu0
    %1996 = vdwg.mxu0
    %1997 = vmatpush.bf16.msra.mxu0 %v1388
    %1998 = vmatpush.bf16.msra.mxu0 %v1380
    %1999 = vmatpush.bf16.msra.mxu0 %v1372
    %2000 = vmatpush.bf16.msra.mxu0 %v1364
    %2001 = vmatpush.bf16.msra.mxu0 %v1356
    %2002 = vmatpush.bf16.msra.mxu0 %v1348
    %2003 = vmatpush.bf16.msra.mxu0 %v1340
    %2004 = vmatpush.bf16.msra.mxu0 %v1332
    %2005 = vmatmul.bf16.gmra.mxu0 %v283
    %v2006 = vpop.f32.mrf.mxu0
    %v2007 = vadd.f32 %v548, %v2006
    %v2008 = vpop.f32.mrf.mxu0
    %2009 = vdwg.mxu0
    %2010 = vmatpush.bf16.msra.mxu0 %v1452
    %2011 = vmatpush.bf16.msra.mxu0 %v1444
    %2012 = vmatpush.bf16.msra.mxu0 %v1436
    %2013 = vmatpush.bf16.msra.mxu0 %v1428
    %2014 = vmatpush.bf16.msra.mxu0 %v1420
    %2015 = vmatpush.bf16.msra.mxu0 %v1412
    %2016 = vmatpush.bf16.msra.mxu0 %v1404
    %2017 = vmatpush.bf16.msra.mxu0 %v1396
    %2018 = vmatmul.bf16.gmra.mxu0 %v284
    %v2019 = vpop.f32.mrf.mxu0
    %v2020 = vadd.f32 %v2007, %v2019
    %v2021 = vpop.f32.mrf.mxu0
    %2022 = vdwg.mxu0
    %2023 = vmatpush.bf16.msra.mxu0 %v1516
    %2024 = vmatpush.bf16.msra.mxu0 %v1508
    %2025 = vmatpush.bf16.msra.mxu0 %v1500
    %2026 = vmatpush.bf16.msra.mxu0 %v1492
    %2027 = vmatpush.bf16.msra.mxu0 %v1484
    %2028 = vmatpush.bf16.msra.mxu0 %v1476
    %2029 = vmatpush.bf16.msra.mxu0 %v1468
    %2030 = vmatpush.bf16.msra.mxu0 %v1460
    %2031 = vmatmul.bf16.gmra.mxu0 %v285
    %v2032 = vpop.f32.mrf.mxu0
    %v2033 = vadd.f32 %v2020, %v2032
    %v2034 = vpop.f32.mrf.mxu0
    %2035 = vdwg.mxu0
    %2036 = vmatpush.bf16.msra.mxu0 %v1580
    %2037 = vmatpush.bf16.msra.mxu0 %v1572
    %2038 = vmatpush.bf16.msra.mxu0 %v1564
    %2039 = vmatpush.bf16.msra.mxu0 %v1556
    %2040 = vmatpush.bf16.msra.mxu0 %v1548
    %2041 = vmatpush.bf16.msra.mxu0 %v1540
    %2042 = vmatpush.bf16.msra.mxu0 %v1532
    %2043 = vmatpush.bf16.msra.mxu0 %v1524
    %2044 = vmatmul.bf16.gmra.mxu0 %v286
    %v2045 = vpop.f32.mrf.mxu0
    %v2046 = vadd.f32 %v2033, %v2045
    %v2047 = vpop.f32.mrf.mxu0
    %2048 = vdwg.mxu0
    %2049 = vmatpush.bf16.msra.mxu0 %v1389
    %2050 = vmatpush.bf16.msra.mxu0 %v1381
    %2051 = vmatpush.bf16.msra.mxu0 %v1373
    %2052 = vmatpush.bf16.msra.mxu0 %v1365
    %2053 = vmatpush.bf16.msra.mxu0 %v1357
    %2054 = vmatpush.bf16.msra.mxu0 %v1349
    %2055 = vmatpush.bf16.msra.mxu0 %v1341
    %2056 = vmatpush.bf16.msra.mxu0 %v1333
    %2057 = vmatmul.bf16.gmra.mxu0 %v283
    %v2058 = vpop.f32.mrf.mxu0
    %v2059 = vadd.f32 %v549, %v2058
    %v2060 = vpop.f32.mrf.mxu0
    %2061 = vdwg.mxu0
    %2062 = vmatpush.bf16.msra.mxu0 %v1453
    %2063 = vmatpush.bf16.msra.mxu0 %v1445
    %2064 = vmatpush.bf16.msra.mxu0 %v1437
    %2065 = vmatpush.bf16.msra.mxu0 %v1429
    %2066 = vmatpush.bf16.msra.mxu0 %v1421
    %2067 = vmatpush.bf16.msra.mxu0 %v1413
    %2068 = vmatpush.bf16.msra.mxu0 %v1405
    %2069 = vmatpush.bf16.msra.mxu0 %v1397
    %2070 = vmatmul.bf16.gmra.mxu0 %v284
    %v2071 = vpop.f32.mrf.mxu0
    %v2072 = vadd.f32 %v2059, %v2071
    %v2073 = vpop.f32.mrf.mxu0
    %2074 = vdwg.mxu0
    %2075 = vmatpush.bf16.msra.mxu0 %v1517
    %2076 = vmatpush.bf16.msra.mxu0 %v1509
    %2077 = vmatpush.bf16.msra.mxu0 %v1501
    %2078 = vmatpush.bf16.msra.mxu0 %v1493
    %2079 = vmatpush.bf16.msra.mxu0 %v1485
    %2080 = vmatpush.bf16.msra.mxu0 %v1477
    %2081 = vmatpush.bf16.msra.mxu0 %v1469
    %2082 = vmatpush.bf16.msra.mxu0 %v1461
    %2083 = vmatmul.bf16.gmra.mxu0 %v285
    %v2084 = vpop.f32.mrf.mxu0
    %v2085 = vadd.f32 %v2072, %v2084
    %v2086 = vpop.f32.mrf.mxu0
    %2087 = vdwg.mxu0
    %2088 = vmatpush.bf16.msra.mxu0 %v1581
    %2089 = vmatpush.bf16.msra.mxu0 %v1573
    %2090 = vmatpush.bf16.msra.mxu0 %v1565
    %2091 = vmatpush.bf16.msra.mxu0 %v1557
    %2092 = vmatpush.bf16.msra.mxu0 %v1549
    %2093 = vmatpush.bf16.msra.mxu0 %v1541
    %2094 = vmatpush.bf16.msra.mxu0 %v1533
    %2095 = vmatpush.bf16.msra.mxu0 %v1525
    %2096 = vmatmul.bf16.gmra.mxu0 %v286
    %v2097 = vpop.f32.mrf.mxu0
    %v2098 = vadd.f32 %v2085, %v2097
    %v2099 = vpop.f32.mrf.mxu0
    %2100 = vdwg.mxu0
    %2101 = vmatpush.bf16.msra.mxu0 %v1390
    %2102 = vmatpush.bf16.msra.mxu0 %v1382
    %2103 = vmatpush.bf16.msra.mxu0 %v1374
    %2104 = vmatpush.bf16.msra.mxu0 %v1366
    %2105 = vmatpush.bf16.msra.mxu0 %v1358
    %2106 = vmatpush.bf16.msra.mxu0 %v1350
    %2107 = vmatpush.bf16.msra.mxu0 %v1342
    %2108 = vmatpush.bf16.msra.mxu0 %v1334
    %2109 = vmatmul.bf16.gmra.mxu0 %v283
    %v2110 = vpop.f32.mrf.mxu0
    %v2111 = vadd.f32 %v550, %v2110
    %v2112 = vpop.f32.mrf.mxu0
    %2113 = vdwg.mxu0
    %2114 = vmatpush.bf16.msra.mxu0 %v1454
    %2115 = vmatpush.bf16.msra.mxu0 %v1446
    %2116 = vmatpush.bf16.msra.mxu0 %v1438
    %2117 = vmatpush.bf16.msra.mxu0 %v1430
    %2118 = vmatpush.bf16.msra.mxu0 %v1422
    %2119 = vmatpush.bf16.msra.mxu0 %v1414
    %2120 = vmatpush.bf16.msra.mxu0 %v1406
    %2121 = vmatpush.bf16.msra.mxu0 %v1398
    %2122 = vmatmul.bf16.gmra.mxu0 %v284
    %v2123 = vpop.f32.mrf.mxu0
    %v2124 = vadd.f32 %v2111, %v2123
    %v2125 = vpop.f32.mrf.mxu0
    %2126 = vdwg.mxu0
    %2127 = vmatpush.bf16.msra.mxu0 %v1518
    %2128 = vmatpush.bf16.msra.mxu0 %v1510
    %2129 = vmatpush.bf16.msra.mxu0 %v1502
    %2130 = vmatpush.bf16.msra.mxu0 %v1494
    %2131 = vmatpush.bf16.msra.mxu0 %v1486
    %2132 = vmatpush.bf16.msra.mxu0 %v1478
    %2133 = vmatpush.bf16.msra.mxu0 %v1470
    %2134 = vmatpush.bf16.msra.mxu0 %v1462
    %2135 = vmatmul.bf16.gmra.mxu0 %v285
    %v2136 = vpop.f32.mrf.mxu0
    %v2137 = vadd.f32 %v2124, %v2136
    %v2138 = vpop.f32.mrf.mxu0
    %2139 = vdwg.mxu0
    %2140 = vmatpush.bf16.msra.mxu0 %v1582
    %2141 = vmatpush.bf16.msra.mxu0 %v1574
    %2142 = vmatpush.bf16.msra.mxu0 %v1566
    %2143 = vmatpush.bf16.msra.mxu0 %v1558
    %2144 = vmatpush.bf16.msra.mxu0 %v1550
    %2145 = vmatpush.bf16.msra.mxu0 %v1542
    %2146 = vmatpush.bf16.msra.mxu0 %v1534
    %2147 = vmatpush.bf16.msra.mxu0 %v1526
    %2148 = vmatmul.bf16.gmra.mxu0 %v286
    %v2149 = vpop.f32.mrf.mxu0
    %v2150 = vadd.f32 %v2137, %v2149
    %v2151 = vpop.f32.mrf.mxu0
    %2152 = vdwg.mxu0
    %2153 = vmatpush.bf16.msra.mxu0 %v1391
    %2154 = vmatpush.bf16.msra.mxu0 %v1383
    %2155 = vmatpush.bf16.msra.mxu0 %v1375
    %2156 = vmatpush.bf16.msra.mxu0 %v1367
    %2157 = vmatpush.bf16.msra.mxu0 %v1359
    %2158 = vmatpush.bf16.msra.mxu0 %v1351
    %2159 = vmatpush.bf16.msra.mxu0 %v1343
    %2160 = vmatpush.bf16.msra.mxu0 %v1335
    %2161 = vmatmul.bf16.gmra.mxu0 %v283
    %v2162 = vpop.f32.mrf.mxu0
    %v2163 = vadd.f32 %v551, %v2162
    %v2164 = vpop.f32.mrf.mxu0
    %2165 = vdwg.mxu0
    %2166 = vmatpush.bf16.msra.mxu0 %v1455
    %2167 = vmatpush.bf16.msra.mxu0 %v1447
    %2168 = vmatpush.bf16.msra.mxu0 %v1439
    %2169 = vmatpush.bf16.msra.mxu0 %v1431
    %2170 = vmatpush.bf16.msra.mxu0 %v1423
    %2171 = vmatpush.bf16.msra.mxu0 %v1415
    %2172 = vmatpush.bf16.msra.mxu0 %v1407
    %2173 = vmatpush.bf16.msra.mxu0 %v1399
    %2174 = vmatmul.bf16.gmra.mxu0 %v284
    %v2175 = vpop.f32.mrf.mxu0
    %v2176 = vadd.f32 %v2163, %v2175
    %v2177 = vpop.f32.mrf.mxu0
    %2178 = vdwg.mxu0
    %2179 = vmatpush.bf16.msra.mxu0 %v1519
    %2180 = vmatpush.bf16.msra.mxu0 %v1511
    %2181 = vmatpush.bf16.msra.mxu0 %v1503
    %2182 = vmatpush.bf16.msra.mxu0 %v1495
    %2183 = vmatpush.bf16.msra.mxu0 %v1487
    %2184 = vmatpush.bf16.msra.mxu0 %v1479
    %2185 = vmatpush.bf16.msra.mxu0 %v1471
    %2186 = vmatpush.bf16.msra.mxu0 %v1463
    %2187 = vmatmul.bf16.gmra.mxu0 %v285
    %v2188 = vpop.f32.mrf.mxu0
    %v2189 = vadd.f32 %v2176, %v2188
    %v2190 = vpop.f32.mrf.mxu0
    %2191 = vdwg.mxu0
    %2192 = vmatpush.bf16.msra.mxu0 %v1583
    %2193 = vmatpush.bf16.msra.mxu0 %v1575
    %2194 = vmatpush.bf16.msra.mxu0 %v1567
    %2195 = vmatpush.bf16.msra.mxu0 %v1559
    %2196 = vmatpush.bf16.msra.mxu0 %v1551
    %2197 = vmatpush.bf16.msra.mxu0 %v1543
    %2198 = vmatpush.bf16.msra.mxu0 %v1535
    %2199 = vmatpush.bf16.msra.mxu0 %v1527
    %2200 = vmatmul.bf16.gmra.mxu0 %v286
    %v2201 = vpop.f32.mrf.mxu0
    %v2202 = vadd.f32 %v2189, %v2201
    %v2203 = vpop.f32.mrf.mxu0
    %2204 = vdwg.mxu0
    %2205 = vmatpush.bf16.msra.mxu0 %v1392
    %2206 = vmatpush.bf16.msra.mxu0 %v1384
    %2207 = vmatpush.bf16.msra.mxu0 %v1376
    %2208 = vmatpush.bf16.msra.mxu0 %v1368
    %2209 = vmatpush.bf16.msra.mxu0 %v1360
    %2210 = vmatpush.bf16.msra.mxu0 %v1352
    %2211 = vmatpush.bf16.msra.mxu0 %v1344
    %2212 = vmatpush.bf16.msra.mxu0 %v1336
    %2213 = vmatmul.bf16.gmra.mxu0 %v283
    %v2214 = vpop.f32.mrf.mxu0
    %v2215 = vadd.f32 %v552, %v2214
    %v2216 = vpop.f32.mrf.mxu0
    %2217 = vdwg.mxu0
    %2218 = vmatpush.bf16.msra.mxu0 %v1456
    %2219 = vmatpush.bf16.msra.mxu0 %v1448
    %2220 = vmatpush.bf16.msra.mxu0 %v1440
    %2221 = vmatpush.bf16.msra.mxu0 %v1432
    %2222 = vmatpush.bf16.msra.mxu0 %v1424
    %2223 = vmatpush.bf16.msra.mxu0 %v1416
    %2224 = vmatpush.bf16.msra.mxu0 %v1408
    %2225 = vmatpush.bf16.msra.mxu0 %v1400
    %2226 = vmatmul.bf16.gmra.mxu0 %v284
    %v2227 = vpop.f32.mrf.mxu0
    %v2228 = vadd.f32 %v2215, %v2227
    %v2229 = vpop.f32.mrf.mxu0
    %2230 = vdwg.mxu0
    %2231 = vmatpush.bf16.msra.mxu0 %v1520
    %2232 = vmatpush.bf16.msra.mxu0 %v1512
    %2233 = vmatpush.bf16.msra.mxu0 %v1504
    %2234 = vmatpush.bf16.msra.mxu0 %v1496
    %2235 = vmatpush.bf16.msra.mxu0 %v1488
    %2236 = vmatpush.bf16.msra.mxu0 %v1480
    %2237 = vmatpush.bf16.msra.mxu0 %v1472
    %2238 = vmatpush.bf16.msra.mxu0 %v1464
    %2239 = vmatmul.bf16.gmra.mxu0 %v285
    %v2240 = vpop.f32.mrf.mxu0
    %v2241 = vadd.f32 %v2228, %v2240
    %v2242 = vpop.f32.mrf.mxu0
    %2243 = vdwg.mxu0
    %2244 = vmatpush.bf16.msra.mxu0 %v1584
    %2245 = vmatpush.bf16.msra.mxu0 %v1576
    %2246 = vmatpush.bf16.msra.mxu0 %v1568
    %2247 = vmatpush.bf16.msra.mxu0 %v1560
    %2248 = vmatpush.bf16.msra.mxu0 %v1552
    %2249 = vmatpush.bf16.msra.mxu0 %v1544
    %2250 = vmatpush.bf16.msra.mxu0 %v1536
    %2251 = vmatpush.bf16.msra.mxu0 %v1528
    %2252 = vmatmul.bf16.gmra.mxu0 %v286
    %v2253 = vpop.f32.mrf.mxu0
    %v2254 = vadd.f32 %v2241, %v2253
    %v2255 = vpop.f32.mrf.mxu0
    %2256 = vdwg.mxu0
    %v2257 = vmax.f32 %v1890, 0.0
    %v2258 = vmax.f32 %v1942, 0.0
    %v2259 = vmax.f32 %v1994, 0.0
    %v2260 = vmax.f32 %v2046, 0.0
    %v2261 = vmax.f32 %v2098, 0.0
    %v2262 = vmax.f32 %v2150, 0.0
    %v2263 = vmax.f32 %v2202, 0.0
    %v2264 = vmax.f32 %v2254, 0.0
    %v2265 = vpack.c.bf16 %v2257, %v2257
    %v2266 = vpack.c.bf16 %v2258, %v2258
    %v2267 = vpack.c.bf16 %v2259, %v2259
    %v2268 = vpack.c.bf16 %v2260, %v2260
    %v2269 = vpack.c.bf16 %v2261, %v2261
    %v2270 = vpack.c.bf16 %v2262, %v2262
    %v2271 = vpack.c.bf16 %v2263, %v2263
    %v2272 = vpack.c.bf16 %v2264, %v2264
    %v2273 = vld [vmem:[#allocation11] sm:$0xf]
    %v2274 = vld [vmem:[#allocation11 + $0x4] sm:$0xf]
    %v2275 = vld [vmem:[#allocation11 + $0x8] sm:$0xf]
    %v2276 = vld [vmem:[#allocation11 + $0xc] sm:$0xf]
    %v2277 = vld [vmem:[#allocation11 + $0x10] sm:$0xf]
    %v2278 = vld [vmem:[#allocation11 + $0x14] sm:$0xf]
    %v2279 = vld [vmem:[#allocation11 + $0x18] sm:$0xf]
    %v2280 = vld [vmem:[#allocation11 + $0x1c] sm:$0xf]
    %v2281 = vld [vmem:[#allocation11 + $0x20] sm:$0xf]
    %v2282 = vld [vmem:[#allocation11 + $0x24] sm:$0xf]
    %v2283 = vld [vmem:[#allocation11 + $0x28] sm:$0xf]
    %v2284 = vld [vmem:[#allocation11 + $0x2c] sm:$0xf]
    %v2285 = vld [vmem:[#allocation11 + $0x30] sm:$0xf]
    %v2286 = vld [vmem:[#allocation11 + $0x34] sm:$0xf]
    %v2287 = vld [vmem:[#allocation11 + $0x38] sm:$0xf]
    %v2288 = vld [vmem:[#allocation11 + $0x3c] sm:$0xf]
    %v2289 = vld [vmem:[#allocation11 + $0x40] sm:$0xf]
    %v2290 = vld [vmem:[#allocation11 + $0x44] sm:$0xf]
    %v2291 = vld [vmem:[#allocation11 + $0x48] sm:$0xf]
    %v2292 = vld [vmem:[#allocation11 + $0x4c] sm:$0xf]
    %v2293 = vld [vmem:[#allocation11 + $0x50] sm:$0xf]
    %v2294 = vld [vmem:[#allocation11 + $0x54] sm:$0xf]
    %v2295 = vld [vmem:[#allocation11 + $0x58] sm:$0xf]
    %v2296 = vld [vmem:[#allocation11 + $0x5c] sm:$0xf]
    %v2297 = vld [vmem:[#allocation11 + $0x60] sm:$0xf]
    %v2298 = vld [vmem:[#allocation11 + $0x64] sm:$0xf]
    %v2299 = vld [vmem:[#allocation11 + $0x68] sm:$0xf]
    %v2300 = vld [vmem:[#allocation11 + $0x6c] sm:$0xf]
    %v2301 = vld [vmem:[#allocation11 + $0x70] sm:$0xf]
    %v2302 = vld [vmem:[#allocation11 + $0x74] sm:$0xf]
    %v2303 = vld [vmem:[#allocation11 + $0x78] sm:$0xf]
    %v2304 = vld [vmem:[#allocation11 + $0x7c] sm:$0xf]
    %v2305 = vld [vmem:[#allocation11 + $0x80] sm:$0xf]
    %v2306 = vld [vmem:[#allocation11 + $0x84] sm:$0xf]
    %v2307 = vld [vmem:[#allocation11 + $0x88] sm:$0xf]
    %v2308 = vld [vmem:[#allocation11 + $0x8c] sm:$0xf]
    %v2309 = vld [vmem:[#allocation11 + $0x90] sm:$0xf]
    %v2310 = vld [vmem:[#allocation11 + $0x94] sm:$0xf]
    %v2311 = vld [vmem:[#allocation11 + $0x98] sm:$0xf]
    %v2312 = vld [vmem:[#allocation11 + $0x9c] sm:$0xf]
    %v2313 = vld [vmem:[#allocation11 + $0xa0] sm:$0xf]
    %v2314 = vld [vmem:[#allocation11 + $0xa4] sm:$0xf]
    %v2315 = vld [vmem:[#allocation11 + $0xa8] sm:$0xf]
    %v2316 = vld [vmem:[#allocation11 + $0xac] sm:$0xf]
    %v2317 = vld [vmem:[#allocation11 + $0xb0] sm:$0xf]
    %v2318 = vld [vmem:[#allocation11 + $0xb4] sm:$0xf]
    %v2319 = vld [vmem:[#allocation11 + $0xb8] sm:$0xf]
    %v2320 = vld [vmem:[#allocation11 + $0xbc] sm:$0xf]
    %v2321 = vld [vmem:[#allocation11 + $0xc0] sm:$0xf]
    %v2322 = vld [vmem:[#allocation11 + $0xc4] sm:$0xf]
    %v2323 = vld [vmem:[#allocation11 + $0xc8] sm:$0xf]
    %v2324 = vld [vmem:[#allocation11 + $0xcc] sm:$0xf]
    %v2325 = vld [vmem:[#allocation11 + $0xd0] sm:$0xf]
    %v2326 = vld [vmem:[#allocation11 + $0xd4] sm:$0xf]
    %v2327 = vld [vmem:[#allocation11 + $0xd8] sm:$0xf]
    %v2328 = vld [vmem:[#allocation11 + $0xdc] sm:$0xf]
    %v2329 = vld [vmem:[#allocation11 + $0xe0] sm:$0xf]
    %v2330 = vld [vmem:[#allocation11 + $0xe4] sm:$0xf]
    %v2331 = vld [vmem:[#allocation11 + $0xe8] sm:$0xf]
    %v2332 = vld [vmem:[#allocation11 + $0xec] sm:$0xf]
    %v2333 = vld [vmem:[#allocation11 + $0xf0] sm:$0xf]
    %v2334 = vld [vmem:[#allocation11 + $0xf4] sm:$0xf]
    %v2335 = vld [vmem:[#allocation11 + $0xf8] sm:$0xf]
    %v2336 = vld [vmem:[#allocation11 + $0xfc] sm:$0xf]
    %v2337 = vld [vmem:[#allocation11 + $0x100] sm:$0xf]
    %v2338 = vld [vmem:[#allocation11 + $0x104] sm:$0xf]
    %v2339 = vld [vmem:[#allocation11 + $0x108] sm:$0xf]
    %v2340 = vld [vmem:[#allocation11 + $0x10c] sm:$0xf]
    %v2341 = vld [vmem:[#allocation11 + $0x110] sm:$0xf]
    %v2342 = vld [vmem:[#allocation11 + $0x114] sm:$0xf]
    %v2343 = vld [vmem:[#allocation11 + $0x118] sm:$0xf]
    %v2344 = vld [vmem:[#allocation11 + $0x11c] sm:$0xf]
    %v2345 = vld [vmem:[#allocation11 + $0x120] sm:$0xf]
    %v2346 = vld [vmem:[#allocation11 + $0x124] sm:$0xf]
    %v2347 = vld [vmem:[#allocation11 + $0x128] sm:$0xf]
    %v2348 = vld [vmem:[#allocation11 + $0x12c] sm:$0xf]
    %v2349 = vld [vmem:[#allocation11 + $0x130] sm:$0xf]
    %v2350 = vld [vmem:[#allocation11 + $0x134] sm:$0xf]
    %v2351 = vld [vmem:[#allocation11 + $0x138] sm:$0xf]
    %v2352 = vld [vmem:[#allocation11 + $0x13c] sm:$0xf]
    %v2353 = vld [vmem:[#allocation11 + $0x140] sm:$0xf]
    %v2354 = vld [vmem:[#allocation11 + $0x144] sm:$0xf]
    %v2355 = vld [vmem:[#allocation11 + $0x148] sm:$0xf]
    %v2356 = vld [vmem:[#allocation11 + $0x14c] sm:$0xf]
    %v2357 = vld [vmem:[#allocation11 + $0x150] sm:$0xf]
    %v2358 = vld [vmem:[#allocation11 + $0x154] sm:$0xf]
    %v2359 = vld [vmem:[#allocation11 + $0x158] sm:$0xf]
    %v2360 = vld [vmem:[#allocation11 + $0x15c] sm:$0xf]
    %v2361 = vld [vmem:[#allocation11 + $0x160] sm:$0xf]
    %v2362 = vld [vmem:[#allocation11 + $0x164] sm:$0xf]
    %v2363 = vld [vmem:[#allocation11 + $0x168] sm:$0xf]
    %v2364 = vld [vmem:[#allocation11 + $0x16c] sm:$0xf]
    %v2365 = vld [vmem:[#allocation11 + $0x170] sm:$0xf]
    %v2366 = vld [vmem:[#allocation11 + $0x174] sm:$0xf]
    %v2367 = vld [vmem:[#allocation11 + $0x178] sm:$0xf]
    %v2368 = vld [vmem:[#allocation11 + $0x17c] sm:$0xf]
    %v2369 = vld [vmem:[#allocation11 + $0x180] sm:$0xf]
    %v2370 = vld [vmem:[#allocation11 + $0x184] sm:$0xf]
    %v2371 = vld [vmem:[#allocation11 + $0x188] sm:$0xf]
    %v2372 = vld [vmem:[#allocation11 + $0x18c] sm:$0xf]
    %v2373 = vld [vmem:[#allocation11 + $0x190] sm:$0xf]
    %v2374 = vld [vmem:[#allocation11 + $0x194] sm:$0xf]
    %v2375 = vld [vmem:[#allocation11 + $0x198] sm:$0xf]
    %v2376 = vld [vmem:[#allocation11 + $0x19c] sm:$0xf]
    %v2377 = vld [vmem:[#allocation11 + $0x1a0] sm:$0xf]
    %v2378 = vld [vmem:[#allocation11 + $0x1a4] sm:$0xf]
    %v2379 = vld [vmem:[#allocation11 + $0x1a8] sm:$0xf]
    %v2380 = vld [vmem:[#allocation11 + $0x1ac] sm:$0xf]
    %v2381 = vld [vmem:[#allocation11 + $0x1b0] sm:$0xf]
    %v2382 = vld [vmem:[#allocation11 + $0x1b4] sm:$0xf]
    %v2383 = vld [vmem:[#allocation11 + $0x1b8] sm:$0xf]
    %v2384 = vld [vmem:[#allocation11 + $0x1bc] sm:$0xf]
    %v2385 = vld [vmem:[#allocation11 + $0x1c0] sm:$0xf]
    %v2386 = vld [vmem:[#allocation11 + $0x1c4] sm:$0xf]
    %v2387 = vld [vmem:[#allocation11 + $0x1c8] sm:$0xf]
    %v2388 = vld [vmem:[#allocation11 + $0x1cc] sm:$0xf]
    %v2389 = vld [vmem:[#allocation11 + $0x1d0] sm:$0xf]
    %v2390 = vld [vmem:[#allocation11 + $0x1d4] sm:$0xf]
    %v2391 = vld [vmem:[#allocation11 + $0x1d8] sm:$0xf]
    %v2392 = vld [vmem:[#allocation11 + $0x1dc] sm:$0xf]
    %v2393 = vld [vmem:[#allocation11 + $0x1e0] sm:$0xf]
    %v2394 = vld [vmem:[#allocation11 + $0x1e4] sm:$0xf]
    %v2395 = vld [vmem:[#allocation11 + $0x1e8] sm:$0xf]
    %v2396 = vld [vmem:[#allocation11 + $0x1ec] sm:$0xf]
    %v2397 = vld [vmem:[#allocation11 + $0x1f0] sm:$0xf]
    %v2398 = vld [vmem:[#allocation11 + $0x1f4] sm:$0xf]
    %v2399 = vld [vmem:[#allocation11 + $0x1f8] sm:$0xf]
    %v2400 = vld [vmem:[#allocation11 + $0x1fc] sm:$0xf]
    %v2401 = vld [vmem:[%s6] sm:$0x1]
    %v2403 = vperm.slane %v2401, 0
    %v2533 = vunpack.c.l.b16 %v2273
    %v2534 = vunpack.c.l.b16 %v2274
    %v2535 = vunpack.c.l.b16 %v2275
    %v2536 = vunpack.c.l.b16 %v2276
    %v2537 = vunpack.c.l.b16 %v2277
    %v2538 = vunpack.c.l.b16 %v2278
    %v2539 = vunpack.c.l.b16 %v2279
    %v2540 = vunpack.c.l.b16 %v2280
    %v2541 = vunpack.c.l.b16 %v2281
    %v2542 = vunpack.c.l.b16 %v2282
    %v2543 = vunpack.c.l.b16 %v2283
    %v2544 = vunpack.c.l.b16 %v2284
    %v2545 = vunpack.c.l.b16 %v2285
    %v2546 = vunpack.c.l.b16 %v2286
    %v2547 = vunpack.c.l.b16 %v2287
    %v2548 = vunpack.c.l.b16 %v2288
    %v2549 = vunpack.c.l.b16 %v2289
    %v2550 = vunpack.c.l.b16 %v2290
    %v2551 = vunpack.c.l.b16 %v2291
    %v2552 = vunpack.c.l.b16 %v2292
    %v2553 = vunpack.c.l.b16 %v2293
    %v2554 = vunpack.c.l.b16 %v2294
    %v2555 = vunpack.c.l.b16 %v2295
    %v2556 = vunpack.c.l.b16 %v2296
    %v2557 = vunpack.c.l.b16 %v2297
    %v2558 = vunpack.c.l.b16 %v2298
    %v2559 = vunpack.c.l.b16 %v2299
    %v2560 = vunpack.c.l.b16 %v2300
    %v2561 = vunpack.c.l.b16 %v2301
    %v2562 = vunpack.c.l.b16 %v2302
    %v2563 = vunpack.c.l.b16 %v2303
    %v2564 = vunpack.c.l.b16 %v2304
    %v2565 = vunpack.c.l.b16 %v2305
    %v2566 = vunpack.c.l.b16 %v2306
    %v2567 = vunpack.c.l.b16 %v2307
    %v2568 = vunpack.c.l.b16 %v2308
    %v2569 = vunpack.c.l.b16 %v2309
    %v2570 = vunpack.c.l.b16 %v2310
    %v2571 = vunpack.c.l.b16 %v2311
    %v2572 = vunpack.c.l.b16 %v2312
    %v2573 = vunpack.c.l.b16 %v2313
    %v2574 = vunpack.c.l.b16 %v2314
    %v2575 = vunpack.c.l.b16 %v2315
    %v2576 = vunpack.c.l.b16 %v2316
    %v2577 = vunpack.c.l.b16 %v2317
    %v2578 = vunpack.c.l.b16 %v2318
    %v2579 = vunpack.c.l.b16 %v2319
    %v2580 = vunpack.c.l.b16 %v2320
    %v2581 = vunpack.c.l.b16 %v2321
    %v2582 = vunpack.c.l.b16 %v2322
    %v2583 = vunpack.c.l.b16 %v2323
    %v2584 = vunpack.c.l.b16 %v2324
    %v2585 = vunpack.c.l.b16 %v2325
    %v2586 = vunpack.c.l.b16 %v2326
    %v2587 = vunpack.c.l.b16 %v2327
    %v2588 = vunpack.c.l.b16 %v2328
    %v2589 = vunpack.c.l.b16 %v2329
    %v2590 = vunpack.c.l.b16 %v2330
    %v2591 = vunpack.c.l.b16 %v2331
    %v2592 = vunpack.c.l.b16 %v2332
    %v2593 = vunpack.c.l.b16 %v2333
    %v2594 = vunpack.c.l.b16 %v2334
    %v2595 = vunpack.c.l.b16 %v2335
    %v2596 = vunpack.c.l.b16 %v2336
    %v2597 = vunpack.c.l.b16 %v2337
    %v2598 = vunpack.c.l.b16 %v2338
    %v2599 = vunpack.c.l.b16 %v2339
    %v2600 = vunpack.c.l.b16 %v2340
    %v2601 = vunpack.c.l.b16 %v2341
    %v2602 = vunpack.c.l.b16 %v2342
    %v2603 = vunpack.c.l.b16 %v2343
    %v2604 = vunpack.c.l.b16 %v2344
    %v2605 = vunpack.c.l.b16 %v2345
    %v2606 = vunpack.c.l.b16 %v2346
    %v2607 = vunpack.c.l.b16 %v2347
    %v2608 = vunpack.c.l.b16 %v2348
    %v2609 = vunpack.c.l.b16 %v2349
    %v2610 = vunpack.c.l.b16 %v2350
    %v2611 = vunpack.c.l.b16 %v2351
    %v2612 = vunpack.c.l.b16 %v2352
    %v2613 = vunpack.c.l.b16 %v2353
    %v2614 = vunpack.c.l.b16 %v2354
    %v2615 = vunpack.c.l.b16 %v2355
    %v2616 = vunpack.c.l.b16 %v2356
    %v2617 = vunpack.c.l.b16 %v2357
    %v2618 = vunpack.c.l.b16 %v2358
    %v2619 = vunpack.c.l.b16 %v2359
    %v2620 = vunpack.c.l.b16 %v2360
    %v2621 = vunpack.c.l.b16 %v2361
    %v2622 = vunpack.c.l.b16 %v2362
    %v2623 = vunpack.c.l.b16 %v2363
    %v2624 = vunpack.c.l.b16 %v2364
    %v2625 = vunpack.c.l.b16 %v2365
    %v2626 = vunpack.c.l.b16 %v2366
    %v2627 = vunpack.c.l.b16 %v2367
    %v2628 = vunpack.c.l.b16 %v2368
    %v2629 = vunpack.c.l.b16 %v2369
    %v2630 = vunpack.c.l.b16 %v2370
    %v2631 = vunpack.c.l.b16 %v2371
    %v2632 = vunpack.c.l.b16 %v2372
    %v2633 = vunpack.c.l.b16 %v2373
    %v2634 = vunpack.c.l.b16 %v2374
    %v2635 = vunpack.c.l.b16 %v2375
    %v2636 = vunpack.c.l.b16 %v2376
    %v2637 = vunpack.c.l.b16 %v2377
    %v2638 = vunpack.c.l.b16 %v2378
    %v2639 = vunpack.c.l.b16 %v2379
    %v2640 = vunpack.c.l.b16 %v2380
    %v2641 = vunpack.c.l.b16 %v2381
    %v2642 = vunpack.c.l.b16 %v2382
    %v2643 = vunpack.c.l.b16 %v2383
    %v2644 = vunpack.c.l.b16 %v2384
    %v2645 = vunpack.c.l.b16 %v2385
    %v2646 = vunpack.c.l.b16 %v2386
    %v2647 = vunpack.c.l.b16 %v2387
    %v2648 = vunpack.c.l.b16 %v2388
    %v2649 = vunpack.c.l.b16 %v2389
    %v2650 = vunpack.c.l.b16 %v2390
    %v2651 = vunpack.c.l.b16 %v2391
    %v2652 = vunpack.c.l.b16 %v2392
    %v2653 = vunpack.c.l.b16 %v2393
    %v2654 = vunpack.c.l.b16 %v2394
    %v2655 = vunpack.c.l.b16 %v2395
    %v2656 = vunpack.c.l.b16 %v2396
    %v2657 = vunpack.c.l.b16 %v2397
    %v2658 = vunpack.c.l.b16 %v2398
    %v2659 = vunpack.c.l.b16 %v2399
    %v2660 = vunpack.c.l.b16 %v2400
    %v2661 = vpack.c.b16 %v2534, %v2533
    %v2662 = vpack.c.b16 %v2536, %v2535
    %v2663 = vpack.c.b16 %v2538, %v2537
    %v2664 = vpack.c.b16 %v2540, %v2539
    %v2665 = vpack.c.b16 %v2542, %v2541
    %v2666 = vpack.c.b16 %v2544, %v2543
    %v2667 = vpack.c.b16 %v2546, %v2545
    %v2668 = vpack.c.b16 %v2548, %v2547
    %v2669 = vpack.c.b16 %v2550, %v2549
    %v2670 = vpack.c.b16 %v2552, %v2551
    %v2671 = vpack.c.b16 %v2554, %v2553
    %v2672 = vpack.c.b16 %v2556, %v2555
    %v2673 = vpack.c.b16 %v2558, %v2557
    %v2674 = vpack.c.b16 %v2560, %v2559
    %v2675 = vpack.c.b16 %v2562, %v2561
    %v2676 = vpack.c.b16 %v2564, %v2563
    %v2677 = vpack.c.b16 %v2566, %v2565
    %v2678 = vpack.c.b16 %v2568, %v2567
    %v2679 = vpack.c.b16 %v2570, %v2569
    %v2680 = vpack.c.b16 %v2572, %v2571
    %v2681 = vpack.c.b16 %v2574, %v2573
    %v2682 = vpack.c.b16 %v2576, %v2575
    %v2683 = vpack.c.b16 %v2578, %v2577
    %v2684 = vpack.c.b16 %v2580, %v2579
    %v2685 = vpack.c.b16 %v2582, %v2581
    %v2686 = vpack.c.b16 %v2584, %v2583
    %v2687 = vpack.c.b16 %v2586, %v2585
    %v2688 = vpack.c.b16 %v2588, %v2587
    %v2689 = vpack.c.b16 %v2590, %v2589
    %v2690 = vpack.c.b16 %v2592, %v2591
    %v2691 = vpack.c.b16 %v2594, %v2593
    %v2692 = vpack.c.b16 %v2596, %v2595
    %v2693 = vpack.c.b16 %v2598, %v2597
    %v2694 = vpack.c.b16 %v2600, %v2599
    %v2695 = vpack.c.b16 %v2602, %v2601
    %v2696 = vpack.c.b16 %v2604, %v2603
    %v2697 = vpack.c.b16 %v2606, %v2605
    %v2698 = vpack.c.b16 %v2608, %v2607
    %v2699 = vpack.c.b16 %v2610, %v2609
    %v2700 = vpack.c.b16 %v2612, %v2611
    %v2701 = vpack.c.b16 %v2614, %v2613
    %v2702 = vpack.c.b16 %v2616, %v2615
    %v2703 = vpack.c.b16 %v2618, %v2617
    %v2704 = vpack.c.b16 %v2620, %v2619
    %v2705 = vpack.c.b16 %v2622, %v2621
    %v2706 = vpack.c.b16 %v2624, %v2623
    %v2707 = vpack.c.b16 %v2626, %v2625
    %v2708 = vpack.c.b16 %v2628, %v2627
    %v2709 = vpack.c.b16 %v2630, %v2629
    %v2710 = vpack.c.b16 %v2632, %v2631
    %v2711 = vpack.c.b16 %v2634, %v2633
    %v2712 = vpack.c.b16 %v2636, %v2635
    %v2713 = vpack.c.b16 %v2638, %v2637
    %v2714 = vpack.c.b16 %v2640, %v2639
    %v2715 = vpack.c.b16 %v2642, %v2641
    %v2716 = vpack.c.b16 %v2644, %v2643
    %v2717 = vpack.c.b16 %v2646, %v2645
    %v2718 = vpack.c.b16 %v2648, %v2647
    %v2719 = vpack.c.b16 %v2650, %v2649
    %v2720 = vpack.c.b16 %v2652, %v2651
    %v2721 = vpack.c.b16 %v2654, %v2653
    %v2722 = vpack.c.b16 %v2656, %v2655
    %v2723 = vpack.c.b16 %v2658, %v2657
    %v2724 = vpack.c.b16 %v2660, %v2659
    %2789 = vmatpush.bf16.msra.mxu0 %v2668
    %2790 = vmatpush.bf16.msra.mxu0 %v2667
    %2791 = vmatpush.bf16.msra.mxu0 %v2666
    %2792 = vmatpush.bf16.msra.mxu0 %v2665
    %2793 = vmatpush.bf16.msra.mxu0 %v2664
    %2794 = vmatpush.bf16.msra.mxu0 %v2663
    %2795 = vmatpush.bf16.msra.mxu0 %v2662
    %2796 = vmatpush.bf16.msra.mxu0 %v2661
    %2797 = vmatmul.bf16.gmra.mxu0 %v2265
    %v2798 = vpop.f32.mrf.mxu0
    %v2799 = vadd.f32 %v2403, %v2798
    %v2800 = vpop.f32.mrf.mxu0
    %2801 = vdwg.mxu0
    %2802 = vmatpush.bf16.msra.mxu0 %v2676
    %2803 = vmatpush.bf16.msra.mxu0 %v2675
    %2804 = vmatpush.bf16.msra.mxu0 %v2674
    %2805 = vmatpush.bf16.msra.mxu0 %v2673
    %2806 = vmatpush.bf16.msra.mxu0 %v2672
    %2807 = vmatpush.bf16.msra.mxu0 %v2671
    %2808 = vmatpush.bf16.msra.mxu0 %v2670
    %2809 = vmatpush.bf16.msra.mxu0 %v2669
    %2810 = vmatmul.bf16.gmra.mxu0 %v2266
    %v2811 = vpop.f32.mrf.mxu0
    %v2812 = vadd.f32 %v2799, %v2811
    %v2813 = vpop.f32.mrf.mxu0
    %2814 = vdwg.mxu0
    %2815 = vmatpush.bf16.msra.mxu0 %v2684
    %2816 = vmatpush.bf16.msra.mxu0 %v2683
    %2817 = vmatpush.bf16.msra.mxu0 %v2682
    %2818 = vmatpush.bf16.msra.mxu0 %v2681
    %2819 = vmatpush.bf16.msra.mxu0 %v2680
    %2820 = vmatpush.bf16.msra.mxu0 %v2679
    %2821 = vmatpush.bf16.msra.mxu0 %v2678
    %2822 = vmatpush.bf16.msra.mxu0 %v2677
    %2823 = vmatmul.bf16.gmra.mxu0 %v2267
    %v2824 = vpop.f32.mrf.mxu0
    %v2825 = vadd.f32 %v2812, %v2824
    %v2826 = vpop.f32.mrf.mxu0
    %2827 = vdwg.mxu0
    %2828 = vmatpush.bf16.msra.mxu0 %v2692
    %2829 = vmatpush.bf16.msra.mxu0 %v2691
    %2830 = vmatpush.bf16.msra.mxu0 %v2690
    %2831 = vmatpush.bf16.msra.mxu0 %v2689
    %2832 = vmatpush.bf16.msra.mxu0 %v2688
    %2833 = vmatpush.bf16.msra.mxu0 %v2687
    %2834 = vmatpush.bf16.msra.mxu0 %v2686
    %2835 = vmatpush.bf16.msra.mxu0 %v2685
    %2836 = vmatmul.bf16.gmra.mxu0 %v2268
    %v2837 = vpop.f32.mrf.mxu0
    %v2838 = vadd.f32 %v2825, %v2837
    %v2839 = vpop.f32.mrf.mxu0
    %2840 = vdwg.mxu0
    %2841 = vmatpush.bf16.msra.mxu0 %v2700
    %2842 = vmatpush.bf16.msra.mxu0 %v2699
    %2843 = vmatpush.bf16.msra.mxu0 %v2698
    %2844 = vmatpush.bf16.msra.mxu0 %v2697
    %2845 = vmatpush.bf16.msra.mxu0 %v2696
    %2846 = vmatpush.bf16.msra.mxu0 %v2695
    %2847 = vmatpush.bf16.msra.mxu0 %v2694
    %2848 = vmatpush.bf16.msra.mxu0 %v2693
    %2849 = vmatmul.bf16.gmra.mxu0 %v2269
    %v2850 = vpop.f32.mrf.mxu0
    %v2851 = vadd.f32 %v2838, %v2850
    %v2852 = vpop.f32.mrf.mxu0
    %2853 = vdwg.mxu0
    %2854 = vmatpush.bf16.msra.mxu0 %v2708
    %2855 = vmatpush.bf16.msra.mxu0 %v2707
    %2856 = vmatpush.bf16.msra.mxu0 %v2706
    %2857 = vmatpush.bf16.msra.mxu0 %v2705
    %2858 = vmatpush.bf16.msra.mxu0 %v2704
    %2859 = vmatpush.bf16.msra.mxu0 %v2703
    %2860 = vmatpush.bf16.msra.mxu0 %v2702
    %2861 = vmatpush.bf16.msra.mxu0 %v2701
    %2862 = vmatmul.bf16.gmra.mxu0 %v2270
    %v2863 = vpop.f32.mrf.mxu0
    %v2864 = vadd.f32 %v2851, %v2863
    %v2865 = vpop.f32.mrf.mxu0
    %2866 = vdwg.mxu0
    %2867 = vmatpush.bf16.msra.mxu0 %v2716
    %2868 = vmatpush.bf16.msra.mxu0 %v2715
    %2869 = vmatpush.bf16.msra.mxu0 %v2714
    %2870 = vmatpush.bf16.msra.mxu0 %v2713
    %2871 = vmatpush.bf16.msra.mxu0 %v2712
    %2872 = vmatpush.bf16.msra.mxu0 %v2711
    %2873 = vmatpush.bf16.msra.mxu0 %v2710
    %2874 = vmatpush.bf16.msra.mxu0 %v2709
    %2875 = vmatmul.bf16.gmra.mxu0 %v2271
    %v2876 = vpop.f32.mrf.mxu0
    %v2877 = vadd.f32 %v2864, %v2876
    %v2878 = vpop.f32.mrf.mxu0
    %2879 = vdwg.mxu0
    %2880 = vmatpush.bf16.msra.mxu0 %v2724
    %2881 = vmatpush.bf16.msra.mxu0 %v2723
    %2882 = vmatpush.bf16.msra.mxu0 %v2722
    %2883 = vmatpush.bf16.msra.mxu0 %v2721
    %2884 = vmatpush.bf16.msra.mxu0 %v2720
    %2885 = vmatpush.bf16.msra.mxu0 %v2719
    %2886 = vmatpush.bf16.msra.mxu0 %v2718
    %2887 = vmatpush.bf16.msra.mxu0 %v2717
    %2888 = vmatmul.bf16.gmra.mxu0 %v2272
    %v2889 = vpop.f32.mrf.mxu0
    %v2890 = vadd.f32 %v2877, %v2889
    %v2891 = vpop.f32.mrf.mxu0
    %2892 = vdwg.mxu0
    %2893 = vst [vmem:[#allocation13] sm:$0xf] %v2890
    // Predicated region
    $region54: #{tpu_custom_call.1} parent=1 // pred_check
      _
    $region55: #{tpu_custom_call.1} parent=1 // pred_check_branch
      %2895 = sbr.rel (0) target = $region57
    $region56: #{tpu_custom_call.1} parent=1 // pred_region
      %2897 = vsyncadd [#allocation4], 0
      %s2899 = sshll.u32 [#allocation13], 4
      %s2900 = int_to_ptr.vmem [resolvable:$true] %s2899
      %s2901 = sshll.u32 %s7, 4
      %s2902 = int_to_ptr.hbm [resolvable:$true] %s2901
      %2904 = dma.vmem_to_hbm [thread:$0]  %s2900, 64, %s2902, [#allocation4]
    $region57: #{tpu_custom_call.1} parent=1 // pred_fallthru
      _
    // Predicated region
    $region58: #{tpu_custom_call.1} parent=1 // pred_check
      _
    $region59: #{tpu_custom_call.1} parent=1 // pred_check_branch
      %2906 = sbr.rel (0) target = $region61
    $region60: #{tpu_custom_call.1} parent=1 // pred_region
      %2908 = dma.done [#allocation4], 64
    $region61: #{tpu_custom_call.1} parent=1 // pred_fallthru
      _
    %2909 = vsyncpa [#allocation3], 1
    %2910 = vsyncpa [#allocation6], 1
    %2911 = vsyncpa [#allocation9], 1
    %2912 = vsyncpa [#allocation12], 1
    %2913 = vsyncpa [#allocation4], 1

</llo_original>
